<compile_context>
chip_gen: v5e
topology: v5e:2x2
jax: 0.10.0
libtpu: 0.0.40
codegen_flags: <defaults>
</compile_context>

<pallas_src>
import jax
import jax.numpy as jnp
from jax.experimental import pallas as pl
from jax.experimental.pallas import tpu as pltpu


def _round_up(x, m):
    return ((x + m - 1) // m) * m


# ---------------------------------------------------------------------------
# Pallas kernel
# ---------------------------------------------------------------------------
def encoder_kernel(x0_ref, lens_ref,
                   w0_ref, bgi0_ref, wh0_ref, bhn0_ref,
                   w1_ref, bgi1_ref, wh1_ref, bhn1_ref,
                   fcw1_ref, fcw0_ref, fcb_ref,
                   out_ref,
                   gi_sc, y_sc):
    """2-layer bidirectional GRU (packed seq) + Linear + ReLU.

    Layouts (Hp = padded per-direction hidden, G2 = 2*Hp multiple of 128):
      hidden state h       : (Bp, G2) = [h_fwd | h_rev]
      gate pre-activations : (Bp, G6) = [r_f r_r | z_f z_r | n_f n_r]
      hoisted input weights: (D, 2*G6) = [W_a | W_b] with
          gi[step t] = x[t] @ W_a + x[T-1-t] @ W_b + bgi
    """
    Bp = out_ref.shape[0]
    T = x0_ref.shape[0] // Bp
    G2 = wh0_ref.shape[0]          # 2*Hp
    G6 = wh0_ref.shape[1]          # 6*Hp
    Hp = G2 // 2

    lens = lens_ref[...]                                       # (Bp, 1) int32
    lane = jax.lax.broadcasted_iota(jnp.int32, (Bp, G2), 1)
    is_fwd = lane < Hp                                         # fwd vs rev lanes

    def hoist_gi(x, w_ref, bgi_ref):
        # Off the serial critical path: one batched MXU matmul for all
        # timesteps and both directions; the rev half is time-flipped via
        # static block-reversed reads of the result.
        g = jnp.dot(x, w_ref[...], preferred_element_type=jnp.float32)
        bgi = bgi_ref[...]
        for t in range(T):
            lo = t * Bp
            rlo = (T - 1 - t) * Bp
            gi_sc[lo:lo + Bp, :] = (g[lo:lo + Bp, 0:G6]
                                    + g[rlo:rlo + Bp, G6:2 * G6] + bgi)

    def run_layer(wh_ref, bhn_ref, collect):
        def body(i, h):
            idx = pl.multiple_of(i * Bp, Bp)
            gi = gi_sc[pl.ds(idx, Bp), :]                      # (Bp, G6)
            gh = jnp.dot(h, wh_ref[...],
                         preferred_element_type=jnp.float32)   # one matmul/step
            # 128-lane-aligned gate slabs: no cross-lane work in the hot loop
            r = jax.nn.sigmoid(gi[:, 0:G2] + gh[:, 0:G2])
            z = jax.nn.sigmoid(gi[:, G2:2 * G2] + gh[:, G2:2 * G2])
            n = jnp.tanh(gi[:, 2 * G2:3 * G2]
                         + r * (gh[:, 2 * G2:3 * G2] + bhn_ref[...]))
            h_new = (1.0 - z) * n + z * h
            # packed-sequence masking: fwd lanes update while i < len,
            # rev lanes while (T-1-i) < len
            t_eff = jnp.where(is_fwd, i, T - 1 - i)
            h = jnp.where(t_eff < lens, h_new, h)
            if collect:
                y_sc[pl.ds(idx, Bp), :] = h
            return h

        h_init = jnp.zeros((Bp, G2), jnp.float32)
        return jax.lax.fori_loop(0, T, body, h_init, unroll=True)

    # ---- layer 0: embeddings -> bidirectional GRU
    hoist_gi(x0_ref[...], w0_ref, bgi0_ref)
    h0 = run_layer(wh0_ref, bhn0_ref, collect=True)

    # ---- layer 1: layer-0 outputs (VMEM scratch) -> bidirectional GRU
    hoist_gi(y_sc[...], w1_ref, bgi1_ref)                      # gi scratch reused
    h1 = run_layer(wh1_ref, bhn1_ref, collect=False)

    # ---- fc + relu: fc weights pre-permuted & split -> no lane concatenation
    hf = (jnp.dot(h1, fcw1_ref[...], preferred_element_type=jnp.float32)
          + jnp.dot(h0, fcw0_ref[...], preferred_element_type=jnp.float32)
          + fcb_ref[...])
    out_ref[...] = jnp.maximum(hf, 0.0)                        # lane-dense store


# ---------------------------------------------------------------------------
# Parameter initialization (PyTorch layout, transposed to input-major)
# ---------------------------------------------------------------------------
def init_params(key, input_dim, emb_dim, enc_hid, dec_hid):
    keys = iter(jax.random.split(key, 24))

    def u(shape, bound):
        return jax.random.uniform(next(keys), shape, jnp.float32, -bound, bound)

    p = {}
    p["embedding"] = jax.random.normal(next(keys), (input_dim, emb_dim),
                                       jnp.float32)

    bnd = 1.0 / (enc_hid ** 0.5)

    def gru_dir(in_dim):
        wi = u((3 * enc_hid, in_dim), bnd).T     # (in, 3H), gate cols [r,z,n]
        wh = u((3 * enc_hid, enc_hid), bnd).T    # (H, 3H)
        bi = u((3 * enc_hid,), bnd)
        bh = u((3 * enc_hid,), bnd)
        return wi, wh, bi, bh

    p["wi0f"], p["wh0f"], p["bi0f"], p["bh0f"] = gru_dir(emb_dim)
    p["wi0r"], p["wh0r"], p["bi0r"], p["bh0r"] = gru_dir(emb_dim)
    p["wi1f"], p["wh1f"], p["bi1f"], p["bh1f"] = gru_dir(2 * enc_hid)
    p["wi1r"], p["wh1r"], p["bi1r"], p["bh1r"] = gru_dir(2 * enc_hid)

    fan_in = 4 * enc_hid
    fb = 1.0 / (fan_in ** 0.5)
    p["fcw"] = u((dec_hid, fan_in), fb).T        # (4H, dec)
    p["fcb"] = u((dec_hid,), fb)
    return p


# ---------------------------------------------------------------------------
# Pack PyTorch-layout weights into the fused, lane-aligned kernel layout
# ---------------------------------------------------------------------------
def _place_gates(dst, w, row_off, rev, H, Hp):
    """Scatter (rows, 3H) gate-major [r z n] weights into the fused
    [r_f r_r | z_f z_r | n_f n_r] column layout (each block Hp wide)."""
    G2 = 2 * Hp
    base = Hp if rev else 0
    rows = w.shape[0]
    for g in range(3):
        c0 = g * G2 + base
        dst = dst.at[row_off:row_off + rows, c0:c0 + H].set(w[:, g * H:(g + 1) * H])
    return dst


def _pack_biases(bi_f, bh_f, bi_r, bh_r, H, Hp):
    G2, G6 = 2 * Hp, 6 * Hp
    bgi = jnp.zeros((1, G6), jnp.float32)
    bhn = jnp.zeros((1, G2), jnp.float32)
    for g in range(3):
        fwd = bi_f[g * H:(g + 1) * H] + (bh_f[g * H:(g + 1) * H] if g < 2 else 0.0)
        rev = bi_r[g * H:(g + 1) * H] + (bh_r[g * H:(g + 1) * H] if g < 2 else 0.0)
        bgi = bgi.at[0, g * G2:g * G2 + H].set(fwd)
        bgi = bgi.at[0, g * G2 + Hp:g * G2 + Hp + H].set(rev)
    bhn = bhn.at[0, 0:H].set(bh_f[2 * H:3 * H])
    bhn = bhn.at[0, Hp:Hp + H].set(bh_r[2 * H:3 * H])
    return bgi, bhn


def _pack_layer0(wi_f, wi_r, wh_f, wh_r, bi_f, bh_f, bi_r, bh_r, H, Hp):
    E = wi_f.shape[0]
    G2, G6 = 2 * Hp, 6 * Hp
    wa = _place_gates(jnp.zeros((E, G6), jnp.float32), wi_f, 0, False, H, Hp)
    wb = _place_gates(jnp.zeros((E, G6), jnp.float32), wi_r, 0, True, H, Hp)
    w0 = jnp.concatenate([wa, wb], axis=1)                    # (E, 12Hp)
    wh = _place_gates(jnp.zeros((G2, G6), jnp.float32), wh_f, 0, False, H, Hp)
    wh = _place_gates(wh, wh_r, Hp, True, H, Hp)              # block-diagonal
    bgi, bhn = _pack_biases(bi_f, bh_f, bi_r, bh_r, H, Hp)
    return w0, wh, bgi, bhn


def _pack_layer1(wi_f, wi_r, wh_f, wh_r, bi_f, bh_f, bi_r, bh_r, H, Hp):
    # Layer-1 input per direction is [y0_fwd | y0_rev]; split rows into the
    # y0_fwd part (A) and y0_rev part (B) and regroup so that
    #   gi[step t] = Y[t] @ M1 + Y[T-1-t] @ M2
    # where Y[t] = [y0_fwd(t) | y0_rev(T-1-t)] is the layer-0 loop output.
    G2, G6 = 2 * Hp, 6 * Hp
    wi_f_A, wi_f_B = wi_f[0:H], wi_f[H:2 * H]
    wi_r_A, wi_r_B = wi_r[0:H], wi_r[H:2 * H]
    m1 = jnp.zeros((G2, G6), jnp.float32)
    m1 = _place_gates(m1, wi_f_A, 0, False, H, Hp)    # y0_f(t)      -> fwd cols
    m1 = _place_gates(m1, wi_r_B, Hp, True, H, Hp)    # y0_r(T-1-t)  -> rev cols
    m2 = jnp.zeros((G2, G6), jnp.float32)
    m2 = _place_gates(m2, wi_r_A, 0, True, H, Hp)     # y0_f(T-1-t)  -> rev cols
    m2 = _place_gates(m2, wi_f_B, Hp, False, H, Hp)   # y0_r(t)      -> fwd cols
    w1 = jnp.concatenate([m1, m2], axis=1)                    # (2Hp, 12Hp)
    wh = _place_gates(jnp.zeros((G2, G6), jnp.float32), wh_f, 0, False, H, Hp)
    wh = _place_gates(wh, wh_r, Hp, True, H, Hp)
    bgi, bhn = _pack_biases(bi_f, bh_f, bi_r, bh_r, H, Hp)
    return w1, wh, bgi, bhn


def _pack_fc(fcw, fcb, H, Hp, Dp):
    # fcw rows correspond to p = [h1_rev | h1_fwd | h0_rev | h0_fwd].
    dec = fcw.shape[1]
    fcw1 = jnp.zeros((2 * Hp, Dp), jnp.float32)
    fcw0 = jnp.zeros((2 * Hp, Dp), jnp.float32)
    fcw1 = fcw1.at[0:H, 0:dec].set(fcw[H:2 * H])              # h1_fwd
    fcw1 = fcw1.at[Hp:Hp + H, 0:dec].set(fcw[0:H])            # h1_rev
    fcw0 = fcw0.at[0:H, 0:dec].set(fcw[3 * H:4 * H])          # h0_fwd
    fcw0 = fcw0.at[Hp:Hp + H, 0:dec].set(fcw[2 * H:3 * H])    # h0_rev
    fcb_p = jnp.zeros((1, Dp), jnp.float32).at[0, 0:dec].set(fcb)
    return fcw1, fcw0, fcb_p


def pack_params(p):
    H = p["wh0f"].shape[0]
    Hp = _round_up(H, 64)          # 2*Hp multiple of 128 -> lane-aligned gates
    dec = p["fcw"].shape[1]
    Dp = _round_up(dec, 128)       # lane-dense output store
    k = {"embedding": p["embedding"], "H": H, "Hp": Hp, "dec": dec, "Dp": Dp}
    k["w0"], k["wh0"], k["bgi0"], k["bhn0"] = _pack_layer0(
        p["wi0f"], p["wi0r"], p["wh0f"], p["wh0r"],
        p["bi0f"], p["bh0f"], p["bi0r"], p["bh0r"], H, Hp)
    k["w1"], k["wh1"], k["bgi1"], k["bhn1"] = _pack_layer1(
        p["wi1f"], p["wi1r"], p["wh1f"], p["wh1r"],
        p["bi1f"], p["bh1f"], p["bi1r"], p["bh1r"], H, Hp)
    k["fcw1"], k["fcw0"], k["fcb"] = _pack_fc(p["fcw"], p["fcb"], H, Hp, Dp)
    return k


# ---------------------------------------------------------------------------
# Host wrapper
# ---------------------------------------------------------------------------
def encoder_forward(src, src_len, params=None, packed=None):
    """src: (T, B) int32 token ids; src_len: (B,) int32 valid lengths."""
    if packed is None:
        packed = pack_params(params)

    emb = jnp.take(packed["embedding"], src, axis=0)    # (T, B, E) gather (XLA glue)
    # TODO(synk): nn.Dropout is stochastic; treated as identity (eval mode).
    T, B, E = emb.shape
    Hp, dec, Dp = packed["Hp"], packed["dec"], packed["Dp"]
    G2, G6 = 2 * Hp, 6 * Hp

    # pad batch to the sublane width (8); padded rows have length 0
    Bp = _round_up(B, 8)
    lens = src_len.astype(jnp.int32)
    if Bp != B:
        emb = jnp.pad(emb, ((0, 0), (0, Bp - B), (0, 0)))
        lens = jnp.pad(lens, (0, Bp - B))
    x0 = emb.reshape(T * Bp, E)               # natural time order, no doubling
    lens2 = lens.reshape(Bp, 1)

    inputs = [x0, lens2,
              packed["w0"], packed["bgi0"], packed["wh0"], packed["bhn0"],
              packed["w1"], packed["bgi1"], packed["wh1"], packed["bhn1"],
              packed["fcw1"], packed["fcw0"], packed["fcb"]]

    # explicit VMEM budget (all-resident design; scratch reused across layers)
    in_bytes = sum(int(a.size) * a.dtype.itemsize for a in inputs)
    scratch_bytes = (T * Bp) * (G6 + G2) * 4
    out_bytes = Bp * Dp * 4
    vmem_limit = int(min(96 * 2 ** 20,
                         max(8 * 2 ** 20,
                             2 * (in_bytes + scratch_bytes + out_bytes))))

    out = pl.pallas_call(
        encoder_kernel,
        out_shape=jax.ShapeDtypeStruct((Bp, Dp), jnp.float32),
        in_specs=[pl.BlockSpec(memory_space=pltpu.MemorySpace.VMEM)] * len(inputs),
        out_specs=pl.BlockSpec(memory_space=pltpu.MemorySpace.VMEM),
        scratch_shapes=[pltpu.VMEM((T * Bp, G6), jnp.float32),   # gi (reused)
                        pltpu.VMEM((T * Bp, G2), jnp.float32)],  # layer-0 outputs
        compiler_params=pltpu.CompilerParams(vmem_limit_bytes=vmem_limit),
    )(*inputs)

    hidden = out[:B, :dec]
    syntax, content = jnp.split(hidden, 2, axis=1)
    return syntax, content


# ---------------------------------------------------------------------------
# Pure-JAX reference (PyTorch GRU semantics, f32 highest precision)
# ---------------------------------------------------------------------------
def encoder_reference(src, src_len, p):
    emb = jnp.take(p["embedding"], src, axis=0)
    T, B, _ = emb.shape
    H = p["wh0f"].shape[0]
    lens = src_len.astype(jnp.int32)
    hp = jax.lax.Precision.HIGHEST

    def cell(x, h, wi, wh, bi, bh):
        gi = jnp.dot(x, wi, precision=hp) + bi
        gh = jnp.dot(h, wh, precision=hp) + bh
        r = jax.nn.sigmoid(gi[:, :H] + gh[:, :H])
        z = jax.nn.sigmoid(gi[:, H:2 * H] + gh[:, H:2 * H])
        n = jnp.tanh(gi[:, 2 * H:] + r * gh[:, 2 * H:])
        return (1.0 - z) * n + z * h

    def run_dir(xs, wi, wh, bi, bh, reverse):
        h = jnp.zeros((B, H), jnp.float32)
        ys = [None] * T
        order = range(T - 1, -1, -1) if reverse else range(T)
        for t in order:
            h_new = cell(xs[t], h, wi, wh, bi, bh)
            upd = (t < lens)[:, None]
            h = jnp.where(upd, h_new, h)
            ys[t] = h
        return h, ys

    h0f, y0f = run_dir(emb, p["wi0f"], p["wh0f"], p["bi0f"], p["bh0f"], False)
    h0r, y0r = run_dir(emb, p["wi0r"], p["wh0r"], p["bi0r"], p["bh0r"], True)
    xs1 = [jnp.concatenate([y0f[t], y0r[t]], axis=1) for t in range(T)]
    h1f, _ = run_dir(xs1, p["wi1f"], p["wh1f"], p["bi1f"], p["bh1f"], False)
    h1r, _ = run_dir(xs1, p["wi1r"], p["wh1r"], p["bi1r"], p["bh1r"], True)

    pcat = jnp.concatenate([h1r, h1f, h0r, h0f], axis=1)
    hf = jnp.dot(pcat, p["fcw"], precision=hp) + p["fcb"]
    hidden = jnp.maximum(hf, 0.0)
    syn, con = jnp.split(hidden, 2, axis=1)
    return syn, con


if __name__ == "__main__":
    import numpy as np

    INPUT_DIM = 50      # vocab size
    EMB_DIM = 32
    ENC_HID_DIM = 32
    DEC_HID_DIM = 32
    T, B = 8, 4

    key = jax.random.PRNGKey(0)
    k_param, k_src = jax.random.split(key)

    params = init_params(k_param, INPUT_DIM, EMB_DIM, ENC_HID_DIM, DEC_HID_DIM)
    packed = pack_params(params)

    src = jax.random.randint(k_src, (T, B), 0, INPUT_DIM, dtype=jnp.int32)
    src_len = jnp.array([8, 6, 5, 3], dtype=jnp.int32)   # sorted descending

    syntax, content = encoder_forward(src, src_len, params, packed)
    jax.block_until_ready((syntax, content))
    assert syntax.shape == (B, DEC_HID_DIM // 2)
    assert content.shape == (B, DEC_HID_DIM // 2)

    # correctness check against a pure-JAX reference of the PyTorch module
    ref_syn, ref_con = encoder_reference(src, src_len, params)
    np.testing.assert_allclose(np.asarray(syntax), np.asarray(ref_syn),
                               rtol=2e-3, atol=2e-3)
    np.testing.assert_allclose(np.asarray(content), np.asarray(ref_con),
                               rtol=2e-3, atol=2e-3)

    print("KERNEL_OK")
</pallas_src>

<mosaic_0001>
module attributes {stable_mosaic.version = 11 : i64} {
  func.func @encoder_kernel(%arg0: memref<64x32xf32, #tpu.memory_space<vmem>>, %arg1: memref<8x1xi32, #tpu.memory_space<vmem>>, %arg2: memref<32x768xf32, #tpu.memory_space<vmem>>, %arg3: memref<1x384xf32, #tpu.memory_space<vmem>>, %arg4: memref<128x384xf32, #tpu.memory_space<vmem>>, %arg5: memref<1x128xf32, #tpu.memory_space<vmem>>, %arg6: memref<128x768xf32, #tpu.memory_space<vmem>>, %arg7: memref<1x384xf32, #tpu.memory_space<vmem>>, %arg8: memref<128x384xf32, #tpu.memory_space<vmem>>, %arg9: memref<1x128xf32, #tpu.memory_space<vmem>>, %arg10: memref<128x128xf32, #tpu.memory_space<vmem>>, %arg11: memref<128x128xf32, #tpu.memory_space<vmem>>, %arg12: memref<1x128xf32, #tpu.memory_space<vmem>>, %arg13: memref<8x128xf32, #tpu.memory_space<vmem>>, %arg14: memref<64x384xf32, #tpu.memory_space<vmem>>, %arg15: memref<64x128xf32, #tpu.memory_space<vmem>>) attributes {dimension_semantics = [], scalar_prefetch = 0 : i64, scratch_operands = 2 : i64, tpu.core_type = #tpu.core_type<tc>} {
    %c0 = arith.constant 0 : index
    %c0_0 = arith.constant 0 : index
    %0 = vector.load %arg1[%c0, %c0_0] : memref<8x1xi32, #tpu.memory_space<vmem>>, vector<8x1xi32>
    %1 = tpu.iota {dimensions = array<i32: 1>} : vector<8x128xi32>
    %c64_i32 = arith.constant 64 : i32
    %2 = vector.broadcast %c64_i32 : i32 to vector<8x128xi32>
    %3 = arith.cmpi slt, %1, %2 : vector<8x128xi32>
    %c0_1 = arith.constant 0 : index
    %c0_2 = arith.constant 0 : index
    %4 = vector.load %arg0[%c0_1, %c0_2] : memref<64x32xf32, #tpu.memory_space<vmem>>, vector<64x32xf32>
    %c0_3 = arith.constant 0 : index
    %c0_4 = arith.constant 0 : index
    %5 = vector.load %arg2[%c0_3, %c0_4] : memref<32x768xf32, #tpu.memory_space<vmem>>, vector<32x768xf32>
    %cst = arith.constant dense<0.000000e+00> : vector<64x768xf32>
    %6 = tpu.matmul %4, %5, %cst {dimension_numbers = #tpu.dot_dimension_numbers<[1], [0], [0], [1], [0, 0, 1, 1], [], []>} : vector<64x32xf32>, vector<32x768xf32>, vector<64x768xf32> -> vector<64x768xf32>
    %c0_5 = arith.constant 0 : index
    %c0_6 = arith.constant 0 : index
    %7 = vector.load %arg3[%c0_5, %c0_6] : memref<1x384xf32, #tpu.memory_space<vmem>>, vector<1x384xf32>
    %8 = vector.extract_strided_slice %6 {offsets = [0, 0], sizes = [8, 384], strides = [1, 1]} : vector<64x768xf32> to vector<8x384xf32>
    %9 = vector.extract_strided_slice %6 {offsets = [56, 384], sizes = [8, 384], strides = [1, 1]} : vector<64x768xf32> to vector<8x384xf32>
    %10 = arith.addf %8, %9 : vector<8x384xf32>
    %11 = vector.broadcast %7 : vector<1x384xf32> to vector<8x384xf32>
    %12 = arith.addf %10, %11 : vector<8x384xf32>
    %c0_7 = arith.constant 0 : index
    %c0_8 = arith.constant 0 : index
    %13 = vector.load %arg14[%c0_7, %c0_8] : memref<64x384xf32, #tpu.memory_space<vmem>>, vector<8x384xf32>
    tpu.vector_store %arg14[%c0_7, %c0_8], %12 {strides = array<i32>} : memref<64x384xf32, #tpu.memory_space<vmem>>, vector<8x384xf32>,
    %14 = vector.extract_strided_slice %6 {offsets = [8, 0], sizes = [8, 384], strides = [1, 1]} : vector<64x768xf32> to vector<8x384xf32>
    %15 = vector.extract_strided_slice %6 {offsets = [48, 384], sizes = [8, 384], strides = [1, 1]} : vector<64x768xf32> to vector<8x384xf32>
    %16 = arith.addf %14, %15 : vector<8x384xf32>
    %17 = vector.broadcast %7 : vector<1x384xf32> to vector<8x384xf32>
    %18 = arith.addf %16, %17 : vector<8x384xf32>
    %c8 = arith.constant 8 : index
    %c0_9 = arith.constant 0 : index
    %19 = vector.load %arg14[%c8, %c0_9] : memref<64x384xf32, #tpu.memory_space<vmem>>, vector<8x384xf32>
    tpu.vector_store %arg14[%c8, %c0_9], %18 {strides = array<i32>} : memref<64x384xf32, #tpu.memory_space<vmem>>, vector<8x384xf32>,
    %20 = vector.extract_strided_slice %6 {offsets = [16, 0], sizes = [8, 384], strides = [1, 1]} : vector<64x768xf32> to vector<8x384xf32>
    %21 = vector.extract_strided_slice %6 {offsets = [40, 384], sizes = [8, 384], strides = [1, 1]} : vector<64x768xf32> to vector<8x384xf32>
    %22 = arith.addf %20, %21 : vector<8x384xf32>
    %23 = vector.broadcast %7 : vector<1x384xf32> to vector<8x384xf32>
    %24 = arith.addf %22, %23 : vector<8x384xf32>
    %c16 = arith.constant 16 : index
    %c0_10 = arith.constant 0 : index
    %25 = vector.load %arg14[%c16, %c0_10] : memref<64x384xf32, #tpu.memory_space<vmem>>, vector<8x384xf32>
    tpu.vector_store %arg14[%c16, %c0_10], %24 {strides = array<i32>} : memref<64x384xf32, #tpu.memory_space<vmem>>, vector<8x384xf32>,
    %26 = vector.extract_strided_slice %6 {offsets = [24, 0], sizes = [8, 384], strides = [1, 1]} : vector<64x768xf32> to vector<8x384xf32>
    %27 = vector.extract_strided_slice %6 {offsets = [32, 384], sizes = [8, 384], strides = [1, 1]} : vector<64x768xf32> to vector<8x384xf32>
    %28 = arith.addf %26, %27 : vector<8x384xf32>
    %29 = vector.broadcast %7 : vector<1x384xf32> to vector<8x384xf32>
    %30 = arith.addf %28, %29 : vector<8x384xf32>
    %c24 = arith.constant 24 : index
    %c0_11 = arith.constant 0 : index
    %31 = vector.load %arg14[%c24, %c0_11] : memref<64x384xf32, #tpu.memory_space<vmem>>, vector<8x384xf32>
    tpu.vector_store %arg14[%c24, %c0_11], %30 {strides = array<i32>} : memref<64x384xf32, #tpu.memory_space<vmem>>, vector<8x384xf32>,
    %32 = vector.extract_strided_slice %6 {offsets = [32, 0], sizes = [8, 384], strides = [1, 1]} : vector<64x768xf32> to vector<8x384xf32>
    %33 = vector.extract_strided_slice %6 {offsets = [24, 384], sizes = [8, 384], strides = [1, 1]} : vector<64x768xf32> to vector<8x384xf32>
    %34 = arith.addf %32, %33 : vector<8x384xf32>
    %35 = vector.broadcast %7 : vector<1x384xf32> to vector<8x384xf32>
    %36 = arith.addf %34, %35 : vector<8x384xf32>
    %c32 = arith.constant 32 : index
    %c0_12 = arith.constant 0 : index
    %37 = vector.load %arg14[%c32, %c0_12] : memref<64x384xf32, #tpu.memory_space<vmem>>, vector<8x384xf32>
    tpu.vector_store %arg14[%c32, %c0_12], %36 {strides = array<i32>} : memref<64x384xf32, #tpu.memory_space<vmem>>, vector<8x384xf32>,
    %38 = vector.extract_strided_slice %6 {offsets = [40, 0], sizes = [8, 384], strides = [1, 1]} : vector<64x768xf32> to vector<8x384xf32>
    %39 = vector.extract_strided_slice %6 {offsets = [16, 384], sizes = [8, 384], strides = [1, 1]} : vector<64x768xf32> to vector<8x384xf32>
    %40 = arith.addf %38, %39 : vector<8x384xf32>
    %41 = vector.broadcast %7 : vector<1x384xf32> to vector<8x384xf32>
    %42 = arith.addf %40, %41 : vector<8x384xf32>
    %c40 = arith.constant 40 : index
    %c0_13 = arith.constant 0 : index
    %43 = vector.load %arg14[%c40, %c0_13] : memref<64x384xf32, #tpu.memory_space<vmem>>, vector<8x384xf32>
    tpu.vector_store %arg14[%c40, %c0_13], %42 {strides = array<i32>} : memref<64x384xf32, #tpu.memory_space<vmem>>, vector<8x384xf32>,
    %44 = vector.extract_strided_slice %6 {offsets = [48, 0], sizes = [8, 384], strides = [1, 1]} : vector<64x768xf32> to vector<8x384xf32>
    %45 = vector.extract_strided_slice %6 {offsets = [8, 384], sizes = [8, 384], strides = [1, 1]} : vector<64x768xf32> to vector<8x384xf32>
    %46 = arith.addf %44, %45 : vector<8x384xf32>
    %47 = vector.broadcast %7 : vector<1x384xf32> to vector<8x384xf32>
    %48 = arith.addf %46, %47 : vector<8x384xf32>
    %c48 = arith.constant 48 : index
    %c0_14 = arith.constant 0 : index
    %49 = vector.load %arg14[%c48, %c0_14] : memref<64x384xf32, #tpu.memory_space<vmem>>, vector<8x384xf32>
    tpu.vector_store %arg14[%c48, %c0_14], %48 {strides = array<i32>} : memref<64x384xf32, #tpu.memory_space<vmem>>, vector<8x384xf32>,
    %50 = vector.extract_strided_slice %6 {offsets = [56, 0], sizes = [8, 384], strides = [1, 1]} : vector<64x768xf32> to vector<8x384xf32>
    %51 = vector.extract_strided_slice %6 {offsets = [0, 384], sizes = [8, 384], strides = [1, 1]} : vector<64x768xf32> to vector<8x384xf32>
    %52 = arith.addf %50, %51 : vector<8x384xf32>
    %53 = vector.broadcast %7 : vector<1x384xf32> to vector<8x384xf32>
    %54 = arith.addf %52, %53 : vector<8x384xf32>
    %c56 = arith.constant 56 : index
    %c0_15 = arith.constant 0 : index
    %55 = vector.load %arg14[%c56, %c0_15] : memref<64x384xf32, #tpu.memory_space<vmem>>, vector<8x384xf32>
    tpu.vector_store %arg14[%c56, %c0_15], %54 {strides = array<i32>} : memref<64x384xf32, #tpu.memory_space<vmem>>, vector<8x384xf32>,
    %cst_16 = arith.constant 0.000000e+00 : f32
    %56 = vector.broadcast %cst_16 : f32 to vector<8x128xf32>
    %c0_i32 = arith.constant 0 : i32
    %c8_i32 = arith.constant 8 : i32
    %57 = arith.muli %c0_i32, %c8_i32 : i32
    %58 = tpu.assume_multiple %57, 8 : i32
    %59 = arith.index_cast %58 : i32 to index
    %c0_17 = arith.constant 0 : index
    %60 = vector.load %arg14[%59, %c0_17] : memref<64x384xf32, #tpu.memory_space<vmem>>, vector<8x384xf32>
    %c0_18 = arith.constant 0 : index
    %c0_19 = arith.constant 0 : index
    %61 = vector.load %arg4[%c0_18, %c0_19] : memref<128x384xf32, #tpu.memory_space<vmem>>, vector<128x384xf32>
    %cst_20 = arith.constant dense<0.000000e+00> : vector<8x384xf32>
    %62 = tpu.matmul %56, %61, %cst_20 {dimension_numbers = #tpu.dot_dimension_numbers<[1], [0], [0], [1], [0, 0, 1, 1], [], []>} : vector<8x128xf32>, vector<128x384xf32>, vector<8x384xf32> -> vector<8x384xf32>
    %63 = vector.extract_strided_slice %60 {offsets = [0, 0], sizes = [8, 128], strides = [1, 1]} : vector<8x384xf32> to vector<8x128xf32>
    %64 = vector.extract_strided_slice %62 {offsets = [0, 0], sizes = [8, 128], strides = [1, 1]} : vector<8x384xf32> to vector<8x128xf32>
    %65 = arith.addf %63, %64 : vector<8x128xf32>
    %66 = arith.negf %65 : vector<8x128xf32>
    %67 = math.exp %66 : vector<8x128xf32>
    %cst_21 = arith.constant 1.000000e+00 : f32
    %68 = vector.broadcast %cst_21 : f32 to vector<8x128xf32>
    %69 = arith.addf %68, %67 : vector<8x128xf32>
    %70 = arith.divf %68, %69 : vector<8x128xf32>
    %71 = vector.extract_strided_slice %60 {offsets = [0, 128], sizes = [8, 128], strides = [1, 1]} : vector<8x384xf32> to vector<8x128xf32>
    %72 = vector.extract_strided_slice %62 {offsets = [0, 128], sizes = [8, 128], strides = [1, 1]} : vector<8x384xf32> to vector<8x128xf32>
    %73 = arith.addf %71, %72 : vector<8x128xf32>
    %74 = arith.negf %73 : vector<8x128xf32>
    %75 = math.exp %74 : vector<8x128xf32>
    %cst_22 = arith.constant 1.000000e+00 : f32
    %76 = vector.broadcast %cst_22 : f32 to vector<8x128xf32>
    %77 = arith.addf %76, %75 : vector<8x128xf32>
    %78 = arith.divf %76, %77 : vector<8x128xf32>
    %79 = vector.extract_strided_slice %60 {offsets = [0, 256], sizes = [8, 128], strides = [1, 1]} : vector<8x384xf32> to vector<8x128xf32>
    %80 = vector.extract_strided_slice %62 {offsets = [0, 256], sizes = [8, 128], strides = [1, 1]} : vector<8x384xf32> to vector<8x128xf32>
    %c0_23 = arith.constant 0 : index
    %c0_24 = arith.constant 0 : index
    %81 = vector.load %arg5[%c0_23, %c0_24] : memref<1x128xf32, #tpu.memory_space<vmem>>, vector<1x128xf32>
    %82 = vector.broadcast %81 : vector<1x128xf32> to vector<8x128xf32>
    %83 = arith.addf %80, %82 : vector<8x128xf32>
    %84 = arith.mulf %70, %83 : vector<8x128xf32>
    %85 = arith.addf %79, %84 : vector<8x128xf32>
    %86 = math.tanh %85 : vector<8x128xf32>
    %cst_25 = arith.constant 1.000000e+00 : f32
    %87 = vector.broadcast %cst_25 : f32 to vector<8x128xf32>
    %88 = arith.subf %87, %78 : vector<8x128xf32>
    %89 = arith.mulf %88, %86 : vector<8x128xf32>
    %90 = arith.mulf %78, %56 : vector<8x128xf32>
    %91 = arith.addf %89, %90 : vector<8x128xf32>
    %c7_i32 = arith.constant 7 : i32
    %92 = arith.subi %c7_i32, %c0_i32 : i32
    %93 = vector.broadcast %c0_i32 : i32 to vector<8x128xi32>
    %94 = vector.broadcast %92 : i32 to vector<8x128xi32>
    %95 = arith.select %3, %93, %94 : vector<8x128xi1>, vector<8x128xi32>
    %96 = vector.broadcast %0 : vector<8x1xi32> to vector<8x128xi32>
    %97 = arith.cmpi slt, %95, %96 : vector<8x128xi32>
    %98 = arith.select %97, %91, %56 : vector<8x128xi1>, vector<8x128xf32>
    %99 = arith.index_cast %58 : i32 to index
    %c0_26 = arith.constant 0 : index
    %100 = vector.load %arg15[%99, %c0_26] : memref<64x128xf32, #tpu.memory_space<vmem>>, vector<8x128xf32>
    tpu.vector_store %arg15[%99, %c0_26], %98 {strides = array<i32>} : memref<64x128xf32, #tpu.memory_space<vmem>>, vector<8x128xf32>,
    %c1_i32 = arith.constant 1 : i32
    %c8_i32_27 = arith.constant 8 : i32
    %101 = arith.muli %c1_i32, %c8_i32_27 : i32
    %102 = tpu.assume_multiple %101, 8 : i32
    %103 = arith.index_cast %102 : i32 to index
    %c0_28 = arith.constant 0 : index
    %104 = vector.load %arg14[%103, %c0_28] : memref<64x384xf32, #tpu.memory_space<vmem>>, vector<8x384xf32>
    %c0_29 = arith.constant 0 : index
    %c0_30 = arith.constant 0 : index
    %105 = vector.load %arg4[%c0_29, %c0_30] : memref<128x384xf32, #tpu.memory_space<vmem>>, vector<128x384xf32>
    %cst_31 = arith.constant dense<0.000000e+00> : vector<8x384xf32>
    %106 = tpu.matmul %98, %105, %cst_31 {dimension_numbers = #tpu.dot_dimension_numbers<[1], [0], [0], [1], [0, 0, 1, 1], [], []>} : vector<8x128xf32>, vector<128x384xf32>, vector<8x384xf32> -> vector<8x384xf32>
    %107 = vector.extract_strided_slice %104 {offsets = [0, 0], sizes = [8, 128], strides = [1, 1]} : vector<8x384xf32> to vector<8x128xf32>
    %108 = vector.extract_strided_slice %106 {offsets = [0, 0], sizes = [8, 128], strides = [1, 1]} : vector<8x384xf32> to vector<8x128xf32>
    %109 = arith.addf %107, %108 : vector<8x128xf32>
    %110 = arith.negf %109 : vector<8x128xf32>
    %111 = math.exp %110 : vector<8x128xf32>
    %cst_32 = arith.constant 1.000000e+00 : f32
    %112 = vector.broadcast %cst_32 : f32 to vector<8x128xf32>
    %113 = arith.addf %112, %111 : vector<8x128xf32>
    %114 = arith.divf %112, %113 : vector<8x128xf32>
    %115 = vector.extract_strided_slice %104 {offsets = [0, 128], sizes = [8, 128], strides = [1, 1]} : vector<8x384xf32> to vector<8x128xf32>
    %116 = vector.extract_strided_slice %106 {offsets = [0, 128], sizes = [8, 128], strides = [1, 1]} : vector<8x384xf32> to vector<8x128xf32>
    %117 = arith.addf %115, %116 : vector<8x128xf32>
    %118 = arith.negf %117 : vector<8x128xf32>
    %119 = math.exp %118 : vector<8x128xf32>
    %cst_33 = arith.constant 1.000000e+00 : f32
    %120 = vector.broadcast %cst_33 : f32 to vector<8x128xf32>
    %121 = arith.addf %120, %119 : vector<8x128xf32>
    %122 = arith.divf %120, %121 : vector<8x128xf32>
    %123 = vector.extract_strided_slice %104 {offsets = [0, 256], sizes = [8, 128], strides = [1, 1]} : vector<8x384xf32> to vector<8x128xf32>
    %124 = vector.extract_strided_slice %106 {offsets = [0, 256], sizes = [8, 128], strides = [1, 1]} : vector<8x384xf32> to vector<8x128xf32>
    %c0_34 = arith.constant 0 : index
    %c0_35 = arith.constant 0 : index
    %125 = vector.load %arg5[%c0_34, %c0_35] : memref<1x128xf32, #tpu.memory_space<vmem>>, vector<1x128xf32>
    %126 = vector.broadcast %125 : vector<1x128xf32> to vector<8x128xf32>
    %127 = arith.addf %124, %126 : vector<8x128xf32>
    %128 = arith.mulf %114, %127 : vector<8x128xf32>
    %129 = arith.addf %123, %128 : vector<8x128xf32>
    %130 = math.tanh %129 : vector<8x128xf32>
    %cst_36 = arith.constant 1.000000e+00 : f32
    %131 = vector.broadcast %cst_36 : f32 to vector<8x128xf32>
    %132 = arith.subf %131, %122 : vector<8x128xf32>
    %133 = arith.mulf %132, %130 : vector<8x128xf32>
    %134 = arith.mulf %122, %98 : vector<8x128xf32>
    %135 = arith.addf %133, %134 : vector<8x128xf32>
    %c7_i32_37 = arith.constant 7 : i32
    %136 = arith.subi %c7_i32_37, %c1_i32 : i32
    %137 = vector.broadcast %c1_i32 : i32 to vector<8x128xi32>
    %138 = vector.broadcast %136 : i32 to vector<8x128xi32>
    %139 = arith.select %3, %137, %138 : vector<8x128xi1>, vector<8x128xi32>
    %140 = vector.broadcast %0 : vector<8x1xi32> to vector<8x128xi32>
    %141 = arith.cmpi slt, %139, %140 : vector<8x128xi32>
    %142 = arith.select %141, %135, %98 : vector<8x128xi1>, vector<8x128xf32>
    %143 = arith.index_cast %102 : i32 to index
    %c0_38 = arith.constant 0 : index
    %144 = vector.load %arg15[%143, %c0_38] : memref<64x128xf32, #tpu.memory_space<vmem>>, vector<8x128xf32>
    tpu.vector_store %arg15[%143, %c0_38], %142 {strides = array<i32>} : memref<64x128xf32, #tpu.memory_space<vmem>>, vector<8x128xf32>,
    %c2_i32 = arith.constant 2 : i32
    %c8_i32_39 = arith.constant 8 : i32
    %145 = arith.muli %c2_i32, %c8_i32_39 : i32
    %146 = tpu.assume_multiple %145, 8 : i32
    %147 = arith.index_cast %146 : i32 to index
    %c0_40 = arith.constant 0 : index
    %148 = vector.load %arg14[%147, %c0_40] : memref<64x384xf32, #tpu.memory_space<vmem>>, vector<8x384xf32>
    %c0_41 = arith.constant 0 : index
    %c0_42 = arith.constant 0 : index
    %149 = vector.load %arg4[%c0_41, %c0_42] : memref<128x384xf32, #tpu.memory_space<vmem>>, vector<128x384xf32>
    %cst_43 = arith.constant dense<0.000000e+00> : vector<8x384xf32>
    %150 = tpu.matmul %142, %149, %cst_43 {dimension_numbers = #tpu.dot_dimension_numbers<[1], [0], [0], [1], [0, 0, 1, 1], [], []>} : vector<8x128xf32>, vector<128x384xf32>, vector<8x384xf32> -> vector<8x384xf32>
    %151 = vector.extract_strided_slice %148 {offsets = [0, 0], sizes = [8, 128], strides = [1, 1]} : vector<8x384xf32> to vector<8x128xf32>
    %152 = vector.extract_strided_slice %150 {offsets = [0, 0], sizes = [8, 128], strides = [1, 1]} : vector<8x384xf32> to vector<8x128xf32>
    %153 = arith.addf %151, %152 : vector<8x128xf32>
    %154 = arith.negf %153 : vector<8x128xf32>
    %155 = math.exp %154 : vector<8x128xf32>
    %cst_44 = arith.constant 1.000000e+00 : f32
    %156 = vector.broadcast %cst_44 : f32 to vector<8x128xf32>
    %157 = arith.addf %156, %155 : vector<8x128xf32>
    %158 = arith.divf %156, %157 : vector<8x128xf32>
    %159 = vector.extract_strided_slice %148 {offsets = [0, 128], sizes = [8, 128], strides = [1, 1]} : vector<8x384xf32> to vector<8x128xf32>
    %160 = vector.extract_strided_slice %150 {offsets = [0, 128], sizes = [8, 128], strides = [1, 1]} : vector<8x384xf32> to vector<8x128xf32>
    %161 = arith.addf %159, %160 : vector<8x128xf32>
    %162 = arith.negf %161 : vector<8x128xf32>
    %163 = math.exp %162 : vector<8x128xf32>
    %cst_45 = arith.constant 1.000000e+00 : f32
    %164 = vector.broadcast %cst_45 : f32 to vector<8x128xf32>
    %165 = arith.addf %164, %163 : vector<8x128xf32>
    %166 = arith.divf %164, %165 : vector<8x128xf32>
    %167 = vector.extract_strided_slice %148 {offsets = [0, 256], sizes = [8, 128], strides = [1, 1]} : vector<8x384xf32> to vector<8x128xf32>
    %168 = vector.extract_strided_slice %150 {offsets = [0, 256], sizes = [8, 128], strides = [1, 1]} : vector<8x384xf32> to vector<8x128xf32>
    %c0_46 = arith.constant 0 : index
    %c0_47 = arith.constant 0 : index
    %169 = vector.load %arg5[%c0_46, %c0_47] : memref<1x128xf32, #tpu.memory_space<vmem>>, vector<1x128xf32>
    %170 = vector.broadcast %169 : vector<1x128xf32> to vector<8x128xf32>
    %171 = arith.addf %168, %170 : vector<8x128xf32>
    %172 = arith.mulf %158, %171 : vector<8x128xf32>
    %173 = arith.addf %167, %172 : vector<8x128xf32>
    %174 = math.tanh %173 : vector<8x128xf32>
    %cst_48 = arith.constant 1.000000e+00 : f32
    %175 = vector.broadcast %cst_48 : f32 to vector<8x128xf32>
    %176 = arith.subf %175, %166 : vector<8x128xf32>
    %177 = arith.mulf %176, %174 : vector<8x128xf32>
    %178 = arith.mulf %166, %142 : vector<8x128xf32>
    %179 = arith.addf %177, %178 : vector<8x128xf32>
    %c7_i32_49 = arith.constant 7 : i32
    %180 = arith.subi %c7_i32_49, %c2_i32 : i32
    %181 = vector.broadcast %c2_i32 : i32 to vector<8x128xi32>
    %182 = vector.broadcast %180 : i32 to vector<8x128xi32>
    %183 = arith.select %3, %181, %182 : vector<8x128xi1>, vector<8x128xi32>
    %184 = vector.broadcast %0 : vector<8x1xi32> to vector<8x128xi32>
    %185 = arith.cmpi slt, %183, %184 : vector<8x128xi32>
    %186 = arith.select %185, %179, %142 : vector<8x128xi1>, vector<8x128xf32>
    %187 = arith.index_cast %146 : i32 to index
    %c0_50 = arith.constant 0 : index
    %188 = vector.load %arg15[%187, %c0_50] : memref<64x128xf32, #tpu.memory_space<vmem>>, vector<8x128xf32>
    tpu.vector_store %arg15[%187, %c0_50], %186 {strides = array<i32>} : memref<64x128xf32, #tpu.memory_space<vmem>>, vector<8x128xf32>,
    %c3_i32 = arith.constant 3 : i32
    %c8_i32_51 = arith.constant 8 : i32
    %189 = arith.muli %c3_i32, %c8_i32_51 : i32
    %190 = tpu.assume_multiple %189, 8 : i32
    %191 = arith.index_cast %190 : i32 to index
    %c0_52 = arith.constant 0 : index
    %192 = vector.load %arg14[%191, %c0_52] : memref<64x384xf32, #tpu.memory_space<vmem>>, vector<8x384xf32>
    %c0_53 = arith.constant 0 : index
    %c0_54 = arith.constant 0 : index
    %193 = vector.load %arg4[%c0_53, %c0_54] : memref<128x384xf32, #tpu.memory_space<vmem>>, vector<128x384xf32>
    %cst_55 = arith.constant dense<0.000000e+00> : vector<8x384xf32>
    %194 = tpu.matmul %186, %193, %cst_55 {dimension_numbers = #tpu.dot_dimension_numbers<[1], [0], [0], [1], [0, 0, 1, 1], [], []>} : vector<8x128xf32>, vector<128x384xf32>, vector<8x384xf32> -> vector<8x384xf32>
    %195 = vector.extract_strided_slice %192 {offsets = [0, 0], sizes = [8, 128], strides = [1, 1]} : vector<8x384xf32> to vector<8x128xf32>
    %196 = vector.extract_strided_slice %194 {offsets = [0, 0], sizes = [8, 128], strides = [1, 1]} : vector<8x384xf32> to vector<8x128xf32>
    %197 = arith.addf %195, %196 : vector<8x128xf32>
    %198 = arith.negf %197 : vector<8x128xf32>
    %199 = math.exp %198 : vector<8x128xf32>
    %cst_56 = arith.constant 1.000000e+00 : f32
    %200 = vector.broadcast %cst_56 : f32 to vector<8x128xf32>
    %201 = arith.addf %200, %199 : vector<8x128xf32>
    %202 = arith.divf %200, %201 : vector<8x128xf32>
    %203 = vector.extract_strided_slice %192 {offsets = [0, 128], sizes = [8, 128], strides = [1, 1]} : vector<8x384xf32> to vector<8x128xf32>
    %204 = vector.extract_strided_slice %194 {offsets = [0, 128], sizes = [8, 128], strides = [1, 1]} : vector<8x384xf32> to vector<8x128xf32>
    %205 = arith.addf %203, %204 : vector<8x128xf32>
    %206 = arith.negf %205 : vector<8x128xf32>
    %207 = math.exp %206 : vector<8x128xf32>
    %cst_57 = arith.constant 1.000000e+00 : f32
    %208 = vector.broadcast %cst_57 : f32 to vector<8x128xf32>
    %209 = arith.addf %208, %207 : vector<8x128xf32>
    %210 = arith.divf %208, %209 : vector<8x128xf32>
    %211 = vector.extract_strided_slice %192 {offsets = [0, 256], sizes = [8, 128], strides = [1, 1]} : vector<8x384xf32> to vector<8x128xf32>
    %212 = vector.extract_strided_slice %194 {offsets = [0, 256], sizes = [8, 128], strides = [1, 1]} : vector<8x384xf32> to vector<8x128xf32>
    %c0_58 = arith.constant 0 : index
    %c0_59 = arith.constant 0 : index
    %213 = vector.load %arg5[%c0_58, %c0_59] : memref<1x128xf32, #tpu.memory_space<vmem>>, vector<1x128xf32>
    %214 = vector.broadcast %213 : vector<1x128xf32> to vector<8x128xf32>
    %215 = arith.addf %212, %214 : vector<8x128xf32>
    %216 = arith.mulf %202, %215 : vector<8x128xf32>
    %217 = arith.addf %211, %216 : vector<8x128xf32>
    %218 = math.tanh %217 : vector<8x128xf32>
    %cst_60 = arith.constant 1.000000e+00 : f32
    %219 = vector.broadcast %cst_60 : f32 to vector<8x128xf32>
    %220 = arith.subf %219, %210 : vector<8x128xf32>
    %221 = arith.mulf %220, %218 : vector<8x128xf32>
    %222 = arith.mulf %210, %186 : vector<8x128xf32>
    %223 = arith.addf %221, %222 : vector<8x128xf32>
    %c7_i32_61 = arith.constant 7 : i32
    %224 = arith.subi %c7_i32_61, %c3_i32 : i32
    %225 = vector.broadcast %c3_i32 : i32 to vector<8x128xi32>
    %226 = vector.broadcast %224 : i32 to vector<8x128xi32>
    %227 = arith.select %3, %225, %226 : vector<8x128xi1>, vector<8x128xi32>
    %228 = vector.broadcast %0 : vector<8x1xi32> to vector<8x128xi32>
    %229 = arith.cmpi slt, %227, %228 : vector<8x128xi32>
    %230 = arith.select %229, %223, %186 : vector<8x128xi1>, vector<8x128xf32>
    %231 = arith.index_cast %190 : i32 to index
    %c0_62 = arith.constant 0 : index
    %232 = vector.load %arg15[%231, %c0_62] : memref<64x128xf32, #tpu.memory_space<vmem>>, vector<8x128xf32>
    tpu.vector_store %arg15[%231, %c0_62], %230 {strides = array<i32>} : memref<64x128xf32, #tpu.memory_space<vmem>>, vector<8x128xf32>,
    %c4_i32 = arith.constant 4 : i32
    %c8_i32_63 = arith.constant 8 : i32
    %233 = arith.muli %c4_i32, %c8_i32_63 : i32
    %234 = tpu.assume_multiple %233, 8 : i32
    %235 = arith.index_cast %234 : i32 to index
    %c0_64 = arith.constant 0 : index
    %236 = vector.load %arg14[%235, %c0_64] : memref<64x384xf32, #tpu.memory_space<vmem>>, vector<8x384xf32>
    %c0_65 = arith.constant 0 : index
    %c0_66 = arith.constant 0 : index
    %237 = vector.load %arg4[%c0_65, %c0_66] : memref<128x384xf32, #tpu.memory_space<vmem>>, vector<128x384xf32>
    %cst_67 = arith.constant dense<0.000000e+00> : vector<8x384xf32>
    %238 = tpu.matmul %230, %237, %cst_67 {dimension_numbers = #tpu.dot_dimension_numbers<[1], [0], [0], [1], [0, 0, 1, 1], [], []>} : vector<8x128xf32>, vector<128x384xf32>, vector<8x384xf32> -> vector<8x384xf32>
    %239 = vector.extract_strided_slice %236 {offsets = [0, 0], sizes = [8, 128], strides = [1, 1]} : vector<8x384xf32> to vector<8x128xf32>
    %240 = vector.extract_strided_slice %238 {offsets = [0, 0], sizes = [8, 128], strides = [1, 1]} : vector<8x384xf32> to vector<8x128xf32>
    %241 = arith.addf %239, %240 : vector<8x128xf32>
    %242 = arith.negf %241 : vector<8x128xf32>
    %243 = math.exp %242 : vector<8x128xf32>
    %cst_68 = arith.constant 1.000000e+00 : f32
    %244 = vector.broadcast %cst_68 : f32 to vector<8x128xf32>
    %245 = arith.addf %244, %243 : vector<8x128xf32>
    %246 = arith.divf %244, %245 : vector<8x128xf32>
    %247 = vector.extract_strided_slice %236 {offsets = [0, 128], sizes = [8, 128], strides = [1, 1]} : vector<8x384xf32> to vector<8x128xf32>
    %248 = vector.extract_strided_slice %238 {offsets = [0, 128], sizes = [8, 128], strides = [1, 1]} : vector<8x384xf32> to vector<8x128xf32>
    %249 = arith.addf %247, %248 : vector<8x128xf32>
    %250 = arith.negf %249 : vector<8x128xf32>
    %251 = math.exp %250 : vector<8x128xf32>
    %cst_69 = arith.constant 1.000000e+00 : f32
    %252 = vector.broadcast %cst_69 : f32 to vector<8x128xf32>
    %253 = arith.addf %252, %251 : vector<8x128xf32>
    %254 = arith.divf %252, %253 : vector<8x128xf32>
    %255 = vector.extract_strided_slice %236 {offsets = [0, 256], sizes = [8, 128], strides = [1, 1]} : vector<8x384xf32> to vector<8x128xf32>
    %256 = vector.extract_strided_slice %238 {offsets = [0, 256], sizes = [8, 128], strides = [1, 1]} : vector<8x384xf32> to vector<8x128xf32>
    %c0_70 = arith.constant 0 : index
    %c0_71 = arith.constant 0 : index
    %257 = vector.load %arg5[%c0_70, %c0_71] : memref<1x128xf32, #tpu.memory_space<vmem>>, vector<1x128xf32>
    %258 = vector.broadcast %257 : vector<1x128xf32> to vector<8x128xf32>
    %259 = arith.addf %256, %258 : vector<8x128xf32>
    %260 = arith.mulf %246, %259 : vector<8x128xf32>
    %261 = arith.addf %255, %260 : vector<8x128xf32>
    %262 = math.tanh %261 : vector<8x128xf32>
    %cst_72 = arith.constant 1.000000e+00 : f32
    %263 = vector.broadcast %cst_72 : f32 to vector<8x128xf32>
    %264 = arith.subf %263, %254 : vector<8x128xf32>
    %265 = arith.mulf %264, %262 : vector<8x128xf32>
    %266 = arith.mulf %254, %230 : vector<8x128xf32>
    %267 = arith.addf %265, %266 : vector<8x128xf32>
    %c7_i32_73 = arith.constant 7 : i32
    %268 = arith.subi %c7_i32_73, %c4_i32 : i32
    %269 = vector.broadcast %c4_i32 : i32 to vector<8x128xi32>
    %270 = vector.broadcast %268 : i32 to vector<8x128xi32>
    %271 = arith.select %3, %269, %270 : vector<8x128xi1>, vector<8x128xi32>
    %272 = vector.broadcast %0 : vector<8x1xi32> to vector<8x128xi32>
    %273 = arith.cmpi slt, %271, %272 : vector<8x128xi32>
    %274 = arith.select %273, %267, %230 : vector<8x128xi1>, vector<8x128xf32>
    %275 = arith.index_cast %234 : i32 to index
    %c0_74 = arith.constant 0 : index
    %276 = vector.load %arg15[%275, %c0_74] : memref<64x128xf32, #tpu.memory_space<vmem>>, vector<8x128xf32>
    tpu.vector_store %arg15[%275, %c0_74], %274 {strides = array<i32>} : memref<64x128xf32, #tpu.memory_space<vmem>>, vector<8x128xf32>,
    %c5_i32 = arith.constant 5 : i32
    %c8_i32_75 = arith.constant 8 : i32
    %277 = arith.muli %c5_i32, %c8_i32_75 : i32
    %278 = tpu.assume_multiple %277, 8 : i32
    %279 = arith.index_cast %278 : i32 to index
    %c0_76 = arith.constant 0 : index
    %280 = vector.load %arg14[%279, %c0_76] : memref<64x384xf32, #tpu.memory_space<vmem>>, vector<8x384xf32>
    %c0_77 = arith.constant 0 : index
    %c0_78 = arith.constant 0 : index
    %281 = vector.load %arg4[%c0_77, %c0_78] : memref<128x384xf32, #tpu.memory_space<vmem>>, vector<128x384xf32>
    %cst_79 = arith.constant dense<0.000000e+00> : vector<8x384xf32>
    %282 = tpu.matmul %274, %281, %cst_79 {dimension_numbers = #tpu.dot_dimension_numbers<[1], [0], [0], [1], [0, 0, 1, 1], [], []>} : vector<8x128xf32>, vector<128x384xf32>, vector<8x384xf32> -> vector<8x384xf32>
    %283 = vector.extract_strided_slice %280 {offsets = [0, 0], sizes = [8, 128], strides = [1, 1]} : vector<8x384xf32> to vector<8x128xf32>
    %284 = vector.extract_strided_slice %282 {offsets = [0, 0], sizes = [8, 128], strides = [1, 1]} : vector<8x384xf32> to vector<8x128xf32>
    %285 = arith.addf %283, %284 : vector<8x128xf32>
    %286 = arith.negf %285 : vector<8x128xf32>
    %287 = math.exp %286 : vector<8x128xf32>
    %cst_80 = arith.constant 1.000000e+00 : f32
    %288 = vector.broadcast %cst_80 : f32 to vector<8x128xf32>
    %289 = arith.addf %288, %287 : vector<8x128xf32>
    %290 = arith.divf %288, %289 : vector<8x128xf32>
    %291 = vector.extract_strided_slice %280 {offsets = [0, 128], sizes = [8, 128], strides = [1, 1]} : vector<8x384xf32> to vector<8x128xf32>
    %292 = vector.extract_strided_slice %282 {offsets = [0, 128], sizes = [8, 128], strides = [1, 1]} : vector<8x384xf32> to vector<8x128xf32>
    %293 = arith.addf %291, %292 : vector<8x128xf32>
    %294 = arith.negf %293 : vector<8x128xf32>
    %295 = math.exp %294 : vector<8x128xf32>
    %cst_81 = arith.constant 1.000000e+00 : f32
    %296 = vector.broadcast %cst_81 : f32 to vector<8x128xf32>
    %297 = arith.addf %296, %295 : vector<8x128xf32>
    %298 = arith.divf %296, %297 : vector<8x128xf32>
    %299 = vector.extract_strided_slice %280 {offsets = [0, 256], sizes = [8, 128], strides = [1, 1]} : vector<8x384xf32> to vector<8x128xf32>
    %300 = vector.extract_strided_slice %282 {offsets = [0, 256], sizes = [8, 128], strides = [1, 1]} : vector<8x384xf32> to vector<8x128xf32>
    %c0_82 = arith.constant 0 : index
    %c0_83 = arith.constant 0 : index
    %301 = vector.load %arg5[%c0_82, %c0_83] : memref<1x128xf32, #tpu.memory_space<vmem>>, vector<1x128xf32>
    %302 = vector.broadcast %301 : vector<1x128xf32> to vector<8x128xf32>
    %303 = arith.addf %300, %302 : vector<8x128xf32>
    %304 = arith.mulf %290, %303 : vector<8x128xf32>
    %305 = arith.addf %299, %304 : vector<8x128xf32>
    %306 = math.tanh %305 : vector<8x128xf32>
    %cst_84 = arith.constant 1.000000e+00 : f32
    %307 = vector.broadcast %cst_84 : f32 to vector<8x128xf32>
    %308 = arith.subf %307, %298 : vector<8x128xf32>
    %309 = arith.mulf %308, %306 : vector<8x128xf32>
    %310 = arith.mulf %298, %274 : vector<8x128xf32>
    %311 = arith.addf %309, %310 : vector<8x128xf32>
    %c7_i32_85 = arith.constant 7 : i32
    %312 = arith.subi %c7_i32_85, %c5_i32 : i32
    %313 = vector.broadcast %c5_i32 : i32 to vector<8x128xi32>
    %314 = vector.broadcast %312 : i32 to vector<8x128xi32>
    %315 = arith.select %3, %313, %314 : vector<8x128xi1>, vector<8x128xi32>
    %316 = vector.broadcast %0 : vector<8x1xi32> to vector<8x128xi32>
    %317 = arith.cmpi slt, %315, %316 : vector<8x128xi32>
    %318 = arith.select %317, %311, %274 : vector<8x128xi1>, vector<8x128xf32>
    %319 = arith.index_cast %278 : i32 to index
    %c0_86 = arith.constant 0 : index
    %320 = vector.load %arg15[%319, %c0_86] : memref<64x128xf32, #tpu.memory_space<vmem>>, vector<8x128xf32>
    tpu.vector_store %arg15[%319, %c0_86], %318 {strides = array<i32>} : memref<64x128xf32, #tpu.memory_space<vmem>>, vector<8x128xf32>,
    %c6_i32 = arith.constant 6 : i32
    %c8_i32_87 = arith.constant 8 : i32
    %321 = arith.muli %c6_i32, %c8_i32_87 : i32
    %322 = tpu.assume_multiple %321, 8 : i32
    %323 = arith.index_cast %322 : i32 to index
    %c0_88 = arith.constant 0 : index
    %324 = vector.load %arg14[%323, %c0_88] : memref<64x384xf32, #tpu.memory_space<vmem>>, vector<8x384xf32>
    %c0_89 = arith.constant 0 : index
    %c0_90 = arith.constant 0 : index
    %325 = vector.load %arg4[%c0_89, %c0_90] : memref<128x384xf32, #tpu.memory_space<vmem>>, vector<128x384xf32>
    %cst_91 = arith.constant dense<0.000000e+00> : vector<8x384xf32>
    %326 = tpu.matmul %318, %325, %cst_91 {dimension_numbers = #tpu.dot_dimension_numbers<[1], [0], [0], [1], [0, 0, 1, 1], [], []>} : vector<8x128xf32>, vector<128x384xf32>, vector<8x384xf32> -> vector<8x384xf32>
    %327 = vector.extract_strided_slice %324 {offsets = [0, 0], sizes = [8, 128], strides = [1, 1]} : vector<8x384xf32> to vector<8x128xf32>
    %328 = vector.extract_strided_slice %326 {offsets = [0, 0], sizes = [8, 128], strides = [1, 1]} : vector<8x384xf32> to vector<8x128xf32>
    %329 = arith.addf %327, %328 : vector<8x128xf32>
    %330 = arith.negf %329 : vector<8x128xf32>
    %331 = math.exp %330 : vector<8x128xf32>
    %cst_92 = arith.constant 1.000000e+00 : f32
    %332 = vector.broadcast %cst_92 : f32 to vector<8x128xf32>
    %333 = arith.addf %332, %331 : vector<8x128xf32>
    %334 = arith.divf %332, %333 : vector<8x128xf32>
    %335 = vector.extract_strided_slice %324 {offsets = [0, 128], sizes = [8, 128], strides = [1, 1]} : vector<8x384xf32> to vector<8x128xf32>
    %336 = vector.extract_strided_slice %326 {offsets = [0, 128], sizes = [8, 128], strides = [1, 1]} : vector<8x384xf32> to vector<8x128xf32>
    %337 = arith.addf %335, %336 : vector<8x128xf32>
    %338 = arith.negf %337 : vector<8x128xf32>
    %339 = math.exp %338 : vector<8x128xf32>
    %cst_93 = arith.constant 1.000000e+00 : f32
    %340 = vector.broadcast %cst_93 : f32 to vector<8x128xf32>
    %341 = arith.addf %340, %339 : vector<8x128xf32>
    %342 = arith.divf %340, %341 : vector<8x128xf32>
    %343 = vector.extract_strided_slice %324 {offsets = [0, 256], sizes = [8, 128], strides = [1, 1]} : vector<8x384xf32> to vector<8x128xf32>
    %344 = vector.extract_strided_slice %326 {offsets = [0, 256], sizes = [8, 128], strides = [1, 1]} : vector<8x384xf32> to vector<8x128xf32>
    %c0_94 = arith.constant 0 : index
    %c0_95 = arith.constant 0 : index
    %345 = vector.load %arg5[%c0_94, %c0_95] : memref<1x128xf32, #tpu.memory_space<vmem>>, vector<1x128xf32>
    %346 = vector.broadcast %345 : vector<1x128xf32> to vector<8x128xf32>
    %347 = arith.addf %344, %346 : vector<8x128xf32>
    %348 = arith.mulf %334, %347 : vector<8x128xf32>
    %349 = arith.addf %343, %348 : vector<8x128xf32>
    %350 = math.tanh %349 : vector<8x128xf32>
    %cst_96 = arith.constant 1.000000e+00 : f32
    %351 = vector.broadcast %cst_96 : f32 to vector<8x128xf32>
    %352 = arith.subf %351, %342 : vector<8x128xf32>
    %353 = arith.mulf %352, %350 : vector<8x128xf32>
    %354 = arith.mulf %342, %318 : vector<8x128xf32>
    %355 = arith.addf %353, %354 : vector<8x128xf32>
    %c7_i32_97 = arith.constant 7 : i32
    %356 = arith.subi %c7_i32_97, %c6_i32 : i32
    %357 = vector.broadcast %c6_i32 : i32 to vector<8x128xi32>
    %358 = vector.broadcast %356 : i32 to vector<8x128xi32>
    %359 = arith.select %3, %357, %358 : vector<8x128xi1>, vector<8x128xi32>
    %360 = vector.broadcast %0 : vector<8x1xi32> to vector<8x128xi32>
    %361 = arith.cmpi slt, %359, %360 : vector<8x128xi32>
    %362 = arith.select %361, %355, %318 : vector<8x128xi1>, vector<8x128xf32>
    %363 = arith.index_cast %322 : i32 to index
    %c0_98 = arith.constant 0 : index
    %364 = vector.load %arg15[%363, %c0_98] : memref<64x128xf32, #tpu.memory_space<vmem>>, vector<8x128xf32>
    tpu.vector_store %arg15[%363, %c0_98], %362 {strides = array<i32>} : memref<64x128xf32, #tpu.memory_space<vmem>>, vector<8x128xf32>,
    %c7_i32_99 = arith.constant 7 : i32
    %c8_i32_100 = arith.constant 8 : i32
    %365 = arith.muli %c7_i32_99, %c8_i32_100 : i32
    %366 = tpu.assume_multiple %365, 8 : i32
    %367 = arith.index_cast %366 : i32 to index
    %c0_101 = arith.constant 0 : index
    %368 = vector.load %arg14[%367, %c0_101] : memref<64x384xf32, #tpu.memory_space<vmem>>, vector<8x384xf32>
    %c0_102 = arith.constant 0 : index
    %c0_103 = arith.constant 0 : index
    %369 = vector.load %arg4[%c0_102, %c0_103] : memref<128x384xf32, #tpu.memory_space<vmem>>, vector<128x384xf32>
    %cst_104 = arith.constant dense<0.000000e+00> : vector<8x384xf32>
    %370 = tpu.matmul %362, %369, %cst_104 {dimension_numbers = #tpu.dot_dimension_numbers<[1], [0], [0], [1], [0, 0, 1, 1], [], []>} : vector<8x128xf32>, vector<128x384xf32>, vector<8x384xf32> -> vector<8x384xf32>
    %371 = vector.extract_strided_slice %368 {offsets = [0, 0], sizes = [8, 128], strides = [1, 1]} : vector<8x384xf32> to vector<8x128xf32>
    %372 = vector.extract_strided_slice %370 {offsets = [0, 0], sizes = [8, 128], strides = [1, 1]} : vector<8x384xf32> to vector<8x128xf32>
    %373 = arith.addf %371, %372 : vector<8x128xf32>
    %374 = arith.negf %373 : vector<8x128xf32>
    %375 = math.exp %374 : vector<8x128xf32>
    %cst_105 = arith.constant 1.000000e+00 : f32
    %376 = vector.broadcast %cst_105 : f32 to vector<8x128xf32>
    %377 = arith.addf %376, %375 : vector<8x128xf32>
    %378 = arith.divf %376, %377 : vector<8x128xf32>
    %379 = vector.extract_strided_slice %368 {offsets = [0, 128], sizes = [8, 128], strides = [1, 1]} : vector<8x384xf32> to vector<8x128xf32>
    %380 = vector.extract_strided_slice %370 {offsets = [0, 128], sizes = [8, 128], strides = [1, 1]} : vector<8x384xf32> to vector<8x128xf32>
    %381 = arith.addf %379, %380 : vector<8x128xf32>
    %382 = arith.negf %381 : vector<8x128xf32>
    %383 = math.exp %382 : vector<8x128xf32>
    %cst_106 = arith.constant 1.000000e+00 : f32
    %384 = vector.broadcast %cst_106 : f32 to vector<8x128xf32>
    %385 = arith.addf %384, %383 : vector<8x128xf32>
    %386 = arith.divf %384, %385 : vector<8x128xf32>
    %387 = vector.extract_strided_slice %368 {offsets = [0, 256], sizes = [8, 128], strides = [1, 1]} : vector<8x384xf32> to vector<8x128xf32>
    %388 = vector.extract_strided_slice %370 {offsets = [0, 256], sizes = [8, 128], strides = [1, 1]} : vector<8x384xf32> to vector<8x128xf32>
    %c0_107 = arith.constant 0 : index
    %c0_108 = arith.constant 0 : index
    %389 = vector.load %arg5[%c0_107, %c0_108] : memref<1x128xf32, #tpu.memory_space<vmem>>, vector<1x128xf32>
    %390 = vector.broadcast %389 : vector<1x128xf32> to vector<8x128xf32>
    %391 = arith.addf %388, %390 : vector<8x128xf32>
    %392 = arith.mulf %378, %391 : vector<8x128xf32>
    %393 = arith.addf %387, %392 : vector<8x128xf32>
    %394 = math.tanh %393 : vector<8x128xf32>
    %cst_109 = arith.constant 1.000000e+00 : f32
    %395 = vector.broadcast %cst_109 : f32 to vector<8x128xf32>
    %396 = arith.subf %395, %386 : vector<8x128xf32>
    %397 = arith.mulf %396, %394 : vector<8x128xf32>
    %398 = arith.mulf %386, %362 : vector<8x128xf32>
    %399 = arith.addf %397, %398 : vector<8x128xf32>
    %c7_i32_110 = arith.constant 7 : i32
    %400 = arith.subi %c7_i32_110, %c7_i32_99 : i32
    %401 = vector.broadcast %c7_i32_99 : i32 to vector<8x128xi32>
    %402 = vector.broadcast %400 : i32 to vector<8x128xi32>
    %403 = arith.select %3, %401, %402 : vector<8x128xi1>, vector<8x128xi32>
    %404 = vector.broadcast %0 : vector<8x1xi32> to vector<8x128xi32>
    %405 = arith.cmpi slt, %403, %404 : vector<8x128xi32>
    %406 = arith.select %405, %399, %362 : vector<8x128xi1>, vector<8x128xf32>
    %407 = arith.index_cast %366 : i32 to index
    %c0_111 = arith.constant 0 : index
    %408 = vector.load %arg15[%407, %c0_111] : memref<64x128xf32, #tpu.memory_space<vmem>>, vector<8x128xf32>
    tpu.vector_store %arg15[%407, %c0_111], %406 {strides = array<i32>} : memref<64x128xf32, #tpu.memory_space<vmem>>, vector<8x128xf32>,
    %c8_i32_112 = arith.constant 8 : i32
    %c0_113 = arith.constant 0 : index
    %c0_114 = arith.constant 0 : index
    %409 = vector.load %arg15[%c0_113, %c0_114] : memref<64x128xf32, #tpu.memory_space<vmem>>, vector<64x128xf32>
    %c0_115 = arith.constant 0 : index
    %c0_116 = arith.constant 0 : index
    %410 = vector.load %arg6[%c0_115, %c0_116] : memref<128x768xf32, #tpu.memory_space<vmem>>, vector<128x768xf32>
    %cst_117 = arith.constant dense<0.000000e+00> : vector<64x768xf32>
    %411 = tpu.matmul %409, %410, %cst_117 {dimension_numbers = #tpu.dot_dimension_numbers<[1], [0], [0], [1], [0, 0, 1, 1], [], []>} : vector<64x128xf32>, vector<128x768xf32>, vector<64x768xf32> -> vector<64x768xf32>
    %c0_118 = arith.constant 0 : index
    %c0_119 = arith.constant 0 : index
    %412 = vector.load %arg7[%c0_118, %c0_119] : memref<1x384xf32, #tpu.memory_space<vmem>>, vector<1x384xf32>
    %413 = vector.extract_strided_slice %411 {offsets = [0, 0], sizes = [8, 384], strides = [1, 1]} : vector<64x768xf32> to vector<8x384xf32>
    %414 = vector.extract_strided_slice %411 {offsets = [56, 384], sizes = [8, 384], strides = [1, 1]} : vector<64x768xf32> to vector<8x384xf32>
    %415 = arith.addf %413, %414 : vector<8x384xf32>
    %416 = vector.broadcast %412 : vector<1x384xf32> to vector<8x384xf32>
    %417 = arith.addf %415, %416 : vector<8x384xf32>
    %c0_120 = arith.constant 0 : index
    %c0_121 = arith.constant 0 : index
    %418 = vector.load %arg14[%c0_120, %c0_121] : memref<64x384xf32, #tpu.memory_space<vmem>>, vector<8x384xf32>
    tpu.vector_store %arg14[%c0_120, %c0_121], %417 {strides = array<i32>} : memref<64x384xf32, #tpu.memory_space<vmem>>, vector<8x384xf32>,
    %419 = vector.extract_strided_slice %411 {offsets = [8, 0], sizes = [8, 384], strides = [1, 1]} : vector<64x768xf32> to vector<8x384xf32>
    %420 = vector.extract_strided_slice %411 {offsets = [48, 384], sizes = [8, 384], strides = [1, 1]} : vector<64x768xf32> to vector<8x384xf32>
    %421 = arith.addf %419, %420 : vector<8x384xf32>
    %422 = vector.broadcast %412 : vector<1x384xf32> to vector<8x384xf32>
    %423 = arith.addf %421, %422 : vector<8x384xf32>
    %c8_122 = arith.constant 8 : index
    %c0_123 = arith.constant 0 : index
    %424 = vector.load %arg14[%c8_122, %c0_123] : memref<64x384xf32, #tpu.memory_space<vmem>>, vector<8x384xf32>
    tpu.vector_store %arg14[%c8_122, %c0_123], %423 {strides = array<i32>} : memref<64x384xf32, #tpu.memory_space<vmem>>, vector<8x384xf32>,
    %425 = vector.extract_strided_slice %411 {offsets = [16, 0], sizes = [8, 384], strides = [1, 1]} : vector<64x768xf32> to vector<8x384xf32>
    %426 = vector.extract_strided_slice %411 {offsets = [40, 384], sizes = [8, 384], strides = [1, 1]} : vector<64x768xf32> to vector<8x384xf32>
    %427 = arith.addf %425, %426 : vector<8x384xf32>
    %428 = vector.broadcast %412 : vector<1x384xf32> to vector<8x384xf32>
    %429 = arith.addf %427, %428 : vector<8x384xf32>
    %c16_124 = arith.constant 16 : index
    %c0_125 = arith.constant 0 : index
    %430 = vector.load %arg14[%c16_124, %c0_125] : memref<64x384xf32, #tpu.memory_space<vmem>>, vector<8x384xf32>
    tpu.vector_store %arg14[%c16_124, %c0_125], %429 {strides = array<i32>} : memref<64x384xf32, #tpu.memory_space<vmem>>, vector<8x384xf32>,
    %431 = vector.extract_strided_slice %411 {offsets = [24, 0], sizes = [8, 384], strides = [1, 1]} : vector<64x768xf32> to vector<8x384xf32>
    %432 = vector.extract_strided_slice %411 {offsets = [32, 384], sizes = [8, 384], strides = [1, 1]} : vector<64x768xf32> to vector<8x384xf32>
    %433 = arith.addf %431, %432 : vector<8x384xf32>
    %434 = vector.broadcast %412 : vector<1x384xf32> to vector<8x384xf32>
    %435 = arith.addf %433, %434 : vector<8x384xf32>
    %c24_126 = arith.constant 24 : index
    %c0_127 = arith.constant 0 : index
    %436 = vector.load %arg14[%c24_126, %c0_127] : memref<64x384xf32, #tpu.memory_space<vmem>>, vector<8x384xf32>
    tpu.vector_store %arg14[%c24_126, %c0_127], %435 {strides = array<i32>} : memref<64x384xf32, #tpu.memory_space<vmem>>, vector<8x384xf32>,
    %437 = vector.extract_strided_slice %411 {offsets = [32, 0], sizes = [8, 384], strides = [1, 1]} : vector<64x768xf32> to vector<8x384xf32>
    %438 = vector.extract_strided_slice %411 {offsets = [24, 384], sizes = [8, 384], strides = [1, 1]} : vector<64x768xf32> to vector<8x384xf32>
    %439 = arith.addf %437, %438 : vector<8x384xf32>
    %440 = vector.broadcast %412 : vector<1x384xf32> to vector<8x384xf32>
    %441 = arith.addf %439, %440 : vector<8x384xf32>
    %c32_128 = arith.constant 32 : index
    %c0_129 = arith.constant 0 : index
    %442 = vector.load %arg14[%c32_128, %c0_129] : memref<64x384xf32, #tpu.memory_space<vmem>>, vector<8x384xf32>
    tpu.vector_store %arg14[%c32_128, %c0_129], %441 {strides = array<i32>} : memref<64x384xf32, #tpu.memory_space<vmem>>, vector<8x384xf32>,
    %443 = vector.extract_strided_slice %411 {offsets = [40, 0], sizes = [8, 384], strides = [1, 1]} : vector<64x768xf32> to vector<8x384xf32>
    %444 = vector.extract_strided_slice %411 {offsets = [16, 384], sizes = [8, 384], strides = [1, 1]} : vector<64x768xf32> to vector<8x384xf32>
    %445 = arith.addf %443, %444 : vector<8x384xf32>
    %446 = vector.broadcast %412 : vector<1x384xf32> to vector<8x384xf32>
    %447 = arith.addf %445, %446 : vector<8x384xf32>
    %c40_130 = arith.constant 40 : index
    %c0_131 = arith.constant 0 : index
    %448 = vector.load %arg14[%c40_130, %c0_131] : memref<64x384xf32, #tpu.memory_space<vmem>>, vector<8x384xf32>
    tpu.vector_store %arg14[%c40_130, %c0_131], %447 {strides = array<i32>} : memref<64x384xf32, #tpu.memory_space<vmem>>, vector<8x384xf32>,
    %449 = vector.extract_strided_slice %411 {offsets = [48, 0], sizes = [8, 384], strides = [1, 1]} : vector<64x768xf32> to vector<8x384xf32>
    %450 = vector.extract_strided_slice %411 {offsets = [8, 384], sizes = [8, 384], strides = [1, 1]} : vector<64x768xf32> to vector<8x384xf32>
    %451 = arith.addf %449, %450 : vector<8x384xf32>
    %452 = vector.broadcast %412 : vector<1x384xf32> to vector<8x384xf32>
    %453 = arith.addf %451, %452 : vector<8x384xf32>
    %c48_132 = arith.constant 48 : index
    %c0_133 = arith.constant 0 : index
    %454 = vector.load %arg14[%c48_132, %c0_133] : memref<64x384xf32, #tpu.memory_space<vmem>>, vector<8x384xf32>
    tpu.vector_store %arg14[%c48_132, %c0_133], %453 {strides = array<i32>} : memref<64x384xf32, #tpu.memory_space<vmem>>, vector<8x384xf32>,
    %455 = vector.extract_strided_slice %411 {offsets = [56, 0], sizes = [8, 384], strides = [1, 1]} : vector<64x768xf32> to vector<8x384xf32>
    %456 = vector.extract_strided_slice %411 {offsets = [0, 384], sizes = [8, 384], strides = [1, 1]} : vector<64x768xf32> to vector<8x384xf32>
    %457 = arith.addf %455, %456 : vector<8x384xf32>
    %458 = vector.broadcast %412 : vector<1x384xf32> to vector<8x384xf32>
    %459 = arith.addf %457, %458 : vector<8x384xf32>
    %c56_134 = arith.constant 56 : index
    %c0_135 = arith.constant 0 : index
    %460 = vector.load %arg14[%c56_134, %c0_135] : memref<64x384xf32, #tpu.memory_space<vmem>>, vector<8x384xf32>
    tpu.vector_store %arg14[%c56_134, %c0_135], %459 {strides = array<i32>} : memref<64x384xf32, #tpu.memory_space<vmem>>, vector<8x384xf32>,
    %cst_136 = arith.constant 0.000000e+00 : f32
    %461 = vector.broadcast %cst_136 : f32 to vector<8x128xf32>
    %c0_i32_137 = arith.constant 0 : i32
    %c8_i32_138 = arith.constant 8 : i32
    %462 = arith.muli %c0_i32_137, %c8_i32_138 : i32
    %463 = tpu.assume_multiple %462, 8 : i32
    %464 = arith.index_cast %463 : i32 to index
    %c0_139 = arith.constant 0 : index
    %465 = vector.load %arg14[%464, %c0_139] : memref<64x384xf32, #tpu.memory_space<vmem>>, vector<8x384xf32>
    %c0_140 = arith.constant 0 : index
    %c0_141 = arith.constant 0 : index
    %466 = vector.load %arg8[%c0_140, %c0_141] : memref<128x384xf32, #tpu.memory_space<vmem>>, vector<128x384xf32>
    %cst_142 = arith.constant dense<0.000000e+00> : vector<8x384xf32>
    %467 = tpu.matmul %461, %466, %cst_142 {dimension_numbers = #tpu.dot_dimension_numbers<[1], [0], [0], [1], [0, 0, 1, 1], [], []>} : vector<8x128xf32>, vector<128x384xf32>, vector<8x384xf32> -> vector<8x384xf32>
    %468 = vector.extract_strided_slice %465 {offsets = [0, 0], sizes = [8, 128], strides = [1, 1]} : vector<8x384xf32> to vector<8x128xf32>
    %469 = vector.extract_strided_slice %467 {offsets = [0, 0], sizes = [8, 128], strides = [1, 1]} : vector<8x384xf32> to vector<8x128xf32>
    %470 = arith.addf %468, %469 : vector<8x128xf32>
    %471 = arith.negf %470 : vector<8x128xf32>
    %472 = math.exp %471 : vector<8x128xf32>
    %cst_143 = arith.constant 1.000000e+00 : f32
    %473 = vector.broadcast %cst_143 : f32 to vector<8x128xf32>
    %474 = arith.addf %473, %472 : vector<8x128xf32>
    %475 = arith.divf %473, %474 : vector<8x128xf32>
    %476 = vector.extract_strided_slice %465 {offsets = [0, 128], sizes = [8, 128], strides = [1, 1]} : vector<8x384xf32> to vector<8x128xf32>
    %477 = vector.extract_strided_slice %467 {offsets = [0, 128], sizes = [8, 128], strides = [1, 1]} : vector<8x384xf32> to vector<8x128xf32>
    %478 = arith.addf %476, %477 : vector<8x128xf32>
    %479 = arith.negf %478 : vector<8x128xf32>
    %480 = math.exp %479 : vector<8x128xf32>
    %cst_144 = arith.constant 1.000000e+00 : f32
    %481 = vector.broadcast %cst_144 : f32 to vector<8x128xf32>
    %482 = arith.addf %481, %480 : vector<8x128xf32>
    %483 = arith.divf %481, %482 : vector<8x128xf32>
    %484 = vector.extract_strided_slice %465 {offsets = [0, 256], sizes = [8, 128], strides = [1, 1]} : vector<8x384xf32> to vector<8x128xf32>
    %485 = vector.extract_strided_slice %467 {offsets = [0, 256], sizes = [8, 128], strides = [1, 1]} : vector<8x384xf32> to vector<8x128xf32>
    %c0_145 = arith.constant 0 : index
    %c0_146 = arith.constant 0 : index
    %486 = vector.load %arg9[%c0_145, %c0_146] : memref<1x128xf32, #tpu.memory_space<vmem>>, vector<1x128xf32>
    %487 = vector.broadcast %486 : vector<1x128xf32> to vector<8x128xf32>
    %488 = arith.addf %485, %487 : vector<8x128xf32>
    %489 = arith.mulf %475, %488 : vector<8x128xf32>
    %490 = arith.addf %484, %489 : vector<8x128xf32>
    %491 = math.tanh %490 : vector<8x128xf32>
    %cst_147 = arith.constant 1.000000e+00 : f32
    %492 = vector.broadcast %cst_147 : f32 to vector<8x128xf32>
    %493 = arith.subf %492, %483 : vector<8x128xf32>
    %494 = arith.mulf %493, %491 : vector<8x128xf32>
    %495 = arith.mulf %483, %461 : vector<8x128xf32>
    %496 = arith.addf %494, %495 : vector<8x128xf32>
    %c7_i32_148 = arith.constant 7 : i32
    %497 = arith.subi %c7_i32_148, %c0_i32_137 : i32
    %498 = vector.broadcast %c0_i32_137 : i32 to vector<8x128xi32>
    %499 = vector.broadcast %497 : i32 to vector<8x128xi32>
    %500 = arith.select %3, %498, %499 : vector<8x128xi1>, vector<8x128xi32>
    %501 = vector.broadcast %0 : vector<8x1xi32> to vector<8x128xi32>
    %502 = arith.cmpi slt, %500, %501 : vector<8x128xi32>
    %503 = arith.select %502, %496, %461 : vector<8x128xi1>, vector<8x128xf32>
    %c1_i32_149 = arith.constant 1 : i32
    %c8_i32_150 = arith.constant 8 : i32
    %504 = arith.muli %c1_i32_149, %c8_i32_150 : i32
    %505 = tpu.assume_multiple %504, 8 : i32
    %506 = arith.index_cast %505 : i32 to index
    %c0_151 = arith.constant 0 : index
    %507 = vector.load %arg14[%506, %c0_151] : memref<64x384xf32, #tpu.memory_space<vmem>>, vector<8x384xf32>
    %c0_152 = arith.constant 0 : index
    %c0_153 = arith.constant 0 : index
    %508 = vector.load %arg8[%c0_152, %c0_153] : memref<128x384xf32, #tpu.memory_space<vmem>>, vector<128x384xf32>
    %cst_154 = arith.constant dense<0.000000e+00> : vector<8x384xf32>
    %509 = tpu.matmul %503, %508, %cst_154 {dimension_numbers = #tpu.dot_dimension_numbers<[1], [0], [0], [1], [0, 0, 1, 1], [], []>} : vector<8x128xf32>, vector<128x384xf32>, vector<8x384xf32> -> vector<8x384xf32>
    %510 = vector.extract_strided_slice %507 {offsets = [0, 0], sizes = [8, 128], strides = [1, 1]} : vector<8x384xf32> to vector<8x128xf32>
    %511 = vector.extract_strided_slice %509 {offsets = [0, 0], sizes = [8, 128], strides = [1, 1]} : vector<8x384xf32> to vector<8x128xf32>
    %512 = arith.addf %510, %511 : vector<8x128xf32>
    %513 = arith.negf %512 : vector<8x128xf32>
    %514 = math.exp %513 : vector<8x128xf32>
    %cst_155 = arith.constant 1.000000e+00 : f32
    %515 = vector.broadcast %cst_155 : f32 to vector<8x128xf32>
    %516 = arith.addf %515, %514 : vector<8x128xf32>
    %517 = arith.divf %515, %516 : vector<8x128xf32>
    %518 = vector.extract_strided_slice %507 {offsets = [0, 128], sizes = [8, 128], strides = [1, 1]} : vector<8x384xf32> to vector<8x128xf32>
    %519 = vector.extract_strided_slice %509 {offsets = [0, 128], sizes = [8, 128], strides = [1, 1]} : vector<8x384xf32> to vector<8x128xf32>
    %520 = arith.addf %518, %519 : vector<8x128xf32>
    %521 = arith.negf %520 : vector<8x128xf32>
    %522 = math.exp %521 : vector<8x128xf32>
    %cst_156 = arith.constant 1.000000e+00 : f32
    %523 = vector.broadcast %cst_156 : f32 to vector<8x128xf32>
    %524 = arith.addf %523, %522 : vector<8x128xf32>
    %525 = arith.divf %523, %524 : vector<8x128xf32>
    %526 = vector.extract_strided_slice %507 {offsets = [0, 256], sizes = [8, 128], strides = [1, 1]} : vector<8x384xf32> to vector<8x128xf32>
    %527 = vector.extract_strided_slice %509 {offsets = [0, 256], sizes = [8, 128], strides = [1, 1]} : vector<8x384xf32> to vector<8x128xf32>
    %c0_157 = arith.constant 0 : index
    %c0_158 = arith.constant 0 : index
    %528 = vector.load %arg9[%c0_157, %c0_158] : memref<1x128xf32, #tpu.memory_space<vmem>>, vector<1x128xf32>
    %529 = vector.broadcast %528 : vector<1x128xf32> to vector<8x128xf32>
    %530 = arith.addf %527, %529 : vector<8x128xf32>
    %531 = arith.mulf %517, %530 : vector<8x128xf32>
    %532 = arith.addf %526, %531 : vector<8x128xf32>
    %533 = math.tanh %532 : vector<8x128xf32>
    %cst_159 = arith.constant 1.000000e+00 : f32
    %534 = vector.broadcast %cst_159 : f32 to vector<8x128xf32>
    %535 = arith.subf %534, %525 : vector<8x128xf32>
    %536 = arith.mulf %535, %533 : vector<8x128xf32>
    %537 = arith.mulf %525, %503 : vector<8x128xf32>
    %538 = arith.addf %536, %537 : vector<8x128xf32>
    %c7_i32_160 = arith.constant 7 : i32
    %539 = arith.subi %c7_i32_160, %c1_i32_149 : i32
    %540 = vector.broadcast %c1_i32_149 : i32 to vector<8x128xi32>
    %541 = vector.broadcast %539 : i32 to vector<8x128xi32>
    %542 = arith.select %3, %540, %541 : vector<8x128xi1>, vector<8x128xi32>
    %543 = vector.broadcast %0 : vector<8x1xi32> to vector<8x128xi32>
    %544 = arith.cmpi slt, %542, %543 : vector<8x128xi32>
    %545 = arith.select %544, %538, %503 : vector<8x128xi1>, vector<8x128xf32>
    %c2_i32_161 = arith.constant 2 : i32
    %c8_i32_162 = arith.constant 8 : i32
    %546 = arith.muli %c2_i32_161, %c8_i32_162 : i32
    %547 = tpu.assume_multiple %546, 8 : i32
    %548 = arith.index_cast %547 : i32 to index
    %c0_163 = arith.constant 0 : index
    %549 = vector.load %arg14[%548, %c0_163] : memref<64x384xf32, #tpu.memory_space<vmem>>, vector<8x384xf32>
    %c0_164 = arith.constant 0 : index
    %c0_165 = arith.constant 0 : index
    %550 = vector.load %arg8[%c0_164, %c0_165] : memref<128x384xf32, #tpu.memory_space<vmem>>, vector<128x384xf32>
    %cst_166 = arith.constant dense<0.000000e+00> : vector<8x384xf32>
    %551 = tpu.matmul %545, %550, %cst_166 {dimension_numbers = #tpu.dot_dimension_numbers<[1], [0], [0], [1], [0, 0, 1, 1], [], []>} : vector<8x128xf32>, vector<128x384xf32>, vector<8x384xf32> -> vector<8x384xf32>
    %552 = vector.extract_strided_slice %549 {offsets = [0, 0], sizes = [8, 128], strides = [1, 1]} : vector<8x384xf32> to vector<8x128xf32>
    %553 = vector.extract_strided_slice %551 {offsets = [0, 0], sizes = [8, 128], strides = [1, 1]} : vector<8x384xf32> to vector<8x128xf32>
    %554 = arith.addf %552, %553 : vector<8x128xf32>
    %555 = arith.negf %554 : vector<8x128xf32>
    %556 = math.exp %555 : vector<8x128xf32>
    %cst_167 = arith.constant 1.000000e+00 : f32
    %557 = vector.broadcast %cst_167 : f32 to vector<8x128xf32>
    %558 = arith.addf %557, %556 : vector<8x128xf32>
    %559 = arith.divf %557, %558 : vector<8x128xf32>
    %560 = vector.extract_strided_slice %549 {offsets = [0, 128], sizes = [8, 128], strides = [1, 1]} : vector<8x384xf32> to vector<8x128xf32>
    %561 = vector.extract_strided_slice %551 {offsets = [0, 128], sizes = [8, 128], strides = [1, 1]} : vector<8x384xf32> to vector<8x128xf32>
    %562 = arith.addf %560, %561 : vector<8x128xf32>
    %563 = arith.negf %562 : vector<8x128xf32>
    %564 = math.exp %563 : vector<8x128xf32>
    %cst_168 = arith.constant 1.000000e+00 : f32
    %565 = vector.broadcast %cst_168 : f32 to vector<8x128xf32>
    %566 = arith.addf %565, %564 : vector<8x128xf32>
    %567 = arith.divf %565, %566 : vector<8x128xf32>
    %568 = vector.extract_strided_slice %549 {offsets = [0, 256], sizes = [8, 128], strides = [1, 1]} : vector<8x384xf32> to vector<8x128xf32>
    %569 = vector.extract_strided_slice %551 {offsets = [0, 256], sizes = [8, 128], strides = [1, 1]} : vector<8x384xf32> to vector<8x128xf32>
    %c0_169 = arith.constant 0 : index
    %c0_170 = arith.constant 0 : index
    %570 = vector.load %arg9[%c0_169, %c0_170] : memref<1x128xf32, #tpu.memory_space<vmem>>, vector<1x128xf32>
    %571 = vector.broadcast %570 : vector<1x128xf32> to vector<8x128xf32>
    %572 = arith.addf %569, %571 : vector<8x128xf32>
    %573 = arith.mulf %559, %572 : vector<8x128xf32>
    %574 = arith.addf %568, %573 : vector<8x128xf32>
    %575 = math.tanh %574 : vector<8x128xf32>
    %cst_171 = arith.constant 1.000000e+00 : f32
    %576 = vector.broadcast %cst_171 : f32 to vector<8x128xf32>
    %577 = arith.subf %576, %567 : vector<8x128xf32>
    %578 = arith.mulf %577, %575 : vector<8x128xf32>
    %579 = arith.mulf %567, %545 : vector<8x128xf32>
    %580 = arith.addf %578, %579 : vector<8x128xf32>
    %c7_i32_172 = arith.constant 7 : i32
    %581 = arith.subi %c7_i32_172, %c2_i32_161 : i32
    %582 = vector.broadcast %c2_i32_161 : i32 to vector<8x128xi32>
    %583 = vector.broadcast %581 : i32 to vector<8x128xi32>
    %584 = arith.select %3, %582, %583 : vector<8x128xi1>, vector<8x128xi32>
    %585 = vector.broadcast %0 : vector<8x1xi32> to vector<8x128xi32>
    %586 = arith.cmpi slt, %584, %585 : vector<8x128xi32>
    %587 = arith.select %586, %580, %545 : vector<8x128xi1>, vector<8x128xf32>
    %c3_i32_173 = arith.constant 3 : i32
    %c8_i32_174 = arith.constant 8 : i32
    %588 = arith.muli %c3_i32_173, %c8_i32_174 : i32
    %589 = tpu.assume_multiple %588, 8 : i32
    %590 = arith.index_cast %589 : i32 to index
    %c0_175 = arith.constant 0 : index
    %591 = vector.load %arg14[%590, %c0_175] : memref<64x384xf32, #tpu.memory_space<vmem>>, vector<8x384xf32>
    %c0_176 = arith.constant 0 : index
    %c0_177 = arith.constant 0 : index
    %592 = vector.load %arg8[%c0_176, %c0_177] : memref<128x384xf32, #tpu.memory_space<vmem>>, vector<128x384xf32>
    %cst_178 = arith.constant dense<0.000000e+00> : vector<8x384xf32>
    %593 = tpu.matmul %587, %592, %cst_178 {dimension_numbers = #tpu.dot_dimension_numbers<[1], [0], [0], [1], [0, 0, 1, 1], [], []>} : vector<8x128xf32>, vector<128x384xf32>, vector<8x384xf32> -> vector<8x384xf32>
    %594 = vector.extract_strided_slice %591 {offsets = [0, 0], sizes = [8, 128], strides = [1, 1]} : vector<8x384xf32> to vector<8x128xf32>
    %595 = vector.extract_strided_slice %593 {offsets = [0, 0], sizes = [8, 128], strides = [1, 1]} : vector<8x384xf32> to vector<8x128xf32>
    %596 = arith.addf %594, %595 : vector<8x128xf32>
    %597 = arith.negf %596 : vector<8x128xf32>
    %598 = math.exp %597 : vector<8x128xf32>
    %cst_179 = arith.constant 1.000000e+00 : f32
    %599 = vector.broadcast %cst_179 : f32 to vector<8x128xf32>
    %600 = arith.addf %599, %598 : vector<8x128xf32>
    %601 = arith.divf %599, %600 : vector<8x128xf32>
    %602 = vector.extract_strided_slice %591 {offsets = [0, 128], sizes = [8, 128], strides = [1, 1]} : vector<8x384xf32> to vector<8x128xf32>
    %603 = vector.extract_strided_slice %593 {offsets = [0, 128], sizes = [8, 128], strides = [1, 1]} : vector<8x384xf32> to vector<8x128xf32>
    %604 = arith.addf %602, %603 : vector<8x128xf32>
    %605 = arith.negf %604 : vector<8x128xf32>
    %606 = math.exp %605 : vector<8x128xf32>
    %cst_180 = arith.constant 1.000000e+00 : f32
    %607 = vector.broadcast %cst_180 : f32 to vector<8x128xf32>
    %608 = arith.addf %607, %606 : vector<8x128xf32>
    %609 = arith.divf %607, %608 : vector<8x128xf32>
    %610 = vector.extract_strided_slice %591 {offsets = [0, 256], sizes = [8, 128], strides = [1, 1]} : vector<8x384xf32> to vector<8x128xf32>
    %611 = vector.extract_strided_slice %593 {offsets = [0, 256], sizes = [8, 128], strides = [1, 1]} : vector<8x384xf32> to vector<8x128xf32>
    %c0_181 = arith.constant 0 : index
    %c0_182 = arith.constant 0 : index
    %612 = vector.load %arg9[%c0_181, %c0_182] : memref<1x128xf32, #tpu.memory_space<vmem>>, vector<1x128xf32>
    %613 = vector.broadcast %612 : vector<1x128xf32> to vector<8x128xf32>
    %614 = arith.addf %611, %613 : vector<8x128xf32>
    %615 = arith.mulf %601, %614 : vector<8x128xf32>
    %616 = arith.addf %610, %615 : vector<8x128xf32>
    %617 = math.tanh %616 : vector<8x128xf32>
    %cst_183 = arith.constant 1.000000e+00 : f32
    %618 = vector.broadcast %cst_183 : f32 to vector<8x128xf32>
    %619 = arith.subf %618, %609 : vector<8x128xf32>
    %620 = arith.mulf %619, %617 : vector<8x128xf32>
    %621 = arith.mulf %609, %587 : vector<8x128xf32>
    %622 = arith.addf %620, %621 : vector<8x128xf32>
    %c7_i32_184 = arith.constant 7 : i32
    %623 = arith.subi %c7_i32_184, %c3_i32_173 : i32
    %624 = vector.broadcast %c3_i32_173 : i32 to vector<8x128xi32>
    %625 = vector.broadcast %623 : i32 to vector<8x128xi32>
    %626 = arith.select %3, %624, %625 : vector<8x128xi1>, vector<8x128xi32>
    %627 = vector.broadcast %0 : vector<8x1xi32> to vector<8x128xi32>
    %628 = arith.cmpi slt, %626, %627 : vector<8x128xi32>
    %629 = arith.select %628, %622, %587 : vector<8x128xi1>, vector<8x128xf32>
    %c4_i32_185 = arith.constant 4 : i32
    %c8_i32_186 = arith.constant 8 : i32
    %630 = arith.muli %c4_i32_185, %c8_i32_186 : i32
    %631 = tpu.assume_multiple %630, 8 : i32
    %632 = arith.index_cast %631 : i32 to index
    %c0_187 = arith.constant 0 : index
    %633 = vector.load %arg14[%632, %c0_187] : memref<64x384xf32, #tpu.memory_space<vmem>>, vector<8x384xf32>
    %c0_188 = arith.constant 0 : index
    %c0_189 = arith.constant 0 : index
    %634 = vector.load %arg8[%c0_188, %c0_189] : memref<128x384xf32, #tpu.memory_space<vmem>>, vector<128x384xf32>
    %cst_190 = arith.constant dense<0.000000e+00> : vector<8x384xf32>
    %635 = tpu.matmul %629, %634, %cst_190 {dimension_numbers = #tpu.dot_dimension_numbers<[1], [0], [0], [1], [0, 0, 1, 1], [], []>} : vector<8x128xf32>, vector<128x384xf32>, vector<8x384xf32> -> vector<8x384xf32>
    %636 = vector.extract_strided_slice %633 {offsets = [0, 0], sizes = [8, 128], strides = [1, 1]} : vector<8x384xf32> to vector<8x128xf32>
    %637 = vector.extract_strided_slice %635 {offsets = [0, 0], sizes = [8, 128], strides = [1, 1]} : vector<8x384xf32> to vector<8x128xf32>
    %638 = arith.addf %636, %637 : vector<8x128xf32>
    %639 = arith.negf %638 : vector<8x128xf32>
    %640 = math.exp %639 : vector<8x128xf32>
    %cst_191 = arith.constant 1.000000e+00 : f32
    %641 = vector.broadcast %cst_191 : f32 to vector<8x128xf32>
    %642 = arith.addf %641, %640 : vector<8x128xf32>
    %643 = arith.divf %641, %642 : vector<8x128xf32>
    %644 = vector.extract_strided_slice %633 {offsets = [0, 128], sizes = [8, 128], strides = [1, 1]} : vector<8x384xf32> to vector<8x128xf32>
    %645 = vector.extract_strided_slice %635 {offsets = [0, 128], sizes = [8, 128], strides = [1, 1]} : vector<8x384xf32> to vector<8x128xf32>
    %646 = arith.addf %644, %645 : vector<8x128xf32>
    %647 = arith.negf %646 : vector<8x128xf32>
    %648 = math.exp %647 : vector<8x128xf32>
    %cst_192 = arith.constant 1.000000e+00 : f32
    %649 = vector.broadcast %cst_192 : f32 to vector<8x128xf32>
    %650 = arith.addf %649, %648 : vector<8x128xf32>
    %651 = arith.divf %649, %650 : vector<8x128xf32>
    %652 = vector.extract_strided_slice %633 {offsets = [0, 256], sizes = [8, 128], strides = [1, 1]} : vector<8x384xf32> to vector<8x128xf32>
    %653 = vector.extract_strided_slice %635 {offsets = [0, 256], sizes = [8, 128], strides = [1, 1]} : vector<8x384xf32> to vector<8x128xf32>
    %c0_193 = arith.constant 0 : index
    %c0_194 = arith.constant 0 : index
    %654 = vector.load %arg9[%c0_193, %c0_194] : memref<1x128xf32, #tpu.memory_space<vmem>>, vector<1x128xf32>
    %655 = vector.broadcast %654 : vector<1x128xf32> to vector<8x128xf32>
    %656 = arith.addf %653, %655 : vector<8x128xf32>
    %657 = arith.mulf %643, %656 : vector<8x128xf32>
    %658 = arith.addf %652, %657 : vector<8x128xf32>
    %659 = math.tanh %658 : vector<8x128xf32>
    %cst_195 = arith.constant 1.000000e+00 : f32
    %660 = vector.broadcast %cst_195 : f32 to vector<8x128xf32>
    %661 = arith.subf %660, %651 : vector<8x128xf32>
    %662 = arith.mulf %661, %659 : vector<8x128xf32>
    %663 = arith.mulf %651, %629 : vector<8x128xf32>
    %664 = arith.addf %662, %663 : vector<8x128xf32>
    %c7_i32_196 = arith.constant 7 : i32
    %665 = arith.subi %c7_i32_196, %c4_i32_185 : i32
    %666 = vector.broadcast %c4_i32_185 : i32 to vector<8x128xi32>
    %667 = vector.broadcast %665 : i32 to vector<8x128xi32>
    %668 = arith.select %3, %666, %667 : vector<8x128xi1>, vector<8x128xi32>
    %669 = vector.broadcast %0 : vector<8x1xi32> to vector<8x128xi32>
    %670 = arith.cmpi slt, %668, %669 : vector<8x128xi32>
    %671 = arith.select %670, %664, %629 : vector<8x128xi1>, vector<8x128xf32>
    %c5_i32_197 = arith.constant 5 : i32
    %c8_i32_198 = arith.constant 8 : i32
    %672 = arith.muli %c5_i32_197, %c8_i32_198 : i32
    %673 = tpu.assume_multiple %672, 8 : i32
    %674 = arith.index_cast %673 : i32 to index
    %c0_199 = arith.constant 0 : index
    %675 = vector.load %arg14[%674, %c0_199] : memref<64x384xf32, #tpu.memory_space<vmem>>, vector<8x384xf32>
    %c0_200 = arith.constant 0 : index
    %c0_201 = arith.constant 0 : index
    %676 = vector.load %arg8[%c0_200, %c0_201] : memref<128x384xf32, #tpu.memory_space<vmem>>, vector<128x384xf32>
    %cst_202 = arith.constant dense<0.000000e+00> : vector<8x384xf32>
    %677 = tpu.matmul %671, %676, %cst_202 {dimension_numbers = #tpu.dot_dimension_numbers<[1], [0], [0], [1], [0, 0, 1, 1], [], []>} : vector<8x128xf32>, vector<128x384xf32>, vector<8x384xf32> -> vector<8x384xf32>
    %678 = vector.extract_strided_slice %675 {offsets = [0, 0], sizes = [8, 128], strides = [1, 1]} : vector<8x384xf32> to vector<8x128xf32>
    %679 = vector.extract_strided_slice %677 {offsets = [0, 0], sizes = [8, 128], strides = [1, 1]} : vector<8x384xf32> to vector<8x128xf32>
    %680 = arith.addf %678, %679 : vector<8x128xf32>
    %681 = arith.negf %680 : vector<8x128xf32>
    %682 = math.exp %681 : vector<8x128xf32>
    %cst_203 = arith.constant 1.000000e+00 : f32
    %683 = vector.broadcast %cst_203 : f32 to vector<8x128xf32>
    %684 = arith.addf %683, %682 : vector<8x128xf32>
    %685 = arith.divf %683, %684 : vector<8x128xf32>
    %686 = vector.extract_strided_slice %675 {offsets = [0, 128], sizes = [8, 128], strides = [1, 1]} : vector<8x384xf32> to vector<8x128xf32>
    %687 = vector.extract_strided_slice %677 {offsets = [0, 128], sizes = [8, 128], strides = [1, 1]} : vector<8x384xf32> to vector<8x128xf32>
    %688 = arith.addf %686, %687 : vector<8x128xf32>
    %689 = arith.negf %688 : vector<8x128xf32>
    %690 = math.exp %689 : vector<8x128xf32>
    %cst_204 = arith.constant 1.000000e+00 : f32
    %691 = vector.broadcast %cst_204 : f32 to vector<8x128xf32>
    %692 = arith.addf %691, %690 : vector<8x128xf32>
    %693 = arith.divf %691, %692 : vector<8x128xf32>
    %694 = vector.extract_strided_slice %675 {offsets = [0, 256], sizes = [8, 128], strides = [1, 1]} : vector<8x384xf32> to vector<8x128xf32>
    %695 = vector.extract_strided_slice %677 {offsets = [0, 256], sizes = [8, 128], strides = [1, 1]} : vector<8x384xf32> to vector<8x128xf32>
    %c0_205 = arith.constant 0 : index
    %c0_206 = arith.constant 0 : index
    %696 = vector.load %arg9[%c0_205, %c0_206] : memref<1x128xf32, #tpu.memory_space<vmem>>, vector<1x128xf32>
    %697 = vector.broadcast %696 : vector<1x128xf32> to vector<8x128xf32>
    %698 = arith.addf %695, %697 : vector<8x128xf32>
    %699 = arith.mulf %685, %698 : vector<8x128xf32>
    %700 = arith.addf %694, %699 : vector<8x128xf32>
    %701 = math.tanh %700 : vector<8x128xf32>
    %cst_207 = arith.constant 1.000000e+00 : f32
    %702 = vector.broadcast %cst_207 : f32 to vector<8x128xf32>
    %703 = arith.subf %702, %693 : vector<8x128xf32>
    %704 = arith.mulf %703, %701 : vector<8x128xf32>
    %705 = arith.mulf %693, %671 : vector<8x128xf32>
    %706 = arith.addf %704, %705 : vector<8x128xf32>
    %c7_i32_208 = arith.constant 7 : i32
    %707 = arith.subi %c7_i32_208, %c5_i32_197 : i32
    %708 = vector.broadcast %c5_i32_197 : i32 to vector<8x128xi32>
    %709 = vector.broadcast %707 : i32 to vector<8x128xi32>
    %710 = arith.select %3, %708, %709 : vector<8x128xi1>, vector<8x128xi32>
    %711 = vector.broadcast %0 : vector<8x1xi32> to vector<8x128xi32>
    %712 = arith.cmpi slt, %710, %711 : vector<8x128xi32>
    %713 = arith.select %712, %706, %671 : vector<8x128xi1>, vector<8x128xf32>
    %c6_i32_209 = arith.constant 6 : i32
    %c8_i32_210 = arith.constant 8 : i32
    %714 = arith.muli %c6_i32_209, %c8_i32_210 : i32
    %715 = tpu.assume_multiple %714, 8 : i32
    %716 = arith.index_cast %715 : i32 to index
    %c0_211 = arith.constant 0 : index
    %717 = vector.load %arg14[%716, %c0_211] : memref<64x384xf32, #tpu.memory_space<vmem>>, vector<8x384xf32>
    %c0_212 = arith.constant 0 : index
    %c0_213 = arith.constant 0 : index
    %718 = vector.load %arg8[%c0_212, %c0_213] : memref<128x384xf32, #tpu.memory_space<vmem>>, vector<128x384xf32>
    %cst_214 = arith.constant dense<0.000000e+00> : vector<8x384xf32>
    %719 = tpu.matmul %713, %718, %cst_214 {dimension_numbers = #tpu.dot_dimension_numbers<[1], [0], [0], [1], [0, 0, 1, 1], [], []>} : vector<8x128xf32>, vector<128x384xf32>, vector<8x384xf32> -> vector<8x384xf32>
    %720 = vector.extract_strided_slice %717 {offsets = [0, 0], sizes = [8, 128], strides = [1, 1]} : vector<8x384xf32> to vector<8x128xf32>
    %721 = vector.extract_strided_slice %719 {offsets = [0, 0], sizes = [8, 128], strides = [1, 1]} : vector<8x384xf32> to vector<8x128xf32>
    %722 = arith.addf %720, %721 : vector<8x128xf32>
    %723 = arith.negf %722 : vector<8x128xf32>
    %724 = math.exp %723 : vector<8x128xf32>
    %cst_215 = arith.constant 1.000000e+00 : f32
    %725 = vector.broadcast %cst_215 : f32 to vector<8x128xf32>
    %726 = arith.addf %725, %724 : vector<8x128xf32>
    %727 = arith.divf %725, %726 : vector<8x128xf32>
    %728 = vector.extract_strided_slice %717 {offsets = [0, 128], sizes = [8, 128], strides = [1, 1]} : vector<8x384xf32> to vector<8x128xf32>
    %729 = vector.extract_strided_slice %719 {offsets = [0, 128], sizes = [8, 128], strides = [1, 1]} : vector<8x384xf32> to vector<8x128xf32>
    %730 = arith.addf %728, %729 : vector<8x128xf32>
    %731 = arith.negf %730 : vector<8x128xf32>
    %732 = math.exp %731 : vector<8x128xf32>
    %cst_216 = arith.constant 1.000000e+00 : f32
    %733 = vector.broadcast %cst_216 : f32 to vector<8x128xf32>
    %734 = arith.addf %733, %732 : vector<8x128xf32>
    %735 = arith.divf %733, %734 : vector<8x128xf32>
    %736 = vector.extract_strided_slice %717 {offsets = [0, 256], sizes = [8, 128], strides = [1, 1]} : vector<8x384xf32> to vector<8x128xf32>
    %737 = vector.extract_strided_slice %719 {offsets = [0, 256], sizes = [8, 128], strides = [1, 1]} : vector<8x384xf32> to vector<8x128xf32>
    %c0_217 = arith.constant 0 : index
    %c0_218 = arith.constant 0 : index
    %738 = vector.load %arg9[%c0_217, %c0_218] : memref<1x128xf32, #tpu.memory_space<vmem>>, vector<1x128xf32>
    %739 = vector.broadcast %738 : vector<1x128xf32> to vector<8x128xf32>
    %740 = arith.addf %737, %739 : vector<8x128xf32>
    %741 = arith.mulf %727, %740 : vector<8x128xf32>
    %742 = arith.addf %736, %741 : vector<8x128xf32>
    %743 = math.tanh %742 : vector<8x128xf32>
    %cst_219 = arith.constant 1.000000e+00 : f32
    %744 = vector.broadcast %cst_219 : f32 to vector<8x128xf32>
    %745 = arith.subf %744, %735 : vector<8x128xf32>
    %746 = arith.mulf %745, %743 : vector<8x128xf32>
    %747 = arith.mulf %735, %713 : vector<8x128xf32>
    %748 = arith.addf %746, %747 : vector<8x128xf32>
    %c7_i32_220 = arith.constant 7 : i32
    %749 = arith.subi %c7_i32_220, %c6_i32_209 : i32
    %750 = vector.broadcast %c6_i32_209 : i32 to vector<8x128xi32>
    %751 = vector.broadcast %749 : i32 to vector<8x128xi32>
    %752 = arith.select %3, %750, %751 : vector<8x128xi1>, vector<8x128xi32>
    %753 = vector.broadcast %0 : vector<8x1xi32> to vector<8x128xi32>
    %754 = arith.cmpi slt, %752, %753 : vector<8x128xi32>
    %755 = arith.select %754, %748, %713 : vector<8x128xi1>, vector<8x128xf32>
    %c7_i32_221 = arith.constant 7 : i32
    %c8_i32_222 = arith.constant 8 : i32
    %756 = arith.muli %c7_i32_221, %c8_i32_222 : i32
    %757 = tpu.assume_multiple %756, 8 : i32
    %758 = arith.index_cast %757 : i32 to index
    %c0_223 = arith.constant 0 : index
    %759 = vector.load %arg14[%758, %c0_223] : memref<64x384xf32, #tpu.memory_space<vmem>>, vector<8x384xf32>
    %c0_224 = arith.constant 0 : index
    %c0_225 = arith.constant 0 : index
    %760 = vector.load %arg8[%c0_224, %c0_225] : memref<128x384xf32, #tpu.memory_space<vmem>>, vector<128x384xf32>
    %cst_226 = arith.constant dense<0.000000e+00> : vector<8x384xf32>
    %761 = tpu.matmul %755, %760, %cst_226 {dimension_numbers = #tpu.dot_dimension_numbers<[1], [0], [0], [1], [0, 0, 1, 1], [], []>} : vector<8x128xf32>, vector<128x384xf32>, vector<8x384xf32> -> vector<8x384xf32>
    %762 = vector.extract_strided_slice %759 {offsets = [0, 0], sizes = [8, 128], strides = [1, 1]} : vector<8x384xf32> to vector<8x128xf32>
    %763 = vector.extract_strided_slice %761 {offsets = [0, 0], sizes = [8, 128], strides = [1, 1]} : vector<8x384xf32> to vector<8x128xf32>
    %764 = arith.addf %762, %763 : vector<8x128xf32>
    %765 = arith.negf %764 : vector<8x128xf32>
    %766 = math.exp %765 : vector<8x128xf32>
    %cst_227 = arith.constant 1.000000e+00 : f32
    %767 = vector.broadcast %cst_227 : f32 to vector<8x128xf32>
    %768 = arith.addf %767, %766 : vector<8x128xf32>
    %769 = arith.divf %767, %768 : vector<8x128xf32>
    %770 = vector.extract_strided_slice %759 {offsets = [0, 128], sizes = [8, 128], strides = [1, 1]} : vector<8x384xf32> to vector<8x128xf32>
    %771 = vector.extract_strided_slice %761 {offsets = [0, 128], sizes = [8, 128], strides = [1, 1]} : vector<8x384xf32> to vector<8x128xf32>
    %772 = arith.addf %770, %771 : vector<8x128xf32>
    %773 = arith.negf %772 : vector<8x128xf32>
    %774 = math.exp %773 : vector<8x128xf32>
    %cst_228 = arith.constant 1.000000e+00 : f32
    %775 = vector.broadcast %cst_228 : f32 to vector<8x128xf32>
    %776 = arith.addf %775, %774 : vector<8x128xf32>
    %777 = arith.divf %775, %776 : vector<8x128xf32>
    %778 = vector.extract_strided_slice %759 {offsets = [0, 256], sizes = [8, 128], strides = [1, 1]} : vector<8x384xf32> to vector<8x128xf32>
    %779 = vector.extract_strided_slice %761 {offsets = [0, 256], sizes = [8, 128], strides = [1, 1]} : vector<8x384xf32> to vector<8x128xf32>
    %c0_229 = arith.constant 0 : index
    %c0_230 = arith.constant 0 : index
    %780 = vector.load %arg9[%c0_229, %c0_230] : memref<1x128xf32, #tpu.memory_space<vmem>>, vector<1x128xf32>
    %781 = vector.broadcast %780 : vector<1x128xf32> to vector<8x128xf32>
    %782 = arith.addf %779, %781 : vector<8x128xf32>
    %783 = arith.mulf %769, %782 : vector<8x128xf32>
    %784 = arith.addf %778, %783 : vector<8x128xf32>
    %785 = math.tanh %784 : vector<8x128xf32>
    %cst_231 = arith.constant 1.000000e+00 : f32
    %786 = vector.broadcast %cst_231 : f32 to vector<8x128xf32>
    %787 = arith.subf %786, %777 : vector<8x128xf32>
    %788 = arith.mulf %787, %785 : vector<8x128xf32>
    %789 = arith.mulf %777, %755 : vector<8x128xf32>
    %790 = arith.addf %788, %789 : vector<8x128xf32>
    %c7_i32_232 = arith.constant 7 : i32
    %791 = arith.subi %c7_i32_232, %c7_i32_221 : i32
    %792 = vector.broadcast %c7_i32_221 : i32 to vector<8x128xi32>
    %793 = vector.broadcast %791 : i32 to vector<8x128xi32>
    %794 = arith.select %3, %792, %793 : vector<8x128xi1>, vector<8x128xi32>
    %795 = vector.broadcast %0 : vector<8x1xi32> to vector<8x128xi32>
    %796 = arith.cmpi slt, %794, %795 : vector<8x128xi32>
    %797 = arith.select %796, %790, %755 : vector<8x128xi1>, vector<8x128xf32>
    %c8_i32_233 = arith.constant 8 : i32
    %c0_234 = arith.constant 0 : index
    %c0_235 = arith.constant 0 : index
    %798 = vector.load %arg10[%c0_234, %c0_235] : memref<128x128xf32, #tpu.memory_space<vmem>>, vector<128x128xf32>
    %cst_236 = arith.constant dense<0.000000e+00> : vector<8x128xf32>
    %799 = tpu.matmul %797, %798, %cst_236 {dimension_numbers = #tpu.dot_dimension_numbers<[1], [0], [0], [1], [0, 0, 1, 1], [], []>} : vector<8x128xf32>, vector<128x128xf32>, vector<8x128xf32> -> vector<8x128xf32>
    %c0_237 = arith.constant 0 : index
    %c0_238 = arith.constant 0 : index
    %800 = vector.load %arg11[%c0_237, %c0_238] : memref<128x128xf32, #tpu.memory_space<vmem>>, vector<128x128xf32>
    %cst_239 = arith.constant dense<0.000000e+00> : vector<8x128xf32>
    %801 = tpu.matmul %406, %800, %cst_239 {dimension_numbers = #tpu.dot_dimension_numbers<[1], [0], [0], [1], [0, 0, 1, 1], [], []>} : vector<8x128xf32>, vector<128x128xf32>, vector<8x128xf32> -> vector<8x128xf32>
    %802 = arith.addf %799, %801 : vector<8x128xf32>
    %c0_240 = arith.constant 0 : index
    %c0_241 = arith.constant 0 : index
    %803 = vector.load %arg12[%c0_240, %c0_241] : memref<1x128xf32, #tpu.memory_space<vmem>>, vector<1x128xf32>
    %804 = vector.broadcast %803 : vector<1x128xf32> to vector<8x128xf32>
    %805 = arith.addf %802, %804 : vector<8x128xf32>
    %cst_242 = arith.constant 0.000000e+00 : f32
    %806 = vector.broadcast %cst_242 : f32 to vector<8x128xf32>
    %807 = arith.maximumf %805, %806 : vector<8x128xf32>
    %c0_243 = arith.constant 0 : index
    %c0_244 = arith.constant 0 : index
    %808 = vector.load %arg13[%c0_243, %c0_244] : memref<8x128xf32, #tpu.memory_space<vmem>>, vector<8x128xf32>
    tpu.vector_store %arg13[%c0_243, %c0_244], %807 {strides = array<i32>} : memref<8x128xf32, #tpu.memory_space<vmem>>, vector<8x128xf32>,
    return
  }
}

</mosaic_0001>

<llo_original>
// kernel: tpu_custom_call.1
$region0: #{tpu_custom_call.1}
  #allocation0 [shape = 'u32[]', space=smem, size = 0x4, offset = 0x4, fixed_abs, tag = 'smem constant byte address 0x4 - core index']
  #allocation1 [shape = 'u32[72,128]{1,0:T(1,128)}', space=vmem, size = 0x9000, scoped, tag = 'internal scratch']
  #allocation2 [shape = 'f32[64,384]{1,0:T(8,128)}', space=vmem, size = 0x18000, scoped, tag = 'scratch operand']
  #allocation3 [shape = 'f32[64,128]{1,0:T(8,128)}', space=vmem, size = 0x8000, scoped, tag = 'scratch operand']
  %s0 = inlined_call_operand.vmem [shape: f32[64,32], index: 0, kind: input, shape index: {}]
  %s1 = inlined_call_operand.vmem [shape: s32[8,1], index: 1, kind: input, shape index: {}]
  %s2 = inlined_call_operand.hbm [shape: f32[32,768], index: 2, kind: input, shape index: {}]
  %s3 = inlined_call_operand.vmem [shape: f32[1,384], index: 3, kind: input, shape index: {}]
  %s4 = inlined_call_operand.hbm [shape: f32[128,384], index: 4, kind: input, shape index: {}]
  %s5 = inlined_call_operand.vmem [shape: f32[1,128], index: 5, kind: input, shape index: {}]
  %s6 = inlined_call_operand.hbm [shape: f32[128,768], index: 6, kind: input, shape index: {}]
  %s7 = inlined_call_operand.vmem [shape: f32[1,384], index: 7, kind: input, shape index: {}]
  %s8 = inlined_call_operand.hbm [shape: f32[128,384], index: 8, kind: input, shape index: {}]
  %s9 = inlined_call_operand.vmem [shape: f32[1,128], index: 9, kind: input, shape index: {}]
  %s10 = inlined_call_operand.hbm [shape: f32[128,128], index: 10, kind: input, shape index: {}]
  %s11 = inlined_call_operand.hbm [shape: f32[128,128], index: 11, kind: input, shape index: {}]
  %s12 = inlined_call_operand.vmem [shape: f32[1,128], index: 12, kind: input, shape index: {}]
  %s13 = inlined_call_operand.hbm [shape: f32[8,128], index: 13, kind: output, shape index: {}]
  %s14 = sld [smem:[#allocation0]]
  $region86: #{tpu_custom_call.1} parent=0
    _
  %s16 = ssub.s32 1, %s14
  %s17 = scalar_select 0, %s16, %s14
  $region1: #{tpu_custom_call.1} parent=0
    #allocation4 [shape = 'u8[98304]{0}', space=vmem, size = 0x18000, scoped, tag = 'input window, operand 2, single buffered']
    #allocation5 [shape = 's32[1]{0}', space=sflag, size = 0x4, scoped, tag = 'scoped memory for tpu_custom_call.1']
    #allocation6 [shape = 's32[1]{0}', space=sflag, size = 0x4, scoped, tag = 'scoped memory for tpu_custom_call.1']
    #allocation7 [shape = 'u8[196608]{0}', space=vmem, size = 0x30000, scoped, tag = 'input window, operand 4, single buffered']
    #allocation8 [shape = 's32[1]{0}', space=sflag, size = 0x4, scoped, tag = 'scoped memory for tpu_custom_call.1']
    #allocation9 [shape = 'u8[393216]{0}', space=vmem, size = 0x60000, scoped, tag = 'input window, operand 6, single buffered']
    #allocation10 [shape = 'u8[196608]{0}', space=vmem, size = 0x30000, scoped, tag = 'input window, operand 8, single buffered']
    #allocation11 [shape = 's32[1]{0}', space=sflag, size = 0x4, scoped, tag = 'scoped memory for tpu_custom_call.1']
    #allocation12 [shape = 'u8[65536]{0}', space=vmem, size = 0x10000, scoped, tag = 'input window, operand 10, single buffered']
    #allocation13 [shape = 'u8[65536]{0}', space=vmem, size = 0x10000, scoped, tag = 'input window, operand 11, single buffered']
    #allocation14 [shape = 's32[1]{0}', space=sflag, size = 0x4, scoped, tag = 'scoped memory for tpu_custom_call.1']
    #allocation15 [shape = 'u8[4096]{0}', space=vmem, size = 0x1000, scoped, tag = 'output window, operand 0, single buffered']
    %18 = vsyncpa [#allocation5], 0
    %19 = vsyncpa [#allocation8], 0
    %20 = vsyncpa [#allocation11], 0
    %21 = vsyncpa [#allocation14], 0
    %22 = vsyncpa [#allocation6], 0
    // Predicated region
    $region2: #{tpu_custom_call.1} parent=1 // pred_check
      _
    $region3: #{tpu_custom_call.1} parent=1 // pred_check_branch
      %24 = sbr.rel (0) target = $region5
    $region4: #{tpu_custom_call.1} parent=1 // pred_region
      _
    $region5: #{tpu_custom_call.1} parent=1 // pred_fallthru
      _
    // Predicated region
    $region6: #{tpu_custom_call.1} parent=1 // pred_check
      _
    $region7: #{tpu_custom_call.1} parent=1 // pred_check_branch
      %26 = sbr.rel (0) target = $region9
    $region8: #{tpu_custom_call.1} parent=1 // pred_region
      _
    $region9: #{tpu_custom_call.1} parent=1 // pred_fallthru
      _
    // Predicated region
    $region10: #{tpu_custom_call.1} parent=1 // pred_check
      _
    $region11: #{tpu_custom_call.1} parent=1 // pred_check_branch
      %28 = sbr.rel (0) target = $region13
    $region12: #{tpu_custom_call.1} parent=1 // pred_region
      %30 = vsyncadd [#allocation5], 0
      %s31 = sshll.u32 %s2, 4
      %s32 = int_to_ptr.hbm [resolvable:$true] %s31
      %s33 = sshll.u32 [#allocation4], 4
      %s34 = int_to_ptr.vmem [resolvable:$true] %s33
      %39 = dma.hbm_to_vmem [thread:$0]  %s32, 3072, %s34, [#allocation5], 768, 768, 48
    $region13: #{tpu_custom_call.1} parent=1 // pred_fallthru
      _
    // Predicated region
    $region14: #{tpu_custom_call.1} parent=1 // pred_check
      _
    $region15: #{tpu_custom_call.1} parent=1 // pred_check_branch
      %41 = sbr.rel (0) target = $region17
    $region16: #{tpu_custom_call.1} parent=1 // pred_region
      _
    $region17: #{tpu_custom_call.1} parent=1 // pred_fallthru
      _
    // Predicated region
    $region18: #{tpu_custom_call.1} parent=1 // pred_check
      _
    $region19: #{tpu_custom_call.1} parent=1 // pred_check_branch
      %43 = sbr.rel (0) target = $region21
    $region20: #{tpu_custom_call.1} parent=1 // pred_region
      %45 = vsyncadd [#allocation8], 0
      %s46 = sshll.u32 %s4, 4
      %s47 = int_to_ptr.hbm [resolvable:$true] %s46
      %s48 = sshll.u32 [#allocation7], 4
      %s49 = int_to_ptr.vmem [resolvable:$true] %s48
      %54 = dma.hbm_to_vmem [thread:$0]  %s47, 6144, %s49, [#allocation8], 384, 384, 24
    $region21: #{tpu_custom_call.1} parent=1 // pred_fallthru
      _
    // Predicated region
    $region22: #{tpu_custom_call.1} parent=1 // pred_check
      _
    $region23: #{tpu_custom_call.1} parent=1 // pred_check_branch
      %56 = sbr.rel (0) target = $region25
    $region24: #{tpu_custom_call.1} parent=1 // pred_region
      _
    $region25: #{tpu_custom_call.1} parent=1 // pred_fallthru
      _
    // Predicated region
    $region26: #{tpu_custom_call.1} parent=1 // pred_check
      _
    $region27: #{tpu_custom_call.1} parent=1 // pred_check_branch
      %58 = sbr.rel (0) target = $region29
    $region28: #{tpu_custom_call.1} parent=1 // pred_region
      %60 = vsyncadd [#allocation8], 0
      %s61 = sshll.u32 %s6, 4
      %s62 = int_to_ptr.hbm [resolvable:$true] %s61
      %s63 = sshll.u32 [#allocation9], 4
      %s64 = int_to_ptr.vmem [resolvable:$true] %s63
      %69 = dma.hbm_to_vmem [thread:$0]  %s62, 12288, %s64, [#allocation8], 768, 768, 48
    $region29: #{tpu_custom_call.1} parent=1 // pred_fallthru
      _
    // Predicated region
    $region30: #{tpu_custom_call.1} parent=1 // pred_check
      _
    $region31: #{tpu_custom_call.1} parent=1 // pred_check_branch
      %71 = sbr.rel (0) target = $region33
    $region32: #{tpu_custom_call.1} parent=1 // pred_region
      _
    $region33: #{tpu_custom_call.1} parent=1 // pred_fallthru
      _
    // Predicated region
    $region34: #{tpu_custom_call.1} parent=1 // pred_check
      _
    $region35: #{tpu_custom_call.1} parent=1 // pred_check_branch
      %73 = sbr.rel (0) target = $region37
    $region36: #{tpu_custom_call.1} parent=1 // pred_region
      %75 = vsyncadd [#allocation11], 0
      %s76 = sshll.u32 %s8, 4
      %s77 = int_to_ptr.hbm [resolvable:$true] %s76
      %s78 = sshll.u32 [#allocation10], 4
      %s79 = int_to_ptr.vmem [resolvable:$true] %s78
      %84 = dma.hbm_to_vmem [thread:$0]  %s77, 6144, %s79, [#allocation11], 384, 384, 24
    $region37: #{tpu_custom_call.1} parent=1 // pred_fallthru
      _
    // Predicated region
    $region38: #{tpu_custom_call.1} parent=1 // pred_check
      _
    $region39: #{tpu_custom_call.1} parent=1 // pred_check_branch
      %86 = sbr.rel (0) target = $region41
    $region40: #{tpu_custom_call.1} parent=1 // pred_region
      _
    $region41: #{tpu_custom_call.1} parent=1 // pred_fallthru
      _
    // Predicated region
    $region42: #{tpu_custom_call.1} parent=1 // pred_check
      _
    $region43: #{tpu_custom_call.1} parent=1 // pred_check_branch
      %88 = sbr.rel (0) target = $region45
    $region44: #{tpu_custom_call.1} parent=1 // pred_region
      %90 = vsyncadd [#allocation11], 0
      %s91 = sshll.u32 %s10, 4
      %s92 = int_to_ptr.hbm [resolvable:$true] %s91
      %s93 = sshll.u32 [#allocation12], 4
      %s94 = int_to_ptr.vmem [resolvable:$true] %s93
      %99 = dma.hbm_to_vmem [thread:$0]  %s92, 2048, %s94, [#allocation11], 128, 128, 8
    $region45: #{tpu_custom_call.1} parent=1 // pred_fallthru
      _
    // Predicated region
    $region46: #{tpu_custom_call.1} parent=1 // pred_check
      _
    $region47: #{tpu_custom_call.1} parent=1 // pred_check_branch
      %101 = sbr.rel (0) target = $region49
    $region48: #{tpu_custom_call.1} parent=1 // pred_region
      %103 = vsyncadd [#allocation14], 0
      %s104 = sshll.u32 %s11, 4
      %s105 = int_to_ptr.hbm [resolvable:$true] %s104
      %s106 = sshll.u32 [#allocation13], 4
      %s107 = int_to_ptr.vmem [resolvable:$true] %s106
      %112 = dma.hbm_to_vmem [thread:$0]  %s105, 2048, %s107, [#allocation14], 128, 128, 8
    $region49: #{tpu_custom_call.1} parent=1 // pred_fallthru
      _
    // Predicated region
    $region50: #{tpu_custom_call.1} parent=1 // pred_check
      _
    $region51: #{tpu_custom_call.1} parent=1 // pred_check_branch
      %114 = sbr.rel (0) target = $region53
    $region52: #{tpu_custom_call.1} parent=1 // pred_region
      _
    $region53: #{tpu_custom_call.1} parent=1 // pred_fallthru
      _
    // Predicated region
    $region54: #{tpu_custom_call.1} parent=1 // pred_check
      _
    $region55: #{tpu_custom_call.1} parent=1 // pred_check_branch
      %116 = sbr.rel (0) target = $region57
    $region56: #{tpu_custom_call.1} parent=1 // pred_region
      %118 = dma.done [#allocation5], 3072
    $region57: #{tpu_custom_call.1} parent=1 // pred_fallthru
      _
    // Predicated region
    $region58: #{tpu_custom_call.1} parent=1 // pred_check
      _
    $region59: #{tpu_custom_call.1} parent=1 // pred_check_branch
      %120 = sbr.rel (0) target = $region61
    $region60: #{tpu_custom_call.1} parent=1 // pred_region
      %122 = dma.done [#allocation8], 6144
    $region61: #{tpu_custom_call.1} parent=1 // pred_fallthru
      _
    // Predicated region
    $region62: #{tpu_custom_call.1} parent=1 // pred_check
      _
    $region63: #{tpu_custom_call.1} parent=1 // pred_check_branch
      %124 = sbr.rel (0) target = $region65
    $region64: #{tpu_custom_call.1} parent=1 // pred_region
      %126 = dma.done [#allocation8], 12288
    $region65: #{tpu_custom_call.1} parent=1 // pred_fallthru
      _
    // Predicated region
    $region66: #{tpu_custom_call.1} parent=1 // pred_check
      _
    $region67: #{tpu_custom_call.1} parent=1 // pred_check_branch
      %128 = sbr.rel (0) target = $region69
    $region68: #{tpu_custom_call.1} parent=1 // pred_region
      %130 = dma.done [#allocation11], 6144
    $region69: #{tpu_custom_call.1} parent=1 // pred_fallthru
      _
    // Predicated region
    $region70: #{tpu_custom_call.1} parent=1 // pred_check
      _
    $region71: #{tpu_custom_call.1} parent=1 // pred_check_branch
      %132 = sbr.rel (0) target = $region73
    $region72: #{tpu_custom_call.1} parent=1 // pred_region
      %134 = dma.done [#allocation11], 2048
    $region73: #{tpu_custom_call.1} parent=1 // pred_fallthru
      _
    // Predicated region
    $region74: #{tpu_custom_call.1} parent=1 // pred_check
      _
    $region75: #{tpu_custom_call.1} parent=1 // pred_check_branch
      %136 = sbr.rel (0) target = $region77
    $region76: #{tpu_custom_call.1} parent=1 // pred_region
      %138 = dma.done [#allocation14], 2048
    $region77: #{tpu_custom_call.1} parent=1 // pred_fallthru
      _
    %v139 = vld [vmem:[%s1] sm:$0xff]
    %v140 = vlaneseq
    %v141 = vand.u32 %v140, 127
    %vm142 = vcmp.lt.s32.totalorder %v141, 64
    %v143 = vld [vmem:[%s0] sm:$0xff]
    %v144 = vld [vmem:[%s0 + $0x8] sm:$0xff]
    %v145 = vld [vmem:[%s0 + $0x10] sm:$0xff]
    %v146 = vld [vmem:[%s0 + $0x18] sm:$0xff]
    %v147 = vld [vmem:[%s0 + $0x20] sm:$0xff]
    %v148 = vld [vmem:[%s0 + $0x28] sm:$0xff]
    %v149 = vld [vmem:[%s0 + $0x30] sm:$0xff]
    %v150 = vld [vmem:[%s0 + $0x38] sm:$0xff]
    %v151 = vld [vmem:[#allocation4] sm:$0xff]
    %v152 = vld [vmem:[#allocation4 + $0x8] sm:$0xff]
    %v153 = vld [vmem:[#allocation4 + $0x10] sm:$0xff]
    %v154 = vld [vmem:[#allocation4 + $0x18] sm:$0xff]
    %v155 = vld [vmem:[#allocation4 + $0x20] sm:$0xff]
    %v156 = vld [vmem:[#allocation4 + $0x28] sm:$0xff]
    %v157 = vld [vmem:[#allocation4 + $0x30] sm:$0xff]
    %v158 = vld [vmem:[#allocation4 + $0x38] sm:$0xff]
    %v159 = vld [vmem:[#allocation4 + $0x40] sm:$0xff]
    %v160 = vld [vmem:[#allocation4 + $0x48] sm:$0xff]
    %v161 = vld [vmem:[#allocation4 + $0x50] sm:$0xff]
    %v162 = vld [vmem:[#allocation4 + $0x58] sm:$0xff]
    %v163 = vld [vmem:[#allocation4 + $0x60] sm:$0xff]
    %v164 = vld [vmem:[#allocation4 + $0x68] sm:$0xff]
    %v165 = vld [vmem:[#allocation4 + $0x70] sm:$0xff]
    %v166 = vld [vmem:[#allocation4 + $0x78] sm:$0xff]
    %v167 = vld [vmem:[#allocation4 + $0x80] sm:$0xff]
    %v168 = vld [vmem:[#allocation4 + $0x88] sm:$0xff]
    %v169 = vld [vmem:[#allocation4 + $0x90] sm:$0xff]
    %v170 = vld [vmem:[#allocation4 + $0x98] sm:$0xff]
    %v171 = vld [vmem:[#allocation4 + $0xa0] sm:$0xff]
    %v172 = vld [vmem:[#allocation4 + $0xa8] sm:$0xff]
    %v173 = vld [vmem:[#allocation4 + $0xb0] sm:$0xff]
    %v174 = vld [vmem:[#allocation4 + $0xb8] sm:$0xff]
    %vm175 = vcmask 261120
    %v177 = vsel %vm175, %v143, 0
    %v180 = vsel %vm175, %v144, 0
    %v183 = vsel %vm175, %v145, 0
    %v186 = vsel %vm175, %v146, 0
    %v189 = vsel %vm175, %v147, 0
    %v192 = vsel %vm175, %v148, 0
    %v195 = vsel %vm175, %v149, 0
    %v198 = vsel %vm175, %v150, 0
    %200 = vmatpush.msra.mxu0 0.0
    %201 = vmatpush.msra.mxu0 0.0
    %202 = vmatpush.msra.mxu0 0.0
    %203 = vmatpush.msra.mxu0 0.0
    %204 = vmatpush.msra.mxu0 0.0
    %205 = vmatpush.msra.mxu0 0.0
    %206 = vmatpush.msra.mxu0 0.0
    %207 = vmatpush.msra.mxu0 0.0
    %208 = vmatpush.msra.mxu0 0.0
    %209 = vmatpush.msra.mxu0 0.0
    %210 = vmatpush.msra.mxu0 0.0
    %211 = vmatpush.msra.mxu0 0.0
    %212 = vmatpush.msra.mxu0 %v169
    %213 = vmatpush.msra.mxu0 %v163
    %214 = vmatpush.msra.mxu0 %v157
    %215 = vmatpush.msra.mxu0 %v151
    %216 = vmatmul.f32.gmra.mxu0 %v177
    %v217 = vpop.f32.mrf.mxu0
    %v218 = vadd.f32 0.0, %v217
    %219 = vmatmul.f32.gmra.mxu0 %v180
    %v220 = vpop.f32.mrf.mxu0
    %v221 = vadd.f32 0.0, %v220
    %222 = vmatmul.f32.gmra.mxu0 %v183
    %v223 = vpop.f32.mrf.mxu0
    %v224 = vadd.f32 0.0, %v223
    %225 = vmatmul.f32.gmra.mxu0 %v186
    %v226 = vpop.f32.mrf.mxu0
    %v227 = vadd.f32 0.0, %v226
    %228 = vmatmul.f32.gmra.mxu0 %v189
    %v229 = vpop.f32.mrf.mxu0
    %v230 = vadd.f32 0.0, %v229
    %231 = vmatmul.f32.gmra.mxu0 %v192
    %v232 = vpop.f32.mrf.mxu0
    %v233 = vadd.f32 0.0, %v232
    %234 = vmatmul.f32.gmra.mxu0 %v195
    %v235 = vpop.f32.mrf.mxu0
    %v236 = vadd.f32 0.0, %v235
    %237 = vmatmul.f32.gmra.mxu0 %v198
    %v238 = vpop.f32.mrf.mxu0
    %v239 = vadd.f32 0.0, %v238
    %240 = vdwg.mxu0
    %241 = vmatpush.msra.mxu0 0.0
    %242 = vmatpush.msra.mxu0 0.0
    %243 = vmatpush.msra.mxu0 0.0
    %244 = vmatpush.msra.mxu0 0.0
    %245 = vmatpush.msra.mxu0 0.0
    %246 = vmatpush.msra.mxu0 0.0
    %247 = vmatpush.msra.mxu0 0.0
    %248 = vmatpush.msra.mxu0 0.0
    %249 = vmatpush.msra.mxu0 0.0
    %250 = vmatpush.msra.mxu0 0.0
    %251 = vmatpush.msra.mxu0 0.0
    %252 = vmatpush.msra.mxu0 0.0
    %253 = vmatpush.msra.mxu0 %v170
    %254 = vmatpush.msra.mxu0 %v164
    %255 = vmatpush.msra.mxu0 %v158
    %256 = vmatpush.msra.mxu0 %v152
    %257 = vmatmul.f32.gmra.mxu0 %v177
    %v258 = vpop.f32.mrf.mxu0
    %v259 = vadd.f32 0.0, %v258
    %260 = vmatmul.f32.gmra.mxu0 %v180
    %v261 = vpop.f32.mrf.mxu0
    %v262 = vadd.f32 0.0, %v261
    %263 = vmatmul.f32.gmra.mxu0 %v183
    %v264 = vpop.f32.mrf.mxu0
    %v265 = vadd.f32 0.0, %v264
    %266 = vmatmul.f32.gmra.mxu0 %v186
    %v267 = vpop.f32.mrf.mxu0
    %v268 = vadd.f32 0.0, %v267
    %269 = vmatmul.f32.gmra.mxu0 %v189
    %v270 = vpop.f32.mrf.mxu0
    %v271 = vadd.f32 0.0, %v270
    %272 = vmatmul.f32.gmra.mxu0 %v192
    %v273 = vpop.f32.mrf.mxu0
    %v274 = vadd.f32 0.0, %v273
    %275 = vmatmul.f32.gmra.mxu0 %v195
    %v276 = vpop.f32.mrf.mxu0
    %v277 = vadd.f32 0.0, %v276
    %278 = vmatmul.f32.gmra.mxu0 %v198
    %v279 = vpop.f32.mrf.mxu0
    %v280 = vadd.f32 0.0, %v279
    %281 = vdwg.mxu0
    %282 = vmatpush.msra.mxu0 0.0
    %283 = vmatpush.msra.mxu0 0.0
    %284 = vmatpush.msra.mxu0 0.0
    %285 = vmatpush.msra.mxu0 0.0
    %286 = vmatpush.msra.mxu0 0.0
    %287 = vmatpush.msra.mxu0 0.0
    %288 = vmatpush.msra.mxu0 0.0
    %289 = vmatpush.msra.mxu0 0.0
    %290 = vmatpush.msra.mxu0 0.0
    %291 = vmatpush.msra.mxu0 0.0
    %292 = vmatpush.msra.mxu0 0.0
    %293 = vmatpush.msra.mxu0 0.0
    %294 = vmatpush.msra.mxu0 %v171
    %295 = vmatpush.msra.mxu0 %v165
    %296 = vmatpush.msra.mxu0 %v159
    %297 = vmatpush.msra.mxu0 %v153
    %298 = vmatmul.f32.gmra.mxu0 %v177
    %v299 = vpop.f32.mrf.mxu0
    %v300 = vadd.f32 0.0, %v299
    %301 = vmatmul.f32.gmra.mxu0 %v180
    %v302 = vpop.f32.mrf.mxu0
    %v303 = vadd.f32 0.0, %v302
    %304 = vmatmul.f32.gmra.mxu0 %v183
    %v305 = vpop.f32.mrf.mxu0
    %v306 = vadd.f32 0.0, %v305
    %307 = vmatmul.f32.gmra.mxu0 %v186
    %v308 = vpop.f32.mrf.mxu0
    %v309 = vadd.f32 0.0, %v308
    %310 = vmatmul.f32.gmra.mxu0 %v189
    %v311 = vpop.f32.mrf.mxu0
    %v312 = vadd.f32 0.0, %v311
    %313 = vmatmul.f32.gmra.mxu0 %v192
    %v314 = vpop.f32.mrf.mxu0
    %v315 = vadd.f32 0.0, %v314
    %316 = vmatmul.f32.gmra.mxu0 %v195
    %v317 = vpop.f32.mrf.mxu0
    %v318 = vadd.f32 0.0, %v317
    %319 = vmatmul.f32.gmra.mxu0 %v198
    %v320 = vpop.f32.mrf.mxu0
    %v321 = vadd.f32 0.0, %v320
    %322 = vdwg.mxu0
    %323 = vmatpush.msra.mxu0 0.0
    %324 = vmatpush.msra.mxu0 0.0
    %325 = vmatpush.msra.mxu0 0.0
    %326 = vmatpush.msra.mxu0 0.0
    %327 = vmatpush.msra.mxu0 0.0
    %328 = vmatpush.msra.mxu0 0.0
    %329 = vmatpush.msra.mxu0 0.0
    %330 = vmatpush.msra.mxu0 0.0
    %331 = vmatpush.msra.mxu0 0.0
    %332 = vmatpush.msra.mxu0 0.0
    %333 = vmatpush.msra.mxu0 0.0
    %334 = vmatpush.msra.mxu0 0.0
    %335 = vmatpush.msra.mxu0 %v172
    %336 = vmatpush.msra.mxu0 %v166
    %337 = vmatpush.msra.mxu0 %v160
    %338 = vmatpush.msra.mxu0 %v154
    %339 = vmatmul.f32.gmra.mxu0 %v177
    %v340 = vpop.f32.mrf.mxu0
    %v341 = vadd.f32 0.0, %v340
    %342 = vmatmul.f32.gmra.mxu0 %v180
    %v343 = vpop.f32.mrf.mxu0
    %v344 = vadd.f32 0.0, %v343
    %345 = vmatmul.f32.gmra.mxu0 %v183
    %v346 = vpop.f32.mrf.mxu0
    %v347 = vadd.f32 0.0, %v346
    %348 = vmatmul.f32.gmra.mxu0 %v186
    %v349 = vpop.f32.mrf.mxu0
    %v350 = vadd.f32 0.0, %v349
    %351 = vmatmul.f32.gmra.mxu0 %v189
    %v352 = vpop.f32.mrf.mxu0
    %v353 = vadd.f32 0.0, %v352
    %354 = vmatmul.f32.gmra.mxu0 %v192
    %v355 = vpop.f32.mrf.mxu0
    %v356 = vadd.f32 0.0, %v355
    %357 = vmatmul.f32.gmra.mxu0 %v195
    %v358 = vpop.f32.mrf.mxu0
    %v359 = vadd.f32 0.0, %v358
    %360 = vmatmul.f32.gmra.mxu0 %v198
    %v361 = vpop.f32.mrf.mxu0
    %v362 = vadd.f32 0.0, %v361
    %363 = vdwg.mxu0
    %364 = vmatpush.msra.mxu0 0.0
    %365 = vmatpush.msra.mxu0 0.0
    %366 = vmatpush.msra.mxu0 0.0
    %367 = vmatpush.msra.mxu0 0.0
    %368 = vmatpush.msra.mxu0 0.0
    %369 = vmatpush.msra.mxu0 0.0
    %370 = vmatpush.msra.mxu0 0.0
    %371 = vmatpush.msra.mxu0 0.0
    %372 = vmatpush.msra.mxu0 0.0
    %373 = vmatpush.msra.mxu0 0.0
    %374 = vmatpush.msra.mxu0 0.0
    %375 = vmatpush.msra.mxu0 0.0
    %376 = vmatpush.msra.mxu0 %v173
    %377 = vmatpush.msra.mxu0 %v167
    %378 = vmatpush.msra.mxu0 %v161
    %379 = vmatpush.msra.mxu0 %v155
    %380 = vmatmul.f32.gmra.mxu0 %v177
    %v381 = vpop.f32.mrf.mxu0
    %v382 = vadd.f32 0.0, %v381
    %383 = vmatmul.f32.gmra.mxu0 %v180
    %v384 = vpop.f32.mrf.mxu0
    %v385 = vadd.f32 0.0, %v384
    %386 = vmatmul.f32.gmra.mxu0 %v183
    %v387 = vpop.f32.mrf.mxu0
    %v388 = vadd.f32 0.0, %v387
    %389 = vmatmul.f32.gmra.mxu0 %v186
    %v390 = vpop.f32.mrf.mxu0
    %v391 = vadd.f32 0.0, %v390
    %392 = vmatmul.f32.gmra.mxu0 %v189
    %v393 = vpop.f32.mrf.mxu0
    %v394 = vadd.f32 0.0, %v393
    %395 = vmatmul.f32.gmra.mxu0 %v192
    %v396 = vpop.f32.mrf.mxu0
    %v397 = vadd.f32 0.0, %v396
    %398 = vmatmul.f32.gmra.mxu0 %v195
    %v399 = vpop.f32.mrf.mxu0
    %v400 = vadd.f32 0.0, %v399
    %401 = vmatmul.f32.gmra.mxu0 %v198
    %v402 = vpop.f32.mrf.mxu0
    %v403 = vadd.f32 0.0, %v402
    %404 = vdwg.mxu0
    %405 = vmatpush.msra.mxu0 0.0
    %406 = vmatpush.msra.mxu0 0.0
    %407 = vmatpush.msra.mxu0 0.0
    %408 = vmatpush.msra.mxu0 0.0
    %409 = vmatpush.msra.mxu0 0.0
    %410 = vmatpush.msra.mxu0 0.0
    %411 = vmatpush.msra.mxu0 0.0
    %412 = vmatpush.msra.mxu0 0.0
    %413 = vmatpush.msra.mxu0 0.0
    %414 = vmatpush.msra.mxu0 0.0
    %415 = vmatpush.msra.mxu0 0.0
    %416 = vmatpush.msra.mxu0 0.0
    %417 = vmatpush.msra.mxu0 %v174
    %418 = vmatpush.msra.mxu0 %v168
    %419 = vmatpush.msra.mxu0 %v162
    %420 = vmatpush.msra.mxu0 %v156
    %421 = vmatmul.f32.gmra.mxu0 %v177
    %v422 = vpop.f32.mrf.mxu0
    %v423 = vadd.f32 0.0, %v422
    %424 = vmatmul.f32.gmra.mxu0 %v180
    %v425 = vpop.f32.mrf.mxu0
    %v426 = vadd.f32 0.0, %v425
    %427 = vmatmul.f32.gmra.mxu0 %v183
    %v428 = vpop.f32.mrf.mxu0
    %v429 = vadd.f32 0.0, %v428
    %430 = vmatmul.f32.gmra.mxu0 %v186
    %v431 = vpop.f32.mrf.mxu0
    %v432 = vadd.f32 0.0, %v431
    %433 = vmatmul.f32.gmra.mxu0 %v189
    %v434 = vpop.f32.mrf.mxu0
    %v435 = vadd.f32 0.0, %v434
    %436 = vmatmul.f32.gmra.mxu0 %v192
    %v437 = vpop.f32.mrf.mxu0
    %v438 = vadd.f32 0.0, %v437
    %439 = vmatmul.f32.gmra.mxu0 %v195
    %v440 = vpop.f32.mrf.mxu0
    %v441 = vadd.f32 0.0, %v440
    %442 = vmatmul.f32.gmra.mxu0 %v198
    %v443 = vpop.f32.mrf.mxu0
    %v444 = vadd.f32 0.0, %v443
    %445 = vdwg.mxu0
    %v446 = vld [vmem:[%s3] sm:$0x7]
    %v447 = vadd.f32 %v218, %v362
    %v448 = vadd.f32 %v259, %v403
    %v449 = vadd.f32 %v300, %v444
    %v451 = vperm.slane %v446, 0
    %v452 = vperm.slane %v446, 1
    %v453 = vperm.slane %v446, 2
    %v457 = vadd.f32 %v447, %v451
    %v458 = vadd.f32 %v448, %v452
    %v459 = vadd.f32 %v449, %v453
    %460 = vst [vmem:[#allocation2] sm:$0xff] %v457
    %461 = vst [vmem:[#allocation2 + $0x8] sm:$0xff] %v458
    %462 = vst [vmem:[#allocation2 + $0x10] sm:$0xff] %v459
    %v463 = vadd.f32 %v221, %v359
    %v464 = vadd.f32 %v262, %v400
    %v465 = vadd.f32 %v303, %v441
    %v466 = vadd.f32 %v463, %v451
    %v467 = vadd.f32 %v464, %v452
    %v468 = vadd.f32 %v465, %v453
    %469 = vst [vmem:[#allocation2 + $0x18] sm:$0xff] %v466
    %470 = vst [vmem:[#allocation2 + $0x20] sm:$0xff] %v467
    %471 = vst [vmem:[#allocation2 + $0x28] sm:$0xff] %v468
    %v472 = vadd.f32 %v224, %v356
    %v473 = vadd.f32 %v265, %v397
    %v474 = vadd.f32 %v306, %v438
    %v475 = vadd.f32 %v472, %v451
    %v476 = vadd.f32 %v473, %v452
    %v477 = vadd.f32 %v474, %v453
    %478 = vst [vmem:[#allocation2 + $0x30] sm:$0xff] %v475
    %479 = vst [vmem:[#allocation2 + $0x38] sm:$0xff] %v476
    %480 = vst [vmem:[#allocation2 + $0x40] sm:$0xff] %v477
    %v481 = vadd.f32 %v227, %v353
    %v482 = vadd.f32 %v268, %v394
    %v483 = vadd.f32 %v309, %v435
    %v484 = vadd.f32 %v481, %v451
    %v485 = vadd.f32 %v482, %v452
    %v486 = vadd.f32 %v483, %v453
    %487 = vst [vmem:[#allocation2 + $0x48] sm:$0xff] %v484
    %488 = vst [vmem:[#allocation2 + $0x50] sm:$0xff] %v485
    %489 = vst [vmem:[#allocation2 + $0x58] sm:$0xff] %v486
    %v490 = vadd.f32 %v230, %v350
    %v491 = vadd.f32 %v271, %v391
    %v492 = vadd.f32 %v312, %v432
    %v493 = vadd.f32 %v490, %v451
    %v494 = vadd.f32 %v491, %v452
    %v495 = vadd.f32 %v492, %v453
    %496 = vst [vmem:[#allocation2 + $0x60] sm:$0xff] %v493
    %497 = vst [vmem:[#allocation2 + $0x68] sm:$0xff] %v494
    %498 = vst [vmem:[#allocation2 + $0x70] sm:$0xff] %v495
    %v499 = vadd.f32 %v233, %v347
    %v500 = vadd.f32 %v274, %v388
    %v501 = vadd.f32 %v315, %v429
    %v502 = vadd.f32 %v499, %v451
    %v503 = vadd.f32 %v500, %v452
    %v504 = vadd.f32 %v501, %v453
    %505 = vst [vmem:[#allocation2 + $0x78] sm:$0xff] %v502
    %506 = vst [vmem:[#allocation2 + $0x80] sm:$0xff] %v503
    %507 = vst [vmem:[#allocation2 + $0x88] sm:$0xff] %v504
    %v508 = vadd.f32 %v236, %v344
    %v509 = vadd.f32 %v277, %v385
    %v510 = vadd.f32 %v318, %v426
    %v511 = vadd.f32 %v508, %v451
    %v512 = vadd.f32 %v509, %v452
    %v513 = vadd.f32 %v510, %v453
    %514 = vst [vmem:[#allocation2 + $0x90] sm:$0xff] %v511
    %515 = vst [vmem:[#allocation2 + $0x98] sm:$0xff] %v512
    %516 = vst [vmem:[#allocation2 + $0xa0] sm:$0xff] %v513
    %v517 = vadd.f32 %v239, %v341
    %v518 = vadd.f32 %v280, %v382
    %v519 = vadd.f32 %v321, %v423
    %v520 = vadd.f32 %v517, %v451
    %v521 = vadd.f32 %v518, %v452
    %v522 = vadd.f32 %v519, %v453
    %523 = vst [vmem:[#allocation2 + $0xa8] sm:$0xff] %v520
    %524 = vst [vmem:[#allocation2 + $0xb0] sm:$0xff] %v521
    %525 = vst [vmem:[#allocation2 + $0xb8] sm:$0xff] %v522
    %s526 = smul.u32 0, 3
    %s527 = smul.addr %s526, 8
    %s528 = scalar_lea.vmem [#allocation2], %s527
    %v529 = vld [vmem:[%s528] sm:$0xff]
    %v530 = vld [vmem:[%s528 + $0x8] sm:$0xff]
    %v531 = vld [vmem:[%s528 + $0x10] sm:$0xff]
    %v532 = vld [vmem:[#allocation7] sm:$0xff]
    %v533 = vld [vmem:[#allocation7 + $0x8] sm:$0xff]
    %v534 = vld [vmem:[#allocation7 + $0x10] sm:$0xff]
    %v535 = vld [vmem:[#allocation7 + $0x18] sm:$0xff]
    %v536 = vld [vmem:[#allocation7 + $0x20] sm:$0xff]
    %v537 = vld [vmem:[#allocation7 + $0x28] sm:$0xff]
    %v538 = vld [vmem:[#allocation7 + $0x30] sm:$0xff]
    %v539 = vld [vmem:[#allocation7 + $0x38] sm:$0xff]
    %v540 = vld [vmem:[#allocation7 + $0x40] sm:$0xff]
    %v541 = vld [vmem:[#allocation7 + $0x48] sm:$0xff]
    %v542 = vld [vmem:[#allocation7 + $0x50] sm:$0xff]
    %v543 = vld [vmem:[#allocation7 + $0x58] sm:$0xff]
    %v544 = vld [vmem:[#allocation7 + $0x60] sm:$0xff]
    %v545 = vld [vmem:[#allocation7 + $0x68] sm:$0xff]
    %v546 = vld [vmem:[#allocation7 + $0x70] sm:$0xff]
    %v547 = vld [vmem:[#allocation7 + $0x78] sm:$0xff]
    %v548 = vld [vmem:[#allocation7 + $0x80] sm:$0xff]
    %v549 = vld [vmem:[#allocation7 + $0x88] sm:$0xff]
    %v550 = vld [vmem:[#allocation7 + $0x90] sm:$0xff]
    %v551 = vld [vmem:[#allocation7 + $0x98] sm:$0xff]
    %v552 = vld [vmem:[#allocation7 + $0xa0] sm:$0xff]
    %v553 = vld [vmem:[#allocation7 + $0xa8] sm:$0xff]
    %v554 = vld [vmem:[#allocation7 + $0xb0] sm:$0xff]
    %v555 = vld [vmem:[#allocation7 + $0xb8] sm:$0xff]
    %v556 = vld [vmem:[#allocation7 + $0xc0] sm:$0xff]
    %v557 = vld [vmem:[#allocation7 + $0xc8] sm:$0xff]
    %v558 = vld [vmem:[#allocation7 + $0xd0] sm:$0xff]
    %v559 = vld [vmem:[#allocation7 + $0xd8] sm:$0xff]
    %v560 = vld [vmem:[#allocation7 + $0xe0] sm:$0xff]
    %v561 = vld [vmem:[#allocation7 + $0xe8] sm:$0xff]
    %v562 = vld [vmem:[#allocation7 + $0xf0] sm:$0xff]
    %v563 = vld [vmem:[#allocation7 + $0xf8] sm:$0xff]
    %v564 = vld [vmem:[#allocation7 + $0x100] sm:$0xff]
    %v565 = vld [vmem:[#allocation7 + $0x108] sm:$0xff]
    %v566 = vld [vmem:[#allocation7 + $0x110] sm:$0xff]
    %v567 = vld [vmem:[#allocation7 + $0x118] sm:$0xff]
    %v568 = vld [vmem:[#allocation7 + $0x120] sm:$0xff]
    %v569 = vld [vmem:[#allocation7 + $0x128] sm:$0xff]
    %v570 = vld [vmem:[#allocation7 + $0x130] sm:$0xff]
    %v571 = vld [vmem:[#allocation7 + $0x138] sm:$0xff]
    %v572 = vld [vmem:[#allocation7 + $0x140] sm:$0xff]
    %v573 = vld [vmem:[#allocation7 + $0x148] sm:$0xff]
    %v574 = vld [vmem:[#allocation7 + $0x150] sm:$0xff]
    %v575 = vld [vmem:[#allocation7 + $0x158] sm:$0xff]
    %v576 = vld [vmem:[#allocation7 + $0x160] sm:$0xff]
    %v577 = vld [vmem:[#allocation7 + $0x168] sm:$0xff]
    %v578 = vld [vmem:[#allocation7 + $0x170] sm:$0xff]
    %v579 = vld [vmem:[#allocation7 + $0x178] sm:$0xff]
    %580 = vmatpush.msra.mxu0 %v577
    %581 = vmatpush.msra.mxu0 %v574
    %582 = vmatpush.msra.mxu0 %v571
    %583 = vmatpush.msra.mxu0 %v568
    %584 = vmatpush.msra.mxu0 %v565
    %585 = vmatpush.msra.mxu0 %v562
    %586 = vmatpush.msra.mxu0 %v559
    %587 = vmatpush.msra.mxu0 %v556
    %588 = vmatpush.msra.mxu0 %v553
    %589 = vmatpush.msra.mxu0 %v550
    %590 = vmatpush.msra.mxu0 %v547
    %591 = vmatpush.msra.mxu0 %v544
    %592 = vmatpush.msra.mxu0 %v541
    %593 = vmatpush.msra.mxu0 %v538
    %594 = vmatpush.msra.mxu0 %v535
    %595 = vmatpush.msra.mxu0 %v532
    %596 = vmatmul.f32.gmra.mxu0 0.0
    %v597 = vpop.f32.mrf.mxu0
    %v598 = vadd.f32 0.0, %v597
    %599 = vdwg.mxu0
    %600 = vmatpush.msra.mxu0 %v578
    %601 = vmatpush.msra.mxu0 %v575
    %602 = vmatpush.msra.mxu0 %v572
    %603 = vmatpush.msra.mxu0 %v569
    %604 = vmatpush.msra.mxu0 %v566
    %605 = vmatpush.msra.mxu0 %v563
    %606 = vmatpush.msra.mxu0 %v560
    %607 = vmatpush.msra.mxu0 %v557
    %608 = vmatpush.msra.mxu0 %v554
    %609 = vmatpush.msra.mxu0 %v551
    %610 = vmatpush.msra.mxu0 %v548
    %611 = vmatpush.msra.mxu0 %v545
    %612 = vmatpush.msra.mxu0 %v542
    %613 = vmatpush.msra.mxu0 %v539
    %614 = vmatpush.msra.mxu0 %v536
    %615 = vmatpush.msra.mxu0 %v533
    %616 = vmatmul.f32.gmra.mxu0 0.0
    %v617 = vpop.f32.mrf.mxu0
    %v618 = vadd.f32 0.0, %v617
    %619 = vdwg.mxu0
    %620 = vmatpush.msra.mxu0 %v579
    %621 = vmatpush.msra.mxu0 %v576
    %622 = vmatpush.msra.mxu0 %v573
    %623 = vmatpush.msra.mxu0 %v570
    %624 = vmatpush.msra.mxu0 %v567
    %625 = vmatpush.msra.mxu0 %v564
    %626 = vmatpush.msra.mxu0 %v561
    %627 = vmatpush.msra.mxu0 %v558
    %628 = vmatpush.msra.mxu0 %v555
    %629 = vmatpush.msra.mxu0 %v552
    %630 = vmatpush.msra.mxu0 %v549
    %631 = vmatpush.msra.mxu0 %v546
    %632 = vmatpush.msra.mxu0 %v543
    %633 = vmatpush.msra.mxu0 %v540
    %634 = vmatpush.msra.mxu0 %v537
    %635 = vmatpush.msra.mxu0 %v534
    %636 = vmatmul.f32.gmra.mxu0 0.0
    %v637 = vpop.f32.mrf.mxu0
    %v638 = vadd.f32 0.0, %v637
    %639 = vdwg.mxu0
    %v640 = vadd.f32 %v529, %v598
    %v641 = vxor.u32 %v640, 2147483648
    %v642 = vmul.f32 %v641, 1.442695
    %v643 = vpow.pop %v642
    %v644 = vadd.f32 %v643, 1.0
    %v645 = vrcp.pop %v644
    %v646 = vmul.f32 %v644, %v645
    %v647 = vsub.f32 1.0, %v646
    %v648 = vmul.f32 %v645, %v647
    %v649 = vadd.f32 %v645, %v648
    %vm650 = vweird.f32 %v644
    %vm651 = vweird.f32 %v645
    %vm652 = vmor %vm650, %vm651
    %v653 = vsel %vm652, %v645, %v649
    %v654 = vand.u32 2147483647, %v644
    %vm655 = vcmp.eq.f32.partialorder %v654, 8.507059e+37
    %v656 = vand.u32 %v644, 2147483648
    %v657 = vor.u32 1.1754944e-38, %v656
    %v658 = vsel %vm655, %v657, %v653
    %v659 = vmul.f32 1.0, %v658
    %v660 = vadd.f32 %v530, %v618
    %v661 = vxor.u32 %v660, 2147483648
    %v662 = vmul.f32 %v661, 1.442695
    %v663 = vpow.pop %v662
    %v664 = vadd.f32 %v663, 1.0
    %v665 = vrcp.pop %v664
    %v666 = vmul.f32 %v664, %v665
    %v667 = vsub.f32 1.0, %v666
    %v668 = vmul.f32 %v665, %v667
    %v669 = vadd.f32 %v665, %v668
    %vm670 = vweird.f32 %v664
    %vm671 = vweird.f32 %v665
    %vm672 = vmor %vm670, %vm671
    %v673 = vsel %vm672, %v665, %v669
    %v674 = vand.u32 2147483647, %v664
    %vm675 = vcmp.eq.f32.partialorder %v674, 8.507059e+37
    %v676 = vand.u32 %v664, 2147483648
    %v677 = vor.u32 1.1754944e-38, %v676
    %v678 = vsel %vm675, %v677, %v673
    %v679 = vmul.f32 1.0, %v678
    %v680 = vld [vmem:[%s5] sm:$0x1]
    %v682 = vperm.slane %v680, 0
    %v684 = vadd.f32 %v638, %v682
    %v685 = vmul.f32 %v659, %v684
    %v686 = vadd.f32 %v531, %v685
    %v687 = vtanh.pop %v686
    %v688 = vsub.f32 1.0, %v679
    %v689 = vmul.f32 %v688, %v687
    %v690 = vmul.f32 %v679, 0.0
    %v691 = vadd.f32 %v689, %v690
    %v692 = vsel %vm142, 0, 7
    %693 = vset.pattern.permute.xlu0 0
    %694 = vperm.xlu0 %693, %v139
    %v695 = vpop.permute.xlu0 %694
    %vm696 = vcmp.lt.s32.totalorder %v692, %v695
    %v697 = vsel %vm696, %v691, 0.0
    %698 = vst [vmem:[#allocation3] sm:$0xff] %v697
    %s699 = smul.u32 1, 3
    %s700 = smul.addr %s699, 8
    %s701 = scalar_lea.vmem [#allocation2], %s700
    %v702 = vld [vmem:[%s701] sm:$0xff]
    %v703 = vld [vmem:[%s701 + $0x8] sm:$0xff]
    %v704 = vld [vmem:[%s701 + $0x10] sm:$0xff]
    %v705 = vld [vmem:[#allocation7] sm:$0xff]
    %v706 = vld [vmem:[#allocation7 + $0x8] sm:$0xff]
    %v707 = vld [vmem:[#allocation7 + $0x10] sm:$0xff]
    %v708 = vld [vmem:[#allocation7 + $0x18] sm:$0xff]
    %v709 = vld [vmem:[#allocation7 + $0x20] sm:$0xff]
    %v710 = vld [vmem:[#allocation7 + $0x28] sm:$0xff]
    %v711 = vld [vmem:[#allocation7 + $0x30] sm:$0xff]
    %v712 = vld [vmem:[#allocation7 + $0x38] sm:$0xff]
    %v713 = vld [vmem:[#allocation7 + $0x40] sm:$0xff]
    %v714 = vld [vmem:[#allocation7 + $0x48] sm:$0xff]
    %v715 = vld [vmem:[#allocation7 + $0x50] sm:$0xff]
    %v716 = vld [vmem:[#allocation7 + $0x58] sm:$0xff]
    %v717 = vld [vmem:[#allocation7 + $0x60] sm:$0xff]
    %v718 = vld [vmem:[#allocation7 + $0x68] sm:$0xff]
    %v719 = vld [vmem:[#allocation7 + $0x70] sm:$0xff]
    %v720 = vld [vmem:[#allocation7 + $0x78] sm:$0xff]
    %v721 = vld [vmem:[#allocation7 + $0x80] sm:$0xff]
    %v722 = vld [vmem:[#allocation7 + $0x88] sm:$0xff]
    %v723 = vld [vmem:[#allocation7 + $0x90] sm:$0xff]
    %v724 = vld [vmem:[#allocation7 + $0x98] sm:$0xff]
    %v725 = vld [vmem:[#allocation7 + $0xa0] sm:$0xff]
    %v726 = vld [vmem:[#allocation7 + $0xa8] sm:$0xff]
    %v727 = vld [vmem:[#allocation7 + $0xb0] sm:$0xff]
    %v728 = vld [vmem:[#allocation7 + $0xb8] sm:$0xff]
    %v729 = vld [vmem:[#allocation7 + $0xc0] sm:$0xff]
    %v730 = vld [vmem:[#allocation7 + $0xc8] sm:$0xff]
    %v731 = vld [vmem:[#allocation7 + $0xd0] sm:$0xff]
    %v732 = vld [vmem:[#allocation7 + $0xd8] sm:$0xff]
    %v733 = vld [vmem:[#allocation7 + $0xe0] sm:$0xff]
    %v734 = vld [vmem:[#allocation7 + $0xe8] sm:$0xff]
    %v735 = vld [vmem:[#allocation7 + $0xf0] sm:$0xff]
    %v736 = vld [vmem:[#allocation7 + $0xf8] sm:$0xff]
    %v737 = vld [vmem:[#allocation7 + $0x100] sm:$0xff]
    %v738 = vld [vmem:[#allocation7 + $0x108] sm:$0xff]
    %v739 = vld [vmem:[#allocation7 + $0x110] sm:$0xff]
    %v740 = vld [vmem:[#allocation7 + $0x118] sm:$0xff]
    %v741 = vld [vmem:[#allocation7 + $0x120] sm:$0xff]
    %v742 = vld [vmem:[#allocation7 + $0x128] sm:$0xff]
    %v743 = vld [vmem:[#allocation7 + $0x130] sm:$0xff]
    %v744 = vld [vmem:[#allocation7 + $0x138] sm:$0xff]
    %v745 = vld [vmem:[#allocation7 + $0x140] sm:$0xff]
    %v746 = vld [vmem:[#allocation7 + $0x148] sm:$0xff]
    %v747 = vld [vmem:[#allocation7 + $0x150] sm:$0xff]
    %v748 = vld [vmem:[#allocation7 + $0x158] sm:$0xff]
    %v749 = vld [vmem:[#allocation7 + $0x160] sm:$0xff]
    %v750 = vld [vmem:[#allocation7 + $0x168] sm:$0xff]
    %v751 = vld [vmem:[#allocation7 + $0x170] sm:$0xff]
    %v752 = vld [vmem:[#allocation7 + $0x178] sm:$0xff]
    %753 = vmatpush.msra.mxu0 %v750
    %754 = vmatpush.msra.mxu0 %v747
    %755 = vmatpush.msra.mxu0 %v744
    %756 = vmatpush.msra.mxu0 %v741
    %757 = vmatpush.msra.mxu0 %v738
    %758 = vmatpush.msra.mxu0 %v735
    %759 = vmatpush.msra.mxu0 %v732
    %760 = vmatpush.msra.mxu0 %v729
    %761 = vmatpush.msra.mxu0 %v726
    %762 = vmatpush.msra.mxu0 %v723
    %763 = vmatpush.msra.mxu0 %v720
    %764 = vmatpush.msra.mxu0 %v717
    %765 = vmatpush.msra.mxu0 %v714
    %766 = vmatpush.msra.mxu0 %v711
    %767 = vmatpush.msra.mxu0 %v708
    %768 = vmatpush.msra.mxu0 %v705
    %769 = vmatmul.f32.gmra.mxu0 %v697
    %v770 = vpop.f32.mrf.mxu0
    %v771 = vadd.f32 0.0, %v770
    %772 = vdwg.mxu0
    %773 = vmatpush.msra.mxu0 %v751
    %774 = vmatpush.msra.mxu0 %v748
    %775 = vmatpush.msra.mxu0 %v745
    %776 = vmatpush.msra.mxu0 %v742
    %777 = vmatpush.msra.mxu0 %v739
    %778 = vmatpush.msra.mxu0 %v736
    %779 = vmatpush.msra.mxu0 %v733
    %780 = vmatpush.msra.mxu0 %v730
    %781 = vmatpush.msra.mxu0 %v727
    %782 = vmatpush.msra.mxu0 %v724
    %783 = vmatpush.msra.mxu0 %v721
    %784 = vmatpush.msra.mxu0 %v718
    %785 = vmatpush.msra.mxu0 %v715
    %786 = vmatpush.msra.mxu0 %v712
    %787 = vmatpush.msra.mxu0 %v709
    %788 = vmatpush.msra.mxu0 %v706
    %789 = vmatmul.f32.gmra.mxu0 %v697
    %v790 = vpop.f32.mrf.mxu0
    %v791 = vadd.f32 0.0, %v790
    %792 = vdwg.mxu0
    %793 = vmatpush.msra.mxu0 %v752
    %794 = vmatpush.msra.mxu0 %v749
    %795 = vmatpush.msra.mxu0 %v746
    %796 = vmatpush.msra.mxu0 %v743
    %797 = vmatpush.msra.mxu0 %v740
    %798 = vmatpush.msra.mxu0 %v737
    %799 = vmatpush.msra.mxu0 %v734
    %800 = vmatpush.msra.mxu0 %v731
    %801 = vmatpush.msra.mxu0 %v728
    %802 = vmatpush.msra.mxu0 %v725
    %803 = vmatpush.msra.mxu0 %v722
    %804 = vmatpush.msra.mxu0 %v719
    %805 = vmatpush.msra.mxu0 %v716
    %806 = vmatpush.msra.mxu0 %v713
    %807 = vmatpush.msra.mxu0 %v710
    %808 = vmatpush.msra.mxu0 %v707
    %809 = vmatmul.f32.gmra.mxu0 %v697
    %v810 = vpop.f32.mrf.mxu0
    %v811 = vadd.f32 0.0, %v810
    %812 = vdwg.mxu0
    %v813 = vadd.f32 %v702, %v771
    %v814 = vxor.u32 %v813, 2147483648
    %v815 = vmul.f32 %v814, 1.442695
    %v816 = vpow.pop %v815
    %v817 = vadd.f32 %v816, 1.0
    %v818 = vrcp.pop %v817
    %v819 = vmul.f32 %v817, %v818
    %v820 = vsub.f32 1.0, %v819
    %v821 = vmul.f32 %v818, %v820
    %v822 = vadd.f32 %v818, %v821
    %vm823 = vweird.f32 %v817
    %vm824 = vweird.f32 %v818
    %vm825 = vmor %vm823, %vm824
    %v826 = vsel %vm825, %v818, %v822
    %v827 = vand.u32 2147483647, %v817
    %vm828 = vcmp.eq.f32.partialorder %v827, 8.507059e+37
    %v829 = vand.u32 %v817, 2147483648
    %v830 = vor.u32 1.1754944e-38, %v829
    %v831 = vsel %vm828, %v830, %v826
    %v832 = vmul.f32 1.0, %v831
    %v833 = vadd.f32 %v703, %v791
    %v834 = vxor.u32 %v833, 2147483648
    %v835 = vmul.f32 %v834, 1.442695
    %v836 = vpow.pop %v835
    %v837 = vadd.f32 %v836, 1.0
    %v838 = vrcp.pop %v837
    %v839 = vmul.f32 %v837, %v838
    %v840 = vsub.f32 1.0, %v839
    %v841 = vmul.f32 %v838, %v840
    %v842 = vadd.f32 %v838, %v841
    %vm843 = vweird.f32 %v837
    %vm844 = vweird.f32 %v838
    %vm845 = vmor %vm843, %vm844
    %v846 = vsel %vm845, %v838, %v842
    %v847 = vand.u32 2147483647, %v837
    %vm848 = vcmp.eq.f32.partialorder %v847, 8.507059e+37
    %v849 = vand.u32 %v837, 2147483648
    %v850 = vor.u32 1.1754944e-38, %v849
    %v851 = vsel %vm848, %v850, %v846
    %v852 = vmul.f32 1.0, %v851
    %v853 = vld [vmem:[%s5] sm:$0x1]
    %v855 = vperm.slane %v853, 0
    %v857 = vadd.f32 %v811, %v855
    %v858 = vmul.f32 %v832, %v857
    %v859 = vadd.f32 %v704, %v858
    %v860 = vtanh.pop %v859
    %v861 = vsub.f32 1.0, %v852
    %v862 = vmul.f32 %v861, %v860
    %v863 = vmul.f32 %v852, %v697
    %v864 = vadd.f32 %v862, %v863
    %v865 = vsel %vm142, 1, 6
    %vm866 = vcmp.lt.s32.totalorder %v865, %v695
    %v867 = vsel %vm866, %v864, %v697
    %s868 = scalar_lea.vmem [#allocation3], 8
    %869 = vst [vmem:[%s868] sm:$0xff] %v867
    %s870 = smul.u32 2, 3
    %s871 = smul.addr %s870, 8
    %s872 = scalar_lea.vmem [#allocation2], %s871
    %v873 = vld [vmem:[%s872] sm:$0xff]
    %v874 = vld [vmem:[%s872 + $0x8] sm:$0xff]
    %v875 = vld [vmem:[%s872 + $0x10] sm:$0xff]
    %v876 = vld [vmem:[#allocation7] sm:$0xff]
    %v877 = vld [vmem:[#allocation7 + $0x8] sm:$0xff]
    %v878 = vld [vmem:[#allocation7 + $0x10] sm:$0xff]
    %v879 = vld [vmem:[#allocation7 + $0x18] sm:$0xff]
    %v880 = vld [vmem:[#allocation7 + $0x20] sm:$0xff]
    %v881 = vld [vmem:[#allocation7 + $0x28] sm:$0xff]
    %v882 = vld [vmem:[#allocation7 + $0x30] sm:$0xff]
    %v883 = vld [vmem:[#allocation7 + $0x38] sm:$0xff]
    %v884 = vld [vmem:[#allocation7 + $0x40] sm:$0xff]
    %v885 = vld [vmem:[#allocation7 + $0x48] sm:$0xff]
    %v886 = vld [vmem:[#allocation7 + $0x50] sm:$0xff]
    %v887 = vld [vmem:[#allocation7 + $0x58] sm:$0xff]
    %v888 = vld [vmem:[#allocation7 + $0x60] sm:$0xff]
    %v889 = vld [vmem:[#allocation7 + $0x68] sm:$0xff]
    %v890 = vld [vmem:[#allocation7 + $0x70] sm:$0xff]
    %v891 = vld [vmem:[#allocation7 + $0x78] sm:$0xff]
    %v892 = vld [vmem:[#allocation7 + $0x80] sm:$0xff]
    %v893 = vld [vmem:[#allocation7 + $0x88] sm:$0xff]
    %v894 = vld [vmem:[#allocation7 + $0x90] sm:$0xff]
    %v895 = vld [vmem:[#allocation7 + $0x98] sm:$0xff]
    %v896 = vld [vmem:[#allocation7 + $0xa0] sm:$0xff]
    %v897 = vld [vmem:[#allocation7 + $0xa8] sm:$0xff]
    %v898 = vld [vmem:[#allocation7 + $0xb0] sm:$0xff]
    %v899 = vld [vmem:[#allocation7 + $0xb8] sm:$0xff]
    %v900 = vld [vmem:[#allocation7 + $0xc0] sm:$0xff]
    %v901 = vld [vmem:[#allocation7 + $0xc8] sm:$0xff]
    %v902 = vld [vmem:[#allocation7 + $0xd0] sm:$0xff]
    %v903 = vld [vmem:[#allocation7 + $0xd8] sm:$0xff]
    %v904 = vld [vmem:[#allocation7 + $0xe0] sm:$0xff]
    %v905 = vld [vmem:[#allocation7 + $0xe8] sm:$0xff]
    %v906 = vld [vmem:[#allocation7 + $0xf0] sm:$0xff]
    %v907 = vld [vmem:[#allocation7 + $0xf8] sm:$0xff]
    %v908 = vld [vmem:[#allocation7 + $0x100] sm:$0xff]
    %v909 = vld [vmem:[#allocation7 + $0x108] sm:$0xff]
    %v910 = vld [vmem:[#allocation7 + $0x110] sm:$0xff]
    %v911 = vld [vmem:[#allocation7 + $0x118] sm:$0xff]
    %v912 = vld [vmem:[#allocation7 + $0x120] sm:$0xff]
    %v913 = vld [vmem:[#allocation7 + $0x128] sm:$0xff]
    %v914 = vld [vmem:[#allocation7 + $0x130] sm:$0xff]
    %v915 = vld [vmem:[#allocation7 + $0x138] sm:$0xff]
    %v916 = vld [vmem:[#allocation7 + $0x140] sm:$0xff]
    %v917 = vld [vmem:[#allocation7 + $0x148] sm:$0xff]
    %v918 = vld [vmem:[#allocation7 + $0x150] sm:$0xff]
    %v919 = vld [vmem:[#allocation7 + $0x158] sm:$0xff]
    %v920 = vld [vmem:[#allocation7 + $0x160] sm:$0xff]
    %v921 = vld [vmem:[#allocation7 + $0x168] sm:$0xff]
    %v922 = vld [vmem:[#allocation7 + $0x170] sm:$0xff]
    %v923 = vld [vmem:[#allocation7 + $0x178] sm:$0xff]
    %924 = vmatpush.msra.mxu0 %v921
    %925 = vmatpush.msra.mxu0 %v918
    %926 = vmatpush.msra.mxu0 %v915
    %927 = vmatpush.msra.mxu0 %v912
    %928 = vmatpush.msra.mxu0 %v909
    %929 = vmatpush.msra.mxu0 %v906
    %930 = vmatpush.msra.mxu0 %v903
    %931 = vmatpush.msra.mxu0 %v900
    %932 = vmatpush.msra.mxu0 %v897
    %933 = vmatpush.msra.mxu0 %v894
    %934 = vmatpush.msra.mxu0 %v891
    %935 = vmatpush.msra.mxu0 %v888
    %936 = vmatpush.msra.mxu0 %v885
    %937 = vmatpush.msra.mxu0 %v882
    %938 = vmatpush.msra.mxu0 %v879
    %939 = vmatpush.msra.mxu0 %v876
    %940 = vmatmul.f32.gmra.mxu0 %v867
    %v941 = vpop.f32.mrf.mxu0
    %v942 = vadd.f32 0.0, %v941
    %943 = vdwg.mxu0
    %944 = vmatpush.msra.mxu0 %v922
    %945 = vmatpush.msra.mxu0 %v919
    %946 = vmatpush.msra.mxu0 %v916
    %947 = vmatpush.msra.mxu0 %v913
    %948 = vmatpush.msra.mxu0 %v910
    %949 = vmatpush.msra.mxu0 %v907
    %950 = vmatpush.msra.mxu0 %v904
    %951 = vmatpush.msra.mxu0 %v901
    %952 = vmatpush.msra.mxu0 %v898
    %953 = vmatpush.msra.mxu0 %v895
    %954 = vmatpush.msra.mxu0 %v892
    %955 = vmatpush.msra.mxu0 %v889
    %956 = vmatpush.msra.mxu0 %v886
    %957 = vmatpush.msra.mxu0 %v883
    %958 = vmatpush.msra.mxu0 %v880
    %959 = vmatpush.msra.mxu0 %v877
    %960 = vmatmul.f32.gmra.mxu0 %v867
    %v961 = vpop.f32.mrf.mxu0
    %v962 = vadd.f32 0.0, %v961
    %963 = vdwg.mxu0
    %964 = vmatpush.msra.mxu0 %v923
    %965 = vmatpush.msra.mxu0 %v920
    %966 = vmatpush.msra.mxu0 %v917
    %967 = vmatpush.msra.mxu0 %v914
    %968 = vmatpush.msra.mxu0 %v911
    %969 = vmatpush.msra.mxu0 %v908
    %970 = vmatpush.msra.mxu0 %v905
    %971 = vmatpush.msra.mxu0 %v902
    %972 = vmatpush.msra.mxu0 %v899
    %973 = vmatpush.msra.mxu0 %v896
    %974 = vmatpush.msra.mxu0 %v893
    %975 = vmatpush.msra.mxu0 %v890
    %976 = vmatpush.msra.mxu0 %v887
    %977 = vmatpush.msra.mxu0 %v884
    %978 = vmatpush.msra.mxu0 %v881
    %979 = vmatpush.msra.mxu0 %v878
    %980 = vmatmul.f32.gmra.mxu0 %v867
    %v981 = vpop.f32.mrf.mxu0
    %v982 = vadd.f32 0.0, %v981
    %983 = vdwg.mxu0
    %v984 = vadd.f32 %v873, %v942
    %v985 = vxor.u32 %v984, 2147483648
    %v986 = vmul.f32 %v985, 1.442695
    %v987 = vpow.pop %v986
    %v988 = vadd.f32 %v987, 1.0
    %v989 = vrcp.pop %v988
    %v990 = vmul.f32 %v988, %v989
    %v991 = vsub.f32 1.0, %v990
    %v992 = vmul.f32 %v989, %v991
    %v993 = vadd.f32 %v989, %v992
    %vm994 = vweird.f32 %v988
    %vm995 = vweird.f32 %v989
    %vm996 = vmor %vm994, %vm995
    %v997 = vsel %vm996, %v989, %v993
    %v998 = vand.u32 2147483647, %v988
    %vm999 = vcmp.eq.f32.partialorder %v998, 8.507059e+37
    %v1000 = vand.u32 %v988, 2147483648
    %v1001 = vor.u32 1.1754944e-38, %v1000
    %v1002 = vsel %vm999, %v1001, %v997
    %v1003 = vmul.f32 1.0, %v1002
    %v1004 = vadd.f32 %v874, %v962
    %v1005 = vxor.u32 %v1004, 2147483648
    %v1006 = vmul.f32 %v1005, 1.442695
    %v1007 = vpow.pop %v1006
    %v1008 = vadd.f32 %v1007, 1.0
    %v1009 = vrcp.pop %v1008
    %v1010 = vmul.f32 %v1008, %v1009
    %v1011 = vsub.f32 1.0, %v1010
    %v1012 = vmul.f32 %v1009, %v1011
    %v1013 = vadd.f32 %v1009, %v1012
    %vm1014 = vweird.f32 %v1008
    %vm1015 = vweird.f32 %v1009
    %vm1016 = vmor %vm1014, %vm1015
    %v1017 = vsel %vm1016, %v1009, %v1013
    %v1018 = vand.u32 2147483647, %v1008
    %vm1019 = vcmp.eq.f32.partialorder %v1018, 8.507059e+37
    %v1020 = vand.u32 %v1008, 2147483648
    %v1021 = vor.u32 1.1754944e-38, %v1020
    %v1022 = vsel %vm1019, %v1021, %v1017
    %v1023 = vmul.f32 1.0, %v1022
    %v1024 = vld [vmem:[%s5] sm:$0x1]
    %v1026 = vperm.slane %v1024, 0
    %v1028 = vadd.f32 %v982, %v1026
    %v1029 = vmul.f32 %v1003, %v1028
    %v1030 = vadd.f32 %v875, %v1029
    %v1031 = vtanh.pop %v1030
    %v1032 = vsub.f32 1.0, %v1023
    %v1033 = vmul.f32 %v1032, %v1031
    %v1034 = vmul.f32 %v1023, %v867
    %v1035 = vadd.f32 %v1033, %v1034
    %v1036 = vsel %vm142, 2, 5
    %vm1037 = vcmp.lt.s32.totalorder %v1036, %v695
    %v1038 = vsel %vm1037, %v1035, %v867
    %s1039 = scalar_lea.vmem [#allocation3], 16
    %1040 = vst [vmem:[%s1039] sm:$0xff] %v1038
    %s1041 = smul.u32 3, 3
    %s1042 = smul.addr %s1041, 8
    %s1043 = scalar_lea.vmem [#allocation2], %s1042
    %v1044 = vld [vmem:[%s1043] sm:$0xff]
    %v1045 = vld [vmem:[%s1043 + $0x8] sm:$0xff]
    %v1046 = vld [vmem:[%s1043 + $0x10] sm:$0xff]
    %v1047 = vld [vmem:[#allocation7] sm:$0xff]
    %v1048 = vld [vmem:[#allocation7 + $0x8] sm:$0xff]
    %v1049 = vld [vmem:[#allocation7 + $0x10] sm:$0xff]
    %v1050 = vld [vmem:[#allocation7 + $0x18] sm:$0xff]
    %v1051 = vld [vmem:[#allocation7 + $0x20] sm:$0xff]
    %v1052 = vld [vmem:[#allocation7 + $0x28] sm:$0xff]
    %v1053 = vld [vmem:[#allocation7 + $0x30] sm:$0xff]
    %v1054 = vld [vmem:[#allocation7 + $0x38] sm:$0xff]
    %v1055 = vld [vmem:[#allocation7 + $0x40] sm:$0xff]
    %v1056 = vld [vmem:[#allocation7 + $0x48] sm:$0xff]
    %v1057 = vld [vmem:[#allocation7 + $0x50] sm:$0xff]
    %v1058 = vld [vmem:[#allocation7 + $0x58] sm:$0xff]
    %v1059 = vld [vmem:[#allocation7 + $0x60] sm:$0xff]
    %v1060 = vld [vmem:[#allocation7 + $0x68] sm:$0xff]
    %v1061 = vld [vmem:[#allocation7 + $0x70] sm:$0xff]
    %v1062 = vld [vmem:[#allocation7 + $0x78] sm:$0xff]
    %v1063 = vld [vmem:[#allocation7 + $0x80] sm:$0xff]
    %v1064 = vld [vmem:[#allocation7 + $0x88] sm:$0xff]
    %v1065 = vld [vmem:[#allocation7 + $0x90] sm:$0xff]
    %v1066 = vld [vmem:[#allocation7 + $0x98] sm:$0xff]
    %v1067 = vld [vmem:[#allocation7 + $0xa0] sm:$0xff]
    %v1068 = vld [vmem:[#allocation7 + $0xa8] sm:$0xff]
    %v1069 = vld [vmem:[#allocation7 + $0xb0] sm:$0xff]
    %v1070 = vld [vmem:[#allocation7 + $0xb8] sm:$0xff]
    %v1071 = vld [vmem:[#allocation7 + $0xc0] sm:$0xff]
    %v1072 = vld [vmem:[#allocation7 + $0xc8] sm:$0xff]
    %v1073 = vld [vmem:[#allocation7 + $0xd0] sm:$0xff]
    %v1074 = vld [vmem:[#allocation7 + $0xd8] sm:$0xff]
    %v1075 = vld [vmem:[#allocation7 + $0xe0] sm:$0xff]
    %v1076 = vld [vmem:[#allocation7 + $0xe8] sm:$0xff]
    %v1077 = vld [vmem:[#allocation7 + $0xf0] sm:$0xff]
    %v1078 = vld [vmem:[#allocation7 + $0xf8] sm:$0xff]
    %v1079 = vld [vmem:[#allocation7 + $0x100] sm:$0xff]
    %v1080 = vld [vmem:[#allocation7 + $0x108] sm:$0xff]
    %v1081 = vld [vmem:[#allocation7 + $0x110] sm:$0xff]
    %v1082 = vld [vmem:[#allocation7 + $0x118] sm:$0xff]
    %v1083 = vld [vmem:[#allocation7 + $0x120] sm:$0xff]
    %v1084 = vld [vmem:[#allocation7 + $0x128] sm:$0xff]
    %v1085 = vld [vmem:[#allocation7 + $0x130] sm:$0xff]
    %v1086 = vld [vmem:[#allocation7 + $0x138] sm:$0xff]
    %v1087 = vld [vmem:[#allocation7 + $0x140] sm:$0xff]
    %v1088 = vld [vmem:[#allocation7 + $0x148] sm:$0xff]
    %v1089 = vld [vmem:[#allocation7 + $0x150] sm:$0xff]
    %v1090 = vld [vmem:[#allocation7 + $0x158] sm:$0xff]
    %v1091 = vld [vmem:[#allocation7 + $0x160] sm:$0xff]
    %v1092 = vld [vmem:[#allocation7 + $0x168] sm:$0xff]
    %v1093 = vld [vmem:[#allocation7 + $0x170] sm:$0xff]
    %v1094 = vld [vmem:[#allocation7 + $0x178] sm:$0xff]
    %1095 = vmatpush.msra.mxu0 %v1092
    %1096 = vmatpush.msra.mxu0 %v1089
    %1097 = vmatpush.msra.mxu0 %v1086
    %1098 = vmatpush.msra.mxu0 %v1083
    %1099 = vmatpush.msra.mxu0 %v1080
    %1100 = vmatpush.msra.mxu0 %v1077
    %1101 = vmatpush.msra.mxu0 %v1074
    %1102 = vmatpush.msra.mxu0 %v1071
    %1103 = vmatpush.msra.mxu0 %v1068
    %1104 = vmatpush.msra.mxu0 %v1065
    %1105 = vmatpush.msra.mxu0 %v1062
    %1106 = vmatpush.msra.mxu0 %v1059
    %1107 = vmatpush.msra.mxu0 %v1056
    %1108 = vmatpush.msra.mxu0 %v1053
    %1109 = vmatpush.msra.mxu0 %v1050
    %1110 = vmatpush.msra.mxu0 %v1047
    %1111 = vmatmul.f32.gmra.mxu0 %v1038
    %v1112 = vpop.f32.mrf.mxu0
    %v1113 = vadd.f32 0.0, %v1112
    %1114 = vdwg.mxu0
    %1115 = vmatpush.msra.mxu0 %v1093
    %1116 = vmatpush.msra.mxu0 %v1090
    %1117 = vmatpush.msra.mxu0 %v1087
    %1118 = vmatpush.msra.mxu0 %v1084
    %1119 = vmatpush.msra.mxu0 %v1081
    %1120 = vmatpush.msra.mxu0 %v1078
    %1121 = vmatpush.msra.mxu0 %v1075
    %1122 = vmatpush.msra.mxu0 %v1072
    %1123 = vmatpush.msra.mxu0 %v1069
    %1124 = vmatpush.msra.mxu0 %v1066
    %1125 = vmatpush.msra.mxu0 %v1063
    %1126 = vmatpush.msra.mxu0 %v1060
    %1127 = vmatpush.msra.mxu0 %v1057
    %1128 = vmatpush.msra.mxu0 %v1054
    %1129 = vmatpush.msra.mxu0 %v1051
    %1130 = vmatpush.msra.mxu0 %v1048
    %1131 = vmatmul.f32.gmra.mxu0 %v1038
    %v1132 = vpop.f32.mrf.mxu0
    %v1133 = vadd.f32 0.0, %v1132
    %1134 = vdwg.mxu0
    %1135 = vmatpush.msra.mxu0 %v1094
    %1136 = vmatpush.msra.mxu0 %v1091
    %1137 = vmatpush.msra.mxu0 %v1088
    %1138 = vmatpush.msra.mxu0 %v1085
    %1139 = vmatpush.msra.mxu0 %v1082
    %1140 = vmatpush.msra.mxu0 %v1079
    %1141 = vmatpush.msra.mxu0 %v1076
    %1142 = vmatpush.msra.mxu0 %v1073
    %1143 = vmatpush.msra.mxu0 %v1070
    %1144 = vmatpush.msra.mxu0 %v1067
    %1145 = vmatpush.msra.mxu0 %v1064
    %1146 = vmatpush.msra.mxu0 %v1061
    %1147 = vmatpush.msra.mxu0 %v1058
    %1148 = vmatpush.msra.mxu0 %v1055
    %1149 = vmatpush.msra.mxu0 %v1052
    %1150 = vmatpush.msra.mxu0 %v1049
    %1151 = vmatmul.f32.gmra.mxu0 %v1038
    %v1152 = vpop.f32.mrf.mxu0
    %v1153 = vadd.f32 0.0, %v1152
    %1154 = vdwg.mxu0
    %v1155 = vadd.f32 %v1044, %v1113
    %v1156 = vxor.u32 %v1155, 2147483648
    %v1157 = vmul.f32 %v1156, 1.442695
    %v1158 = vpow.pop %v1157
    %v1159 = vadd.f32 %v1158, 1.0
    %v1160 = vrcp.pop %v1159
    %v1161 = vmul.f32 %v1159, %v1160
    %v1162 = vsub.f32 1.0, %v1161
    %v1163 = vmul.f32 %v1160, %v1162
    %v1164 = vadd.f32 %v1160, %v1163
    %vm1165 = vweird.f32 %v1159
    %vm1166 = vweird.f32 %v1160
    %vm1167 = vmor %vm1165, %vm1166
    %v1168 = vsel %vm1167, %v1160, %v1164
    %v1169 = vand.u32 2147483647, %v1159
    %vm1170 = vcmp.eq.f32.partialorder %v1169, 8.507059e+37
    %v1171 = vand.u32 %v1159, 2147483648
    %v1172 = vor.u32 1.1754944e-38, %v1171
    %v1173 = vsel %vm1170, %v1172, %v1168
    %v1174 = vmul.f32 1.0, %v1173
    %v1175 = vadd.f32 %v1045, %v1133
    %v1176 = vxor.u32 %v1175, 2147483648
    %v1177 = vmul.f32 %v1176, 1.442695
    %v1178 = vpow.pop %v1177
    %v1179 = vadd.f32 %v1178, 1.0
    %v1180 = vrcp.pop %v1179
    %v1181 = vmul.f32 %v1179, %v1180
    %v1182 = vsub.f32 1.0, %v1181
    %v1183 = vmul.f32 %v1180, %v1182
    %v1184 = vadd.f32 %v1180, %v1183
    %vm1185 = vweird.f32 %v1179
    %vm1186 = vweird.f32 %v1180
    %vm1187 = vmor %vm1185, %vm1186
    %v1188 = vsel %vm1187, %v1180, %v1184
    %v1189 = vand.u32 2147483647, %v1179
    %vm1190 = vcmp.eq.f32.partialorder %v1189, 8.507059e+37
    %v1191 = vand.u32 %v1179, 2147483648
    %v1192 = vor.u32 1.1754944e-38, %v1191
    %v1193 = vsel %vm1190, %v1192, %v1188
    %v1194 = vmul.f32 1.0, %v1193
    %v1195 = vld [vmem:[%s5] sm:$0x1]
    %v1197 = vperm.slane %v1195, 0
    %v1199 = vadd.f32 %v1153, %v1197
    %v1200 = vmul.f32 %v1174, %v1199
    %v1201 = vadd.f32 %v1046, %v1200
    %v1202 = vtanh.pop %v1201
    %v1203 = vsub.f32 1.0, %v1194
    %v1204 = vmul.f32 %v1203, %v1202
    %v1205 = vmul.f32 %v1194, %v1038
    %v1206 = vadd.f32 %v1204, %v1205
    %v1207 = vsel %vm142, 3, 4
    %vm1208 = vcmp.lt.s32.totalorder %v1207, %v695
    %v1209 = vsel %vm1208, %v1206, %v1038
    %s1210 = scalar_lea.vmem [#allocation3], 24
    %1211 = vst [vmem:[%s1210] sm:$0xff] %v1209
    %s1212 = smul.u32 4, 3
    %s1213 = smul.addr %s1212, 8
    %s1214 = scalar_lea.vmem [#allocation2], %s1213
    %v1215 = vld [vmem:[%s1214] sm:$0xff]
    %v1216 = vld [vmem:[%s1214 + $0x8] sm:$0xff]
    %v1217 = vld [vmem:[%s1214 + $0x10] sm:$0xff]
    %v1218 = vld [vmem:[#allocation7] sm:$0xff]
    %v1219 = vld [vmem:[#allocation7 + $0x8] sm:$0xff]
    %v1220 = vld [vmem:[#allocation7 + $0x10] sm:$0xff]
    %v1221 = vld [vmem:[#allocation7 + $0x18] sm:$0xff]
    %v1222 = vld [vmem:[#allocation7 + $0x20] sm:$0xff]
    %v1223 = vld [vmem:[#allocation7 + $0x28] sm:$0xff]
    %v1224 = vld [vmem:[#allocation7 + $0x30] sm:$0xff]
    %v1225 = vld [vmem:[#allocation7 + $0x38] sm:$0xff]
    %v1226 = vld [vmem:[#allocation7 + $0x40] sm:$0xff]
    %v1227 = vld [vmem:[#allocation7 + $0x48] sm:$0xff]
    %v1228 = vld [vmem:[#allocation7 + $0x50] sm:$0xff]
    %v1229 = vld [vmem:[#allocation7 + $0x58] sm:$0xff]
    %v1230 = vld [vmem:[#allocation7 + $0x60] sm:$0xff]
    %v1231 = vld [vmem:[#allocation7 + $0x68] sm:$0xff]
    %v1232 = vld [vmem:[#allocation7 + $0x70] sm:$0xff]
    %v1233 = vld [vmem:[#allocation7 + $0x78] sm:$0xff]
    %v1234 = vld [vmem:[#allocation7 + $0x80] sm:$0xff]
    %v1235 = vld [vmem:[#allocation7 + $0x88] sm:$0xff]
    %v1236 = vld [vmem:[#allocation7 + $0x90] sm:$0xff]
    %v1237 = vld [vmem:[#allocation7 + $0x98] sm:$0xff]
    %v1238 = vld [vmem:[#allocation7 + $0xa0] sm:$0xff]
    %v1239 = vld [vmem:[#allocation7 + $0xa8] sm:$0xff]
    %v1240 = vld [vmem:[#allocation7 + $0xb0] sm:$0xff]
    %v1241 = vld [vmem:[#allocation7 + $0xb8] sm:$0xff]
    %v1242 = vld [vmem:[#allocation7 + $0xc0] sm:$0xff]
    %v1243 = vld [vmem:[#allocation7 + $0xc8] sm:$0xff]
    %v1244 = vld [vmem:[#allocation7 + $0xd0] sm:$0xff]
    %v1245 = vld [vmem:[#allocation7 + $0xd8] sm:$0xff]
    %v1246 = vld [vmem:[#allocation7 + $0xe0] sm:$0xff]
    %v1247 = vld [vmem:[#allocation7 + $0xe8] sm:$0xff]
    %v1248 = vld [vmem:[#allocation7 + $0xf0] sm:$0xff]
    %v1249 = vld [vmem:[#allocation7 + $0xf8] sm:$0xff]
    %v1250 = vld [vmem:[#allocation7 + $0x100] sm:$0xff]
    %v1251 = vld [vmem:[#allocation7 + $0x108] sm:$0xff]
    %v1252 = vld [vmem:[#allocation7 + $0x110] sm:$0xff]
    %v1253 = vld [vmem:[#allocation7 + $0x118] sm:$0xff]
    %v1254 = vld [vmem:[#allocation7 + $0x120] sm:$0xff]
    %v1255 = vld [vmem:[#allocation7 + $0x128] sm:$0xff]
    %v1256 = vld [vmem:[#allocation7 + $0x130] sm:$0xff]
    %v1257 = vld [vmem:[#allocation7 + $0x138] sm:$0xff]
    %v1258 = vld [vmem:[#allocation7 + $0x140] sm:$0xff]
    %v1259 = vld [vmem:[#allocation7 + $0x148] sm:$0xff]
    %v1260 = vld [vmem:[#allocation7 + $0x150] sm:$0xff]
    %v1261 = vld [vmem:[#allocation7 + $0x158] sm:$0xff]
    %v1262 = vld [vmem:[#allocation7 + $0x160] sm:$0xff]
    %v1263 = vld [vmem:[#allocation7 + $0x168] sm:$0xff]
    %v1264 = vld [vmem:[#allocation7 + $0x170] sm:$0xff]
    %v1265 = vld [vmem:[#allocation7 + $0x178] sm:$0xff]
    %1266 = vmatpush.msra.mxu0 %v1263
    %1267 = vmatpush.msra.mxu0 %v1260
    %1268 = vmatpush.msra.mxu0 %v1257
    %1269 = vmatpush.msra.mxu0 %v1254
    %1270 = vmatpush.msra.mxu0 %v1251
    %1271 = vmatpush.msra.mxu0 %v1248
    %1272 = vmatpush.msra.mxu0 %v1245
    %1273 = vmatpush.msra.mxu0 %v1242
    %1274 = vmatpush.msra.mxu0 %v1239
    %1275 = vmatpush.msra.mxu0 %v1236
    %1276 = vmatpush.msra.mxu0 %v1233
    %1277 = vmatpush.msra.mxu0 %v1230
    %1278 = vmatpush.msra.mxu0 %v1227
    %1279 = vmatpush.msra.mxu0 %v1224
    %1280 = vmatpush.msra.mxu0 %v1221
    %1281 = vmatpush.msra.mxu0 %v1218
    %1282 = vmatmul.f32.gmra.mxu0 %v1209
    %v1283 = vpop.f32.mrf.mxu0
    %v1284 = vadd.f32 0.0, %v1283
    %1285 = vdwg.mxu0
    %1286 = vmatpush.msra.mxu0 %v1264
    %1287 = vmatpush.msra.mxu0 %v1261
    %1288 = vmatpush.msra.mxu0 %v1258
    %1289 = vmatpush.msra.mxu0 %v1255
    %1290 = vmatpush.msra.mxu0 %v1252
    %1291 = vmatpush.msra.mxu0 %v1249
    %1292 = vmatpush.msra.mxu0 %v1246
    %1293 = vmatpush.msra.mxu0 %v1243
    %1294 = vmatpush.msra.mxu0 %v1240
    %1295 = vmatpush.msra.mxu0 %v1237
    %1296 = vmatpush.msra.mxu0 %v1234
    %1297 = vmatpush.msra.mxu0 %v1231
    %1298 = vmatpush.msra.mxu0 %v1228
    %1299 = vmatpush.msra.mxu0 %v1225
    %1300 = vmatpush.msra.mxu0 %v1222
    %1301 = vmatpush.msra.mxu0 %v1219
    %1302 = vmatmul.f32.gmra.mxu0 %v1209
    %v1303 = vpop.f32.mrf.mxu0
    %v1304 = vadd.f32 0.0, %v1303
    %1305 = vdwg.mxu0
    %1306 = vmatpush.msra.mxu0 %v1265
    %1307 = vmatpush.msra.mxu0 %v1262
    %1308 = vmatpush.msra.mxu0 %v1259
    %1309 = vmatpush.msra.mxu0 %v1256
    %1310 = vmatpush.msra.mxu0 %v1253
    %1311 = vmatpush.msra.mxu0 %v1250
    %1312 = vmatpush.msra.mxu0 %v1247
    %1313 = vmatpush.msra.mxu0 %v1244
    %1314 = vmatpush.msra.mxu0 %v1241
    %1315 = vmatpush.msra.mxu0 %v1238
    %1316 = vmatpush.msra.mxu0 %v1235
    %1317 = vmatpush.msra.mxu0 %v1232
    %1318 = vmatpush.msra.mxu0 %v1229
    %1319 = vmatpush.msra.mxu0 %v1226
    %1320 = vmatpush.msra.mxu0 %v1223
    %1321 = vmatpush.msra.mxu0 %v1220
    %1322 = vmatmul.f32.gmra.mxu0 %v1209
    %v1323 = vpop.f32.mrf.mxu0
    %v1324 = vadd.f32 0.0, %v1323
    %1325 = vdwg.mxu0
    %v1326 = vadd.f32 %v1215, %v1284
    %v1327 = vxor.u32 %v1326, 2147483648
    %v1328 = vmul.f32 %v1327, 1.442695
    %v1329 = vpow.pop %v1328
    %v1330 = vadd.f32 %v1329, 1.0
    %v1331 = vrcp.pop %v1330
    %v1332 = vmul.f32 %v1330, %v1331
    %v1333 = vsub.f32 1.0, %v1332
    %v1334 = vmul.f32 %v1331, %v1333
    %v1335 = vadd.f32 %v1331, %v1334
    %vm1336 = vweird.f32 %v1330
    %vm1337 = vweird.f32 %v1331
    %vm1338 = vmor %vm1336, %vm1337
    %v1339 = vsel %vm1338, %v1331, %v1335
    %v1340 = vand.u32 2147483647, %v1330
    %vm1341 = vcmp.eq.f32.partialorder %v1340, 8.507059e+37
    %v1342 = vand.u32 %v1330, 2147483648
    %v1343 = vor.u32 1.1754944e-38, %v1342
    %v1344 = vsel %vm1341, %v1343, %v1339
    %v1345 = vmul.f32 1.0, %v1344
    %v1346 = vadd.f32 %v1216, %v1304
    %v1347 = vxor.u32 %v1346, 2147483648
    %v1348 = vmul.f32 %v1347, 1.442695
    %v1349 = vpow.pop %v1348
    %v1350 = vadd.f32 %v1349, 1.0
    %v1351 = vrcp.pop %v1350
    %v1352 = vmul.f32 %v1350, %v1351
    %v1353 = vsub.f32 1.0, %v1352
    %v1354 = vmul.f32 %v1351, %v1353
    %v1355 = vadd.f32 %v1351, %v1354
    %vm1356 = vweird.f32 %v1350
    %vm1357 = vweird.f32 %v1351
    %vm1358 = vmor %vm1356, %vm1357
    %v1359 = vsel %vm1358, %v1351, %v1355
    %v1360 = vand.u32 2147483647, %v1350
    %vm1361 = vcmp.eq.f32.partialorder %v1360, 8.507059e+37
    %v1362 = vand.u32 %v1350, 2147483648
    %v1363 = vor.u32 1.1754944e-38, %v1362
    %v1364 = vsel %vm1361, %v1363, %v1359
    %v1365 = vmul.f32 1.0, %v1364
    %v1366 = vld [vmem:[%s5] sm:$0x1]
    %v1368 = vperm.slane %v1366, 0
    %v1370 = vadd.f32 %v1324, %v1368
    %v1371 = vmul.f32 %v1345, %v1370
    %v1372 = vadd.f32 %v1217, %v1371
    %v1373 = vtanh.pop %v1372
    %v1374 = vsub.f32 1.0, %v1365
    %v1375 = vmul.f32 %v1374, %v1373
    %v1376 = vmul.f32 %v1365, %v1209
    %v1377 = vadd.f32 %v1375, %v1376
    %v1378 = vsel %vm142, 4, 3
    %vm1379 = vcmp.lt.s32.totalorder %v1378, %v695
    %v1380 = vsel %vm1379, %v1377, %v1209
    %s1381 = scalar_lea.vmem [#allocation3], 32
    %1382 = vst [vmem:[%s1381] sm:$0xff] %v1380
    %s1383 = smul.u32 5, 3
    %s1384 = smul.addr %s1383, 8
    %s1385 = scalar_lea.vmem [#allocation2], %s1384
    %v1386 = vld [vmem:[%s1385] sm:$0xff]
    %v1387 = vld [vmem:[%s1385 + $0x8] sm:$0xff]
    %v1388 = vld [vmem:[%s1385 + $0x10] sm:$0xff]
    %v1389 = vld [vmem:[#allocation7] sm:$0xff]
    %v1390 = vld [vmem:[#allocation7 + $0x8] sm:$0xff]
    %v1391 = vld [vmem:[#allocation7 + $0x10] sm:$0xff]
    %v1392 = vld [vmem:[#allocation7 + $0x18] sm:$0xff]
    %v1393 = vld [vmem:[#allocation7 + $0x20] sm:$0xff]
    %v1394 = vld [vmem:[#allocation7 + $0x28] sm:$0xff]
    %v1395 = vld [vmem:[#allocation7 + $0x30] sm:$0xff]
    %v1396 = vld [vmem:[#allocation7 + $0x38] sm:$0xff]
    %v1397 = vld [vmem:[#allocation7 + $0x40] sm:$0xff]
    %v1398 = vld [vmem:[#allocation7 + $0x48] sm:$0xff]
    %v1399 = vld [vmem:[#allocation7 + $0x50] sm:$0xff]
    %v1400 = vld [vmem:[#allocation7 + $0x58] sm:$0xff]
    %v1401 = vld [vmem:[#allocation7 + $0x60] sm:$0xff]
    %v1402 = vld [vmem:[#allocation7 + $0x68] sm:$0xff]
    %v1403 = vld [vmem:[#allocation7 + $0x70] sm:$0xff]
    %v1404 = vld [vmem:[#allocation7 + $0x78] sm:$0xff]
    %v1405 = vld [vmem:[#allocation7 + $0x80] sm:$0xff]
    %v1406 = vld [vmem:[#allocation7 + $0x88] sm:$0xff]
    %v1407 = vld [vmem:[#allocation7 + $0x90] sm:$0xff]
    %v1408 = vld [vmem:[#allocation7 + $0x98] sm:$0xff]
    %v1409 = vld [vmem:[#allocation7 + $0xa0] sm:$0xff]
    %v1410 = vld [vmem:[#allocation7 + $0xa8] sm:$0xff]
    %v1411 = vld [vmem:[#allocation7 + $0xb0] sm:$0xff]
    %v1412 = vld [vmem:[#allocation7 + $0xb8] sm:$0xff]
    %v1413 = vld [vmem:[#allocation7 + $0xc0] sm:$0xff]
    %v1414 = vld [vmem:[#allocation7 + $0xc8] sm:$0xff]
    %v1415 = vld [vmem:[#allocation7 + $0xd0] sm:$0xff]
    %v1416 = vld [vmem:[#allocation7 + $0xd8] sm:$0xff]
    %v1417 = vld [vmem:[#allocation7 + $0xe0] sm:$0xff]
    %v1418 = vld [vmem:[#allocation7 + $0xe8] sm:$0xff]
    %v1419 = vld [vmem:[#allocation7 + $0xf0] sm:$0xff]
    %v1420 = vld [vmem:[#allocation7 + $0xf8] sm:$0xff]
    %v1421 = vld [vmem:[#allocation7 + $0x100] sm:$0xff]
    %v1422 = vld [vmem:[#allocation7 + $0x108] sm:$0xff]
    %v1423 = vld [vmem:[#allocation7 + $0x110] sm:$0xff]
    %v1424 = vld [vmem:[#allocation7 + $0x118] sm:$0xff]
    %v1425 = vld [vmem:[#allocation7 + $0x120] sm:$0xff]
    %v1426 = vld [vmem:[#allocation7 + $0x128] sm:$0xff]
    %v1427 = vld [vmem:[#allocation7 + $0x130] sm:$0xff]
    %v1428 = vld [vmem:[#allocation7 + $0x138] sm:$0xff]
    %v1429 = vld [vmem:[#allocation7 + $0x140] sm:$0xff]
    %v1430 = vld [vmem:[#allocation7 + $0x148] sm:$0xff]
    %v1431 = vld [vmem:[#allocation7 + $0x150] sm:$0xff]
    %v1432 = vld [vmem:[#allocation7 + $0x158] sm:$0xff]
    %v1433 = vld [vmem:[#allocation7 + $0x160] sm:$0xff]
    %v1434 = vld [vmem:[#allocation7 + $0x168] sm:$0xff]
    %v1435 = vld [vmem:[#allocation7 + $0x170] sm:$0xff]
    %v1436 = vld [vmem:[#allocation7 + $0x178] sm:$0xff]
    %1437 = vmatpush.msra.mxu0 %v1434
    %1438 = vmatpush.msra.mxu0 %v1431
    %1439 = vmatpush.msra.mxu0 %v1428
    %1440 = vmatpush.msra.mxu0 %v1425
    %1441 = vmatpush.msra.mxu0 %v1422
    %1442 = vmatpush.msra.mxu0 %v1419
    %1443 = vmatpush.msra.mxu0 %v1416
    %1444 = vmatpush.msra.mxu0 %v1413
    %1445 = vmatpush.msra.mxu0 %v1410
    %1446 = vmatpush.msra.mxu0 %v1407
    %1447 = vmatpush.msra.mxu0 %v1404
    %1448 = vmatpush.msra.mxu0 %v1401
    %1449 = vmatpush.msra.mxu0 %v1398
    %1450 = vmatpush.msra.mxu0 %v1395
    %1451 = vmatpush.msra.mxu0 %v1392
    %1452 = vmatpush.msra.mxu0 %v1389
    %1453 = vmatmul.f32.gmra.mxu0 %v1380
    %v1454 = vpop.f32.mrf.mxu0
    %v1455 = vadd.f32 0.0, %v1454
    %1456 = vdwg.mxu0
    %1457 = vmatpush.msra.mxu0 %v1435
    %1458 = vmatpush.msra.mxu0 %v1432
    %1459 = vmatpush.msra.mxu0 %v1429
    %1460 = vmatpush.msra.mxu0 %v1426
    %1461 = vmatpush.msra.mxu0 %v1423
    %1462 = vmatpush.msra.mxu0 %v1420
    %1463 = vmatpush.msra.mxu0 %v1417
    %1464 = vmatpush.msra.mxu0 %v1414
    %1465 = vmatpush.msra.mxu0 %v1411
    %1466 = vmatpush.msra.mxu0 %v1408
    %1467 = vmatpush.msra.mxu0 %v1405
    %1468 = vmatpush.msra.mxu0 %v1402
    %1469 = vmatpush.msra.mxu0 %v1399
    %1470 = vmatpush.msra.mxu0 %v1396
    %1471 = vmatpush.msra.mxu0 %v1393
    %1472 = vmatpush.msra.mxu0 %v1390
    %1473 = vmatmul.f32.gmra.mxu0 %v1380
    %v1474 = vpop.f32.mrf.mxu0
    %v1475 = vadd.f32 0.0, %v1474
    %1476 = vdwg.mxu0
    %1477 = vmatpush.msra.mxu0 %v1436
    %1478 = vmatpush.msra.mxu0 %v1433
    %1479 = vmatpush.msra.mxu0 %v1430
    %1480 = vmatpush.msra.mxu0 %v1427
    %1481 = vmatpush.msra.mxu0 %v1424
    %1482 = vmatpush.msra.mxu0 %v1421
    %1483 = vmatpush.msra.mxu0 %v1418
    %1484 = vmatpush.msra.mxu0 %v1415
    %1485 = vmatpush.msra.mxu0 %v1412
    %1486 = vmatpush.msra.mxu0 %v1409
    %1487 = vmatpush.msra.mxu0 %v1406
    %1488 = vmatpush.msra.mxu0 %v1403
    %1489 = vmatpush.msra.mxu0 %v1400
    %1490 = vmatpush.msra.mxu0 %v1397
    %1491 = vmatpush.msra.mxu0 %v1394
    %1492 = vmatpush.msra.mxu0 %v1391
    %1493 = vmatmul.f32.gmra.mxu0 %v1380
    %v1494 = vpop.f32.mrf.mxu0
    %v1495 = vadd.f32 0.0, %v1494
    %1496 = vdwg.mxu0
    %v1497 = vadd.f32 %v1386, %v1455
    %v1498 = vxor.u32 %v1497, 2147483648
    %v1499 = vmul.f32 %v1498, 1.442695
    %v1500 = vpow.pop %v1499
    %v1501 = vadd.f32 %v1500, 1.0
    %v1502 = vrcp.pop %v1501
    %v1503 = vmul.f32 %v1501, %v1502
    %v1504 = vsub.f32 1.0, %v1503
    %v1505 = vmul.f32 %v1502, %v1504
    %v1506 = vadd.f32 %v1502, %v1505
    %vm1507 = vweird.f32 %v1501
    %vm1508 = vweird.f32 %v1502
    %vm1509 = vmor %vm1507, %vm1508
    %v1510 = vsel %vm1509, %v1502, %v1506
    %v1511 = vand.u32 2147483647, %v1501
    %vm1512 = vcmp.eq.f32.partialorder %v1511, 8.507059e+37
    %v1513 = vand.u32 %v1501, 2147483648
    %v1514 = vor.u32 1.1754944e-38, %v1513
    %v1515 = vsel %vm1512, %v1514, %v1510
    %v1516 = vmul.f32 1.0, %v1515
    %v1517 = vadd.f32 %v1387, %v1475
    %v1518 = vxor.u32 %v1517, 2147483648
    %v1519 = vmul.f32 %v1518, 1.442695
    %v1520 = vpow.pop %v1519
    %v1521 = vadd.f32 %v1520, 1.0
    %v1522 = vrcp.pop %v1521
    %v1523 = vmul.f32 %v1521, %v1522
    %v1524 = vsub.f32 1.0, %v1523
    %v1525 = vmul.f32 %v1522, %v1524
    %v1526 = vadd.f32 %v1522, %v1525
    %vm1527 = vweird.f32 %v1521
    %vm1528 = vweird.f32 %v1522
    %vm1529 = vmor %vm1527, %vm1528
    %v1530 = vsel %vm1529, %v1522, %v1526
    %v1531 = vand.u32 2147483647, %v1521
    %vm1532 = vcmp.eq.f32.partialorder %v1531, 8.507059e+37
    %v1533 = vand.u32 %v1521, 2147483648
    %v1534 = vor.u32 1.1754944e-38, %v1533
    %v1535 = vsel %vm1532, %v1534, %v1530
    %v1536 = vmul.f32 1.0, %v1535
    %v1537 = vld [vmem:[%s5] sm:$0x1]
    %v1539 = vperm.slane %v1537, 0
    %v1541 = vadd.f32 %v1495, %v1539
    %v1542 = vmul.f32 %v1516, %v1541
    %v1543 = vadd.f32 %v1388, %v1542
    %v1544 = vtanh.pop %v1543
    %v1545 = vsub.f32 1.0, %v1536
    %v1546 = vmul.f32 %v1545, %v1544
    %v1547 = vmul.f32 %v1536, %v1380
    %v1548 = vadd.f32 %v1546, %v1547
    %v1549 = vsel %vm142, 5, 2
    %vm1550 = vcmp.lt.s32.totalorder %v1549, %v695
    %v1551 = vsel %vm1550, %v1548, %v1380
    %s1552 = scalar_lea.vmem [#allocation3], 40
    %1553 = vst [vmem:[%s1552] sm:$0xff] %v1551
    %s1554 = smul.u32 6, 3
    %s1555 = smul.addr %s1554, 8
    %s1556 = scalar_lea.vmem [#allocation2], %s1555
    %v1557 = vld [vmem:[%s1556] sm:$0xff]
    %v1558 = vld [vmem:[%s1556 + $0x8] sm:$0xff]
    %v1559 = vld [vmem:[%s1556 + $0x10] sm:$0xff]
    %v1560 = vld [vmem:[#allocation7] sm:$0xff]
    %v1561 = vld [vmem:[#allocation7 + $0x8] sm:$0xff]
    %v1562 = vld [vmem:[#allocation7 + $0x10] sm:$0xff]
    %v1563 = vld [vmem:[#allocation7 + $0x18] sm:$0xff]
    %v1564 = vld [vmem:[#allocation7 + $0x20] sm:$0xff]
    %v1565 = vld [vmem:[#allocation7 + $0x28] sm:$0xff]
    %v1566 = vld [vmem:[#allocation7 + $0x30] sm:$0xff]
    %v1567 = vld [vmem:[#allocation7 + $0x38] sm:$0xff]
    %v1568 = vld [vmem:[#allocation7 + $0x40] sm:$0xff]
    %v1569 = vld [vmem:[#allocation7 + $0x48] sm:$0xff]
    %v1570 = vld [vmem:[#allocation7 + $0x50] sm:$0xff]
    %v1571 = vld [vmem:[#allocation7 + $0x58] sm:$0xff]
    %v1572 = vld [vmem:[#allocation7 + $0x60] sm:$0xff]
    %v1573 = vld [vmem:[#allocation7 + $0x68] sm:$0xff]
    %v1574 = vld [vmem:[#allocation7 + $0x70] sm:$0xff]
    %v1575 = vld [vmem:[#allocation7 + $0x78] sm:$0xff]
    %v1576 = vld [vmem:[#allocation7 + $0x80] sm:$0xff]
    %v1577 = vld [vmem:[#allocation7 + $0x88] sm:$0xff]
    %v1578 = vld [vmem:[#allocation7 + $0x90] sm:$0xff]
    %v1579 = vld [vmem:[#allocation7 + $0x98] sm:$0xff]
    %v1580 = vld [vmem:[#allocation7 + $0xa0] sm:$0xff]
    %v1581 = vld [vmem:[#allocation7 + $0xa8] sm:$0xff]
    %v1582 = vld [vmem:[#allocation7 + $0xb0] sm:$0xff]
    %v1583 = vld [vmem:[#allocation7 + $0xb8] sm:$0xff]
    %v1584 = vld [vmem:[#allocation7 + $0xc0] sm:$0xff]
    %v1585 = vld [vmem:[#allocation7 + $0xc8] sm:$0xff]
    %v1586 = vld [vmem:[#allocation7 + $0xd0] sm:$0xff]
    %v1587 = vld [vmem:[#allocation7 + $0xd8] sm:$0xff]
    %v1588 = vld [vmem:[#allocation7 + $0xe0] sm:$0xff]
    %v1589 = vld [vmem:[#allocation7 + $0xe8] sm:$0xff]
    %v1590 = vld [vmem:[#allocation7 + $0xf0] sm:$0xff]
    %v1591 = vld [vmem:[#allocation7 + $0xf8] sm:$0xff]
    %v1592 = vld [vmem:[#allocation7 + $0x100] sm:$0xff]
    %v1593 = vld [vmem:[#allocation7 + $0x108] sm:$0xff]
    %v1594 = vld [vmem:[#allocation7 + $0x110] sm:$0xff]
    %v1595 = vld [vmem:[#allocation7 + $0x118] sm:$0xff]
    %v1596 = vld [vmem:[#allocation7 + $0x120] sm:$0xff]
    %v1597 = vld [vmem:[#allocation7 + $0x128] sm:$0xff]
    %v1598 = vld [vmem:[#allocation7 + $0x130] sm:$0xff]
    %v1599 = vld [vmem:[#allocation7 + $0x138] sm:$0xff]
    %v1600 = vld [vmem:[#allocation7 + $0x140] sm:$0xff]
    %v1601 = vld [vmem:[#allocation7 + $0x148] sm:$0xff]
    %v1602 = vld [vmem:[#allocation7 + $0x150] sm:$0xff]
    %v1603 = vld [vmem:[#allocation7 + $0x158] sm:$0xff]
    %v1604 = vld [vmem:[#allocation7 + $0x160] sm:$0xff]
    %v1605 = vld [vmem:[#allocation7 + $0x168] sm:$0xff]
    %v1606 = vld [vmem:[#allocation7 + $0x170] sm:$0xff]
    %v1607 = vld [vmem:[#allocation7 + $0x178] sm:$0xff]
    %1608 = vmatpush.msra.mxu0 %v1605
    %1609 = vmatpush.msra.mxu0 %v1602
    %1610 = vmatpush.msra.mxu0 %v1599
    %1611 = vmatpush.msra.mxu0 %v1596
    %1612 = vmatpush.msra.mxu0 %v1593
    %1613 = vmatpush.msra.mxu0 %v1590
    %1614 = vmatpush.msra.mxu0 %v1587
    %1615 = vmatpush.msra.mxu0 %v1584
    %1616 = vmatpush.msra.mxu0 %v1581
    %1617 = vmatpush.msra.mxu0 %v1578
    %1618 = vmatpush.msra.mxu0 %v1575
    %1619 = vmatpush.msra.mxu0 %v1572
    %1620 = vmatpush.msra.mxu0 %v1569
    %1621 = vmatpush.msra.mxu0 %v1566
    %1622 = vmatpush.msra.mxu0 %v1563
    %1623 = vmatpush.msra.mxu0 %v1560
    %1624 = vmatmul.f32.gmra.mxu0 %v1551
    %v1625 = vpop.f32.mrf.mxu0
    %v1626 = vadd.f32 0.0, %v1625
    %1627 = vdwg.mxu0
    %1628 = vmatpush.msra.mxu0 %v1606
    %1629 = vmatpush.msra.mxu0 %v1603
    %1630 = vmatpush.msra.mxu0 %v1600
    %1631 = vmatpush.msra.mxu0 %v1597
    %1632 = vmatpush.msra.mxu0 %v1594
    %1633 = vmatpush.msra.mxu0 %v1591
    %1634 = vmatpush.msra.mxu0 %v1588
    %1635 = vmatpush.msra.mxu0 %v1585
    %1636 = vmatpush.msra.mxu0 %v1582
    %1637 = vmatpush.msra.mxu0 %v1579
    %1638 = vmatpush.msra.mxu0 %v1576
    %1639 = vmatpush.msra.mxu0 %v1573
    %1640 = vmatpush.msra.mxu0 %v1570
    %1641 = vmatpush.msra.mxu0 %v1567
    %1642 = vmatpush.msra.mxu0 %v1564
    %1643 = vmatpush.msra.mxu0 %v1561
    %1644 = vmatmul.f32.gmra.mxu0 %v1551
    %v1645 = vpop.f32.mrf.mxu0
    %v1646 = vadd.f32 0.0, %v1645
    %1647 = vdwg.mxu0
    %1648 = vmatpush.msra.mxu0 %v1607
    %1649 = vmatpush.msra.mxu0 %v1604
    %1650 = vmatpush.msra.mxu0 %v1601
    %1651 = vmatpush.msra.mxu0 %v1598
    %1652 = vmatpush.msra.mxu0 %v1595
    %1653 = vmatpush.msra.mxu0 %v1592
    %1654 = vmatpush.msra.mxu0 %v1589
    %1655 = vmatpush.msra.mxu0 %v1586
    %1656 = vmatpush.msra.mxu0 %v1583
    %1657 = vmatpush.msra.mxu0 %v1580
    %1658 = vmatpush.msra.mxu0 %v1577
    %1659 = vmatpush.msra.mxu0 %v1574
    %1660 = vmatpush.msra.mxu0 %v1571
    %1661 = vmatpush.msra.mxu0 %v1568
    %1662 = vmatpush.msra.mxu0 %v1565
    %1663 = vmatpush.msra.mxu0 %v1562
    %1664 = vmatmul.f32.gmra.mxu0 %v1551
    %v1665 = vpop.f32.mrf.mxu0
    %v1666 = vadd.f32 0.0, %v1665
    %1667 = vdwg.mxu0
    %v1668 = vadd.f32 %v1557, %v1626
    %v1669 = vxor.u32 %v1668, 2147483648
    %v1670 = vmul.f32 %v1669, 1.442695
    %v1671 = vpow.pop %v1670
    %v1672 = vadd.f32 %v1671, 1.0
    %v1673 = vrcp.pop %v1672
    %v1674 = vmul.f32 %v1672, %v1673
    %v1675 = vsub.f32 1.0, %v1674
    %v1676 = vmul.f32 %v1673, %v1675
    %v1677 = vadd.f32 %v1673, %v1676
    %vm1678 = vweird.f32 %v1672
    %vm1679 = vweird.f32 %v1673
    %vm1680 = vmor %vm1678, %vm1679
    %v1681 = vsel %vm1680, %v1673, %v1677
    %v1682 = vand.u32 2147483647, %v1672
    %vm1683 = vcmp.eq.f32.partialorder %v1682, 8.507059e+37
    %v1684 = vand.u32 %v1672, 2147483648
    %v1685 = vor.u32 1.1754944e-38, %v1684
    %v1686 = vsel %vm1683, %v1685, %v1681
    %v1687 = vmul.f32 1.0, %v1686
    %v1688 = vadd.f32 %v1558, %v1646
    %v1689 = vxor.u32 %v1688, 2147483648
    %v1690 = vmul.f32 %v1689, 1.442695
    %v1691 = vpow.pop %v1690
    %v1692 = vadd.f32 %v1691, 1.0
    %v1693 = vrcp.pop %v1692
    %v1694 = vmul.f32 %v1692, %v1693
    %v1695 = vsub.f32 1.0, %v1694
    %v1696 = vmul.f32 %v1693, %v1695
    %v1697 = vadd.f32 %v1693, %v1696
    %vm1698 = vweird.f32 %v1692
    %vm1699 = vweird.f32 %v1693
    %vm1700 = vmor %vm1698, %vm1699
    %v1701 = vsel %vm1700, %v1693, %v1697
    %v1702 = vand.u32 2147483647, %v1692
    %vm1703 = vcmp.eq.f32.partialorder %v1702, 8.507059e+37
    %v1704 = vand.u32 %v1692, 2147483648
    %v1705 = vor.u32 1.1754944e-38, %v1704
    %v1706 = vsel %vm1703, %v1705, %v1701
    %v1707 = vmul.f32 1.0, %v1706
    %v1708 = vld [vmem:[%s5] sm:$0x1]
    %v1710 = vperm.slane %v1708, 0
    %v1712 = vadd.f32 %v1666, %v1710
    %v1713 = vmul.f32 %v1687, %v1712
    %v1714 = vadd.f32 %v1559, %v1713
    %v1715 = vtanh.pop %v1714
    %v1716 = vsub.f32 1.0, %v1707
    %v1717 = vmul.f32 %v1716, %v1715
    %v1718 = vmul.f32 %v1707, %v1551
    %v1719 = vadd.f32 %v1717, %v1718
    %v1720 = vsel %vm142, 6, 1
    %vm1721 = vcmp.lt.s32.totalorder %v1720, %v695
    %v1722 = vsel %vm1721, %v1719, %v1551
    %s1723 = scalar_lea.vmem [#allocation3], 48
    %1724 = vst [vmem:[%s1723] sm:$0xff] %v1722
    %s1725 = smul.u32 7, 3
    %s1726 = smul.addr %s1725, 8
    %s1727 = scalar_lea.vmem [#allocation2], %s1726
    %v1728 = vld [vmem:[%s1727] sm:$0xff]
    %v1729 = vld [vmem:[%s1727 + $0x8] sm:$0xff]
    %v1730 = vld [vmem:[%s1727 + $0x10] sm:$0xff]
    %v1731 = vld [vmem:[#allocation7] sm:$0xff]
    %v1732 = vld [vmem:[#allocation7 + $0x8] sm:$0xff]
    %v1733 = vld [vmem:[#allocation7 + $0x10] sm:$0xff]
    %v1734 = vld [vmem:[#allocation7 + $0x18] sm:$0xff]
    %v1735 = vld [vmem:[#allocation7 + $0x20] sm:$0xff]
    %v1736 = vld [vmem:[#allocation7 + $0x28] sm:$0xff]
    %v1737 = vld [vmem:[#allocation7 + $0x30] sm:$0xff]
    %v1738 = vld [vmem:[#allocation7 + $0x38] sm:$0xff]
    %v1739 = vld [vmem:[#allocation7 + $0x40] sm:$0xff]
    %v1740 = vld [vmem:[#allocation7 + $0x48] sm:$0xff]
    %v1741 = vld [vmem:[#allocation7 + $0x50] sm:$0xff]
    %v1742 = vld [vmem:[#allocation7 + $0x58] sm:$0xff]
    %v1743 = vld [vmem:[#allocation7 + $0x60] sm:$0xff]
    %v1744 = vld [vmem:[#allocation7 + $0x68] sm:$0xff]
    %v1745 = vld [vmem:[#allocation7 + $0x70] sm:$0xff]
    %v1746 = vld [vmem:[#allocation7 + $0x78] sm:$0xff]
    %v1747 = vld [vmem:[#allocation7 + $0x80] sm:$0xff]
    %v1748 = vld [vmem:[#allocation7 + $0x88] sm:$0xff]
    %v1749 = vld [vmem:[#allocation7 + $0x90] sm:$0xff]
    %v1750 = vld [vmem:[#allocation7 + $0x98] sm:$0xff]
    %v1751 = vld [vmem:[#allocation7 + $0xa0] sm:$0xff]
    %v1752 = vld [vmem:[#allocation7 + $0xa8] sm:$0xff]
    %v1753 = vld [vmem:[#allocation7 + $0xb0] sm:$0xff]
    %v1754 = vld [vmem:[#allocation7 + $0xb8] sm:$0xff]
    %v1755 = vld [vmem:[#allocation7 + $0xc0] sm:$0xff]
    %v1756 = vld [vmem:[#allocation7 + $0xc8] sm:$0xff]
    %v1757 = vld [vmem:[#allocation7 + $0xd0] sm:$0xff]
    %v1758 = vld [vmem:[#allocation7 + $0xd8] sm:$0xff]
    %v1759 = vld [vmem:[#allocation7 + $0xe0] sm:$0xff]
    %v1760 = vld [vmem:[#allocation7 + $0xe8] sm:$0xff]
    %v1761 = vld [vmem:[#allocation7 + $0xf0] sm:$0xff]
    %v1762 = vld [vmem:[#allocation7 + $0xf8] sm:$0xff]
    %v1763 = vld [vmem:[#allocation7 + $0x100] sm:$0xff]
    %v1764 = vld [vmem:[#allocation7 + $0x108] sm:$0xff]
    %v1765 = vld [vmem:[#allocation7 + $0x110] sm:$0xff]
    %v1766 = vld [vmem:[#allocation7 + $0x118] sm:$0xff]
    %v1767 = vld [vmem:[#allocation7 + $0x120] sm:$0xff]
    %v1768 = vld [vmem:[#allocation7 + $0x128] sm:$0xff]
    %v1769 = vld [vmem:[#allocation7 + $0x130] sm:$0xff]
    %v1770 = vld [vmem:[#allocation7 + $0x138] sm:$0xff]
    %v1771 = vld [vmem:[#allocation7 + $0x140] sm:$0xff]
    %v1772 = vld [vmem:[#allocation7 + $0x148] sm:$0xff]
    %v1773 = vld [vmem:[#allocation7 + $0x150] sm:$0xff]
    %v1774 = vld [vmem:[#allocation7 + $0x158] sm:$0xff]
    %v1775 = vld [vmem:[#allocation7 + $0x160] sm:$0xff]
    %v1776 = vld [vmem:[#allocation7 + $0x168] sm:$0xff]
    %v1777 = vld [vmem:[#allocation7 + $0x170] sm:$0xff]
    %v1778 = vld [vmem:[#allocation7 + $0x178] sm:$0xff]
    %1779 = vmatpush.msra.mxu0 %v1776
    %1780 = vmatpush.msra.mxu0 %v1773
    %1781 = vmatpush.msra.mxu0 %v1770
    %1782 = vmatpush.msra.mxu0 %v1767
    %1783 = vmatpush.msra.mxu0 %v1764
    %1784 = vmatpush.msra.mxu0 %v1761
    %1785 = vmatpush.msra.mxu0 %v1758
    %1786 = vmatpush.msra.mxu0 %v1755
    %1787 = vmatpush.msra.mxu0 %v1752
    %1788 = vmatpush.msra.mxu0 %v1749
    %1789 = vmatpush.msra.mxu0 %v1746
    %1790 = vmatpush.msra.mxu0 %v1743
    %1791 = vmatpush.msra.mxu0 %v1740
    %1792 = vmatpush.msra.mxu0 %v1737
    %1793 = vmatpush.msra.mxu0 %v1734
    %1794 = vmatpush.msra.mxu0 %v1731
    %1795 = vmatmul.f32.gmra.mxu0 %v1722
    %v1796 = vpop.f32.mrf.mxu0
    %v1797 = vadd.f32 0.0, %v1796
    %1798 = vdwg.mxu0
    %1799 = vmatpush.msra.mxu0 %v1777
    %1800 = vmatpush.msra.mxu0 %v1774
    %1801 = vmatpush.msra.mxu0 %v1771
    %1802 = vmatpush.msra.mxu0 %v1768
    %1803 = vmatpush.msra.mxu0 %v1765
    %1804 = vmatpush.msra.mxu0 %v1762
    %1805 = vmatpush.msra.mxu0 %v1759
    %1806 = vmatpush.msra.mxu0 %v1756
    %1807 = vmatpush.msra.mxu0 %v1753
    %1808 = vmatpush.msra.mxu0 %v1750
    %1809 = vmatpush.msra.mxu0 %v1747
    %1810 = vmatpush.msra.mxu0 %v1744
    %1811 = vmatpush.msra.mxu0 %v1741
    %1812 = vmatpush.msra.mxu0 %v1738
    %1813 = vmatpush.msra.mxu0 %v1735
    %1814 = vmatpush.msra.mxu0 %v1732
    %1815 = vmatmul.f32.gmra.mxu0 %v1722
    %v1816 = vpop.f32.mrf.mxu0
    %v1817 = vadd.f32 0.0, %v1816
    %1818 = vdwg.mxu0
    %1819 = vmatpush.msra.mxu0 %v1778
    %1820 = vmatpush.msra.mxu0 %v1775
    %1821 = vmatpush.msra.mxu0 %v1772
    %1822 = vmatpush.msra.mxu0 %v1769
    %1823 = vmatpush.msra.mxu0 %v1766
    %1824 = vmatpush.msra.mxu0 %v1763
    %1825 = vmatpush.msra.mxu0 %v1760
    %1826 = vmatpush.msra.mxu0 %v1757
    %1827 = vmatpush.msra.mxu0 %v1754
    %1828 = vmatpush.msra.mxu0 %v1751
    %1829 = vmatpush.msra.mxu0 %v1748
    %1830 = vmatpush.msra.mxu0 %v1745
    %1831 = vmatpush.msra.mxu0 %v1742
    %1832 = vmatpush.msra.mxu0 %v1739
    %1833 = vmatpush.msra.mxu0 %v1736
    %1834 = vmatpush.msra.mxu0 %v1733
    %1835 = vmatmul.f32.gmra.mxu0 %v1722
    %v1836 = vpop.f32.mrf.mxu0
    %v1837 = vadd.f32 0.0, %v1836
    %1838 = vdwg.mxu0
    %v1839 = vadd.f32 %v1728, %v1797
    %v1840 = vxor.u32 %v1839, 2147483648
    %v1841 = vmul.f32 %v1840, 1.442695
    %v1842 = vpow.pop %v1841
    %v1843 = vadd.f32 %v1842, 1.0
    %v1844 = vrcp.pop %v1843
    %v1845 = vmul.f32 %v1843, %v1844
    %v1846 = vsub.f32 1.0, %v1845
    %v1847 = vmul.f32 %v1844, %v1846
    %v1848 = vadd.f32 %v1844, %v1847
    %vm1849 = vweird.f32 %v1843
    %vm1850 = vweird.f32 %v1844
    %vm1851 = vmor %vm1849, %vm1850
    %v1852 = vsel %vm1851, %v1844, %v1848
    %v1853 = vand.u32 2147483647, %v1843
    %vm1854 = vcmp.eq.f32.partialorder %v1853, 8.507059e+37
    %v1855 = vand.u32 %v1843, 2147483648
    %v1856 = vor.u32 1.1754944e-38, %v1855
    %v1857 = vsel %vm1854, %v1856, %v1852
    %v1858 = vmul.f32 1.0, %v1857
    %v1859 = vadd.f32 %v1729, %v1817
    %v1860 = vxor.u32 %v1859, 2147483648
    %v1861 = vmul.f32 %v1860, 1.442695
    %v1862 = vpow.pop %v1861
    %v1863 = vadd.f32 %v1862, 1.0
    %v1864 = vrcp.pop %v1863
    %v1865 = vmul.f32 %v1863, %v1864
    %v1866 = vsub.f32 1.0, %v1865
    %v1867 = vmul.f32 %v1864, %v1866
    %v1868 = vadd.f32 %v1864, %v1867
    %vm1869 = vweird.f32 %v1863
    %vm1870 = vweird.f32 %v1864
    %vm1871 = vmor %vm1869, %vm1870
    %v1872 = vsel %vm1871, %v1864, %v1868
    %v1873 = vand.u32 2147483647, %v1863
    %vm1874 = vcmp.eq.f32.partialorder %v1873, 8.507059e+37
    %v1875 = vand.u32 %v1863, 2147483648
    %v1876 = vor.u32 1.1754944e-38, %v1875
    %v1877 = vsel %vm1874, %v1876, %v1872
    %v1878 = vmul.f32 1.0, %v1877
    %v1879 = vld [vmem:[%s5] sm:$0x1]
    %v1881 = vperm.slane %v1879, 0
    %v1883 = vadd.f32 %v1837, %v1881
    %v1884 = vmul.f32 %v1858, %v1883
    %v1885 = vadd.f32 %v1730, %v1884
    %v1886 = vtanh.pop %v1885
    %v1887 = vsub.f32 1.0, %v1878
    %v1888 = vmul.f32 %v1887, %v1886
    %v1889 = vmul.f32 %v1878, %v1722
    %v1890 = vadd.f32 %v1888, %v1889
    %v1891 = vsel %vm142, 7, 0
    %vm1892 = vcmp.lt.s32.totalorder %v1891, %v695
    %v1893 = vsel %vm1892, %v1890, %v1722
    %s1894 = scalar_lea.vmem [#allocation3], 56
    %1895 = vst [vmem:[%s1894] sm:$0xff] %v1893
    %v1896 = vld [vmem:[#allocation3] sm:$0xff]
    %v1897 = vld [vmem:[#allocation3 + $0x8] sm:$0xff]
    %v1898 = vld [vmem:[#allocation3 + $0x10] sm:$0xff]
    %v1899 = vld [vmem:[#allocation3 + $0x18] sm:$0xff]
    %v1900 = vld [vmem:[#allocation3 + $0x20] sm:$0xff]
    %v1901 = vld [vmem:[#allocation3 + $0x28] sm:$0xff]
    %v1902 = vld [vmem:[#allocation3 + $0x30] sm:$0xff]
    %v1903 = vld [vmem:[#allocation3 + $0x38] sm:$0xff]
    %v1904 = vld [vmem:[#allocation9] sm:$0xff]
    %v1905 = vld [vmem:[#allocation9 + $0x8] sm:$0xff]
    %v1906 = vld [vmem:[#allocation9 + $0x10] sm:$0xff]
    %v1907 = vld [vmem:[#allocation9 + $0x18] sm:$0xff]
    %v1908 = vld [vmem:[#allocation9 + $0x20] sm:$0xff]
    %v1909 = vld [vmem:[#allocation9 + $0x28] sm:$0xff]
    %v1910 = vld [vmem:[#allocation9 + $0x30] sm:$0xff]
    %v1911 = vld [vmem:[#allocation9 + $0x38] sm:$0xff]
    %v1912 = vld [vmem:[#allocation9 + $0x40] sm:$0xff]
    %v1913 = vld [vmem:[#allocation9 + $0x48] sm:$0xff]
    %v1914 = vld [vmem:[#allocation9 + $0x50] sm:$0xff]
    %v1915 = vld [vmem:[#allocation9 + $0x58] sm:$0xff]
    %v1916 = vld [vmem:[#allocation9 + $0x60] sm:$0xff]
    %v1917 = vld [vmem:[#allocation9 + $0x68] sm:$0xff]
    %v1918 = vld [vmem:[#allocation9 + $0x70] sm:$0xff]
    %v1919 = vld [vmem:[#allocation9 + $0x78] sm:$0xff]
    %v1920 = vld [vmem:[#allocation9 + $0x80] sm:$0xff]
    %v1921 = vld [vmem:[#allocation9 + $0x88] sm:$0xff]
    %v1922 = vld [vmem:[#allocation9 + $0x90] sm:$0xff]
    %v1923 = vld [vmem:[#allocation9 + $0x98] sm:$0xff]
    %v1924 = vld [vmem:[#allocation9 + $0xa0] sm:$0xff]
    %v1925 = vld [vmem:[#allocation9 + $0xa8] sm:$0xff]
    %v1926 = vld [vmem:[#allocation9 + $0xb0] sm:$0xff]
    %v1927 = vld [vmem:[#allocation9 + $0xb8] sm:$0xff]
    %v1928 = vld [vmem:[#allocation9 + $0xc0] sm:$0xff]
    %v1929 = vld [vmem:[#allocation9 + $0xc8] sm:$0xff]
    %v1930 = vld [vmem:[#allocation9 + $0xd0] sm:$0xff]
    %v1931 = vld [vmem:[#allocation9 + $0xd8] sm:$0xff]
    %v1932 = vld [vmem:[#allocation9 + $0xe0] sm:$0xff]
    %v1933 = vld [vmem:[#allocation9 + $0xe8] sm:$0xff]
    %v1934 = vld [vmem:[#allocation9 + $0xf0] sm:$0xff]
    %v1935 = vld [vmem:[#allocation9 + $0xf8] sm:$0xff]
    %v1936 = vld [vmem:[#allocation9 + $0x100] sm:$0xff]
    %v1937 = vld [vmem:[#allocation9 + $0x108] sm:$0xff]
    %v1938 = vld [vmem:[#allocation9 + $0x110] sm:$0xff]
    %v1939 = vld [vmem:[#allocation9 + $0x118] sm:$0xff]
    %v1940 = vld [vmem:[#allocation9 + $0x120] sm:$0xff]
    %v1941 = vld [vmem:[#allocation9 + $0x128] sm:$0xff]
    %v1942 = vld [vmem:[#allocation9 + $0x130] sm:$0xff]
    %v1943 = vld [vmem:[#allocation9 + $0x138] sm:$0xff]
    %v1944 = vld [vmem:[#allocation9 + $0x140] sm:$0xff]
    %v1945 = vld [vmem:[#allocation9 + $0x148] sm:$0xff]
    %v1946 = vld [vmem:[#allocation9 + $0x150] sm:$0xff]
    %v1947 = vld [vmem:[#allocation9 + $0x158] sm:$0xff]
    %v1948 = vld [vmem:[#allocation9 + $0x160] sm:$0xff]
    %v1949 = vld [vmem:[#allocation9 + $0x168] sm:$0xff]
    %v1950 = vld [vmem:[#allocation9 + $0x170] sm:$0xff]
    %v1951 = vld [vmem:[#allocation9 + $0x178] sm:$0xff]
    %v1952 = vld [vmem:[#allocation9 + $0x180] sm:$0xff]
    %v1953 = vld [vmem:[#allocation9 + $0x188] sm:$0xff]
    %v1954 = vld [vmem:[#allocation9 + $0x190] sm:$0xff]
    %v1955 = vld [vmem:[#allocation9 + $0x198] sm:$0xff]
    %v1956 = vld [vmem:[#allocation9 + $0x1a0] sm:$0xff]
    %v1957 = vld [vmem:[#allocation9 + $0x1a8] sm:$0xff]
    %v1958 = vld [vmem:[#allocation9 + $0x1b0] sm:$0xff]
    %v1959 = vld [vmem:[#allocation9 + $0x1b8] sm:$0xff]
    %v1960 = vld [vmem:[#allocation9 + $0x1c0] sm:$0xff]
    %v1961 = vld [vmem:[#allocation9 + $0x1c8] sm:$0xff]
    %v1962 = vld [vmem:[#allocation9 + $0x1d0] sm:$0xff]
    %v1963 = vld [vmem:[#allocation9 + $0x1d8] sm:$0xff]
    %v1964 = vld [vmem:[#allocation9 + $0x1e0] sm:$0xff]
    %v1965 = vld [vmem:[#allocation9 + $0x1e8] sm:$0xff]
    %v1966 = vld [vmem:[#allocation9 + $0x1f0] sm:$0xff]
    %v1967 = vld [vmem:[#allocation9 + $0x1f8] sm:$0xff]
    %v1968 = vld [vmem:[#allocation9 + $0x200] sm:$0xff]
    %v1969 = vld [vmem:[#allocation9 + $0x208] sm:$0xff]
    %v1970 = vld [vmem:[#allocation9 + $0x210] sm:$0xff]
    %v1971 = vld [vmem:[#allocation9 + $0x218] sm:$0xff]
    %v1972 = vld [vmem:[#allocation9 + $0x220] sm:$0xff]
    %v1973 = vld [vmem:[#allocation9 + $0x228] sm:$0xff]
    %v1974 = vld [vmem:[#allocation9 + $0x230] sm:$0xff]
    %v1975 = vld [vmem:[#allocation9 + $0x238] sm:$0xff]
    %v1976 = vld [vmem:[#allocation9 + $0x240] sm:$0xff]
    %v1977 = vld [vmem:[#allocation9 + $0x248] sm:$0xff]
    %v1978 = vld [vmem:[#allocation9 + $0x250] sm:$0xff]
    %v1979 = vld [vmem:[#allocation9 + $0x258] sm:$0xff]
    %v1980 = vld [vmem:[#allocation9 + $0x260] sm:$0xff]
    %v1981 = vld [vmem:[#allocation9 + $0x268] sm:$0xff]
    %v1982 = vld [vmem:[#allocation9 + $0x270] sm:$0xff]
    %v1983 = vld [vmem:[#allocation9 + $0x278] sm:$0xff]
    %v1984 = vld [vmem:[#allocation9 + $0x280] sm:$0xff]
    %v1985 = vld [vmem:[#allocation9 + $0x288] sm:$0xff]
    %v1986 = vld [vmem:[#allocation9 + $0x290] sm:$0xff]
    %v1987 = vld [vmem:[#allocation9 + $0x298] sm:$0xff]
    %v1988 = vld [vmem:[#allocation9 + $0x2a0] sm:$0xff]
    %v1989 = vld [vmem:[#allocation9 + $0x2a8] sm:$0xff]
    %v1990 = vld [vmem:[#allocation9 + $0x2b0] sm:$0xff]
    %v1991 = vld [vmem:[#allocation9 + $0x2b8] sm:$0xff]
    %v1992 = vld [vmem:[#allocation9 + $0x2c0] sm:$0xff]
    %v1993 = vld [vmem:[#allocation9 + $0x2c8] sm:$0xff]
    %v1994 = vld [vmem:[#allocation9 + $0x2d0] sm:$0xff]
    %v1995 = vld [vmem:[#allocation9 + $0x2d8] sm:$0xff]
    %v1996 = vld [vmem:[#allocation9 + $0x2e0] sm:$0xff]
    %v1997 = vld [vmem:[#allocation9 + $0x2e8] sm:$0xff]
    %v1998 = vld [vmem:[#allocation9 + $0x2f0] sm:$0xff]
    %v1999 = vld [vmem:[#allocation9 + $0x2f8] sm:$0xff]
    %2000 = vmatpush.msra.mxu0 %v1994
    %2001 = vmatpush.msra.mxu0 %v1988
    %2002 = vmatpush.msra.mxu0 %v1982
    %2003 = vmatpush.msra.mxu0 %v1976
    %2004 = vmatpush.msra.mxu0 %v1970
    %2005 = vmatpush.msra.mxu0 %v1964
    %2006 = vmatpush.msra.mxu0 %v1958
    %2007 = vmatpush.msra.mxu0 %v1952
    %2008 = vmatpush.msra.mxu0 %v1946
    %2009 = vmatpush.msra.mxu0 %v1940
    %2010 = vmatpush.msra.mxu0 %v1934
    %2011 = vmatpush.msra.mxu0 %v1928
    %2012 = vmatpush.msra.mxu0 %v1922
    %2013 = vmatpush.msra.mxu0 %v1916
    %2014 = vmatpush.msra.mxu0 %v1910
    %2015 = vmatpush.msra.mxu0 %v1904
    %2016 = vmatmul.f32.gmra.mxu0 %v1896
    %v2017 = vpop.f32.mrf.mxu0
    %v2018 = vadd.f32 0.0, %v2017
    %2019 = vmatmul.f32.gmra.mxu0 %v1897
    %v2020 = vpop.f32.mrf.mxu0
    %v2021 = vadd.f32 0.0, %v2020
    %2022 = vmatmul.f32.gmra.mxu0 %v1898
    %v2023 = vpop.f32.mrf.mxu0
    %v2024 = vadd.f32 0.0, %v2023
    %2025 = vmatmul.f32.gmra.mxu0 %v1899
    %v2026 = vpop.f32.mrf.mxu0
    %v2027 = vadd.f32 0.0, %v2026
    %2028 = vmatmul.f32.gmra.mxu0 %v1900
    %v2029 = vpop.f32.mrf.mxu0
    %v2030 = vadd.f32 0.0, %v2029
    %2031 = vmatmul.f32.gmra.mxu0 %v1901
    %v2032 = vpop.f32.mrf.mxu0
    %v2033 = vadd.f32 0.0, %v2032
    %2034 = vmatmul.f32.gmra.mxu0 %v1902
    %v2035 = vpop.f32.mrf.mxu0
    %v2036 = vadd.f32 0.0, %v2035
    %2037 = vmatmul.f32.gmra.mxu0 %v1903
    %v2038 = vpop.f32.mrf.mxu0
    %v2039 = vadd.f32 0.0, %v2038
    %2040 = vdwg.mxu0
    %2041 = vmatpush.msra.mxu0 %v1995
    %2042 = vmatpush.msra.mxu0 %v1989
    %2043 = vmatpush.msra.mxu0 %v1983
    %2044 = vmatpush.msra.mxu0 %v1977
    %2045 = vmatpush.msra.mxu0 %v1971
    %2046 = vmatpush.msra.mxu0 %v1965
    %2047 = vmatpush.msra.mxu0 %v1959
    %2048 = vmatpush.msra.mxu0 %v1953
    %2049 = vmatpush.msra.mxu0 %v1947
    %2050 = vmatpush.msra.mxu0 %v1941
    %2051 = vmatpush.msra.mxu0 %v1935
    %2052 = vmatpush.msra.mxu0 %v1929
    %2053 = vmatpush.msra.mxu0 %v1923
    %2054 = vmatpush.msra.mxu0 %v1917
    %2055 = vmatpush.msra.mxu0 %v1911
    %2056 = vmatpush.msra.mxu0 %v1905
    %2057 = vmatmul.f32.gmra.mxu0 %v1896
    %v2058 = vpop.f32.mrf.mxu0
    %v2059 = vadd.f32 0.0, %v2058
    %2060 = vmatmul.f32.gmra.mxu0 %v1897
    %v2061 = vpop.f32.mrf.mxu0
    %v2062 = vadd.f32 0.0, %v2061
    %2063 = vmatmul.f32.gmra.mxu0 %v1898
    %v2064 = vpop.f32.mrf.mxu0
    %v2065 = vadd.f32 0.0, %v2064
    %2066 = vmatmul.f32.gmra.mxu0 %v1899
    %v2067 = vpop.f32.mrf.mxu0
    %v2068 = vadd.f32 0.0, %v2067
    %2069 = vmatmul.f32.gmra.mxu0 %v1900
    %v2070 = vpop.f32.mrf.mxu0
    %v2071 = vadd.f32 0.0, %v2070
    %2072 = vmatmul.f32.gmra.mxu0 %v1901
    %v2073 = vpop.f32.mrf.mxu0
    %v2074 = vadd.f32 0.0, %v2073
    %2075 = vmatmul.f32.gmra.mxu0 %v1902
    %v2076 = vpop.f32.mrf.mxu0
    %v2077 = vadd.f32 0.0, %v2076
    %2078 = vmatmul.f32.gmra.mxu0 %v1903
    %v2079 = vpop.f32.mrf.mxu0
    %v2080 = vadd.f32 0.0, %v2079
    %2081 = vdwg.mxu0
    %2082 = vmatpush.msra.mxu0 %v1996
    %2083 = vmatpush.msra.mxu0 %v1990
    %2084 = vmatpush.msra.mxu0 %v1984
    %2085 = vmatpush.msra.mxu0 %v1978
    %2086 = vmatpush.msra.mxu0 %v1972
    %2087 = vmatpush.msra.mxu0 %v1966
    %2088 = vmatpush.msra.mxu0 %v1960
    %2089 = vmatpush.msra.mxu0 %v1954
    %2090 = vmatpush.msra.mxu0 %v1948
    %2091 = vmatpush.msra.mxu0 %v1942
    %2092 = vmatpush.msra.mxu0 %v1936
    %2093 = vmatpush.msra.mxu0 %v1930
    %2094 = vmatpush.msra.mxu0 %v1924
    %2095 = vmatpush.msra.mxu0 %v1918
    %2096 = vmatpush.msra.mxu0 %v1912
    %2097 = vmatpush.msra.mxu0 %v1906
    %2098 = vmatmul.f32.gmra.mxu0 %v1896
    %v2099 = vpop.f32.mrf.mxu0
    %v2100 = vadd.f32 0.0, %v2099
    %2101 = vmatmul.f32.gmra.mxu0 %v1897
    %v2102 = vpop.f32.mrf.mxu0
    %v2103 = vadd.f32 0.0, %v2102
    %2104 = vmatmul.f32.gmra.mxu0 %v1898
    %v2105 = vpop.f32.mrf.mxu0
    %v2106 = vadd.f32 0.0, %v2105
    %2107 = vmatmul.f32.gmra.mxu0 %v1899
    %v2108 = vpop.f32.mrf.mxu0
    %v2109 = vadd.f32 0.0, %v2108
    %2110 = vmatmul.f32.gmra.mxu0 %v1900
    %v2111 = vpop.f32.mrf.mxu0
    %v2112 = vadd.f32 0.0, %v2111
    %2113 = vmatmul.f32.gmra.mxu0 %v1901
    %v2114 = vpop.f32.mrf.mxu0
    %v2115 = vadd.f32 0.0, %v2114
    %2116 = vmatmul.f32.gmra.mxu0 %v1902
    %v2117 = vpop.f32.mrf.mxu0
    %v2118 = vadd.f32 0.0, %v2117
    %2119 = vmatmul.f32.gmra.mxu0 %v1903
    %v2120 = vpop.f32.mrf.mxu0
    %v2121 = vadd.f32 0.0, %v2120
    %2122 = vdwg.mxu0
    %2123 = vmatpush.msra.mxu0 %v1997
    %2124 = vmatpush.msra.mxu0 %v1991
    %2125 = vmatpush.msra.mxu0 %v1985
    %2126 = vmatpush.msra.mxu0 %v1979
    %2127 = vmatpush.msra.mxu0 %v1973
    %2128 = vmatpush.msra.mxu0 %v1967
    %2129 = vmatpush.msra.mxu0 %v1961
    %2130 = vmatpush.msra.mxu0 %v1955
    %2131 = vmatpush.msra.mxu0 %v1949
    %2132 = vmatpush.msra.mxu0 %v1943
    %2133 = vmatpush.msra.mxu0 %v1937
    %2134 = vmatpush.msra.mxu0 %v1931
    %2135 = vmatpush.msra.mxu0 %v1925
    %2136 = vmatpush.msra.mxu0 %v1919
    %2137 = vmatpush.msra.mxu0 %v1913
    %2138 = vmatpush.msra.mxu0 %v1907
    %2139 = vmatmul.f32.gmra.mxu0 %v1896
    %v2140 = vpop.f32.mrf.mxu0
    %v2141 = vadd.f32 0.0, %v2140
    %2142 = vmatmul.f32.gmra.mxu0 %v1897
    %v2143 = vpop.f32.mrf.mxu0
    %v2144 = vadd.f32 0.0, %v2143
    %2145 = vmatmul.f32.gmra.mxu0 %v1898
    %v2146 = vpop.f32.mrf.mxu0
    %v2147 = vadd.f32 0.0, %v2146
    %2148 = vmatmul.f32.gmra.mxu0 %v1899
    %v2149 = vpop.f32.mrf.mxu0
    %v2150 = vadd.f32 0.0, %v2149
    %2151 = vmatmul.f32.gmra.mxu0 %v1900
    %v2152 = vpop.f32.mrf.mxu0
    %v2153 = vadd.f32 0.0, %v2152
    %2154 = vmatmul.f32.gmra.mxu0 %v1901
    %v2155 = vpop.f32.mrf.mxu0
    %v2156 = vadd.f32 0.0, %v2155
    %2157 = vmatmul.f32.gmra.mxu0 %v1902
    %v2158 = vpop.f32.mrf.mxu0
    %v2159 = vadd.f32 0.0, %v2158
    %2160 = vmatmul.f32.gmra.mxu0 %v1903
    %v2161 = vpop.f32.mrf.mxu0
    %v2162 = vadd.f32 0.0, %v2161
    %2163 = vdwg.mxu0
    %2164 = vmatpush.msra.mxu0 %v1998
    %2165 = vmatpush.msra.mxu0 %v1992
    %2166 = vmatpush.msra.mxu0 %v1986
    %2167 = vmatpush.msra.mxu0 %v1980
    %2168 = vmatpush.msra.mxu0 %v1974
    %2169 = vmatpush.msra.mxu0 %v1968
    %2170 = vmatpush.msra.mxu0 %v1962
    %2171 = vmatpush.msra.mxu0 %v1956
    %2172 = vmatpush.msra.mxu0 %v1950
    %2173 = vmatpush.msra.mxu0 %v1944
    %2174 = vmatpush.msra.mxu0 %v1938
    %2175 = vmatpush.msra.mxu0 %v1932
    %2176 = vmatpush.msra.mxu0 %v1926
    %2177 = vmatpush.msra.mxu0 %v1920
    %2178 = vmatpush.msra.mxu0 %v1914
    %2179 = vmatpush.msra.mxu0 %v1908
    %2180 = vmatmul.f32.gmra.mxu0 %v1896
    %v2181 = vpop.f32.mrf.mxu0
    %v2182 = vadd.f32 0.0, %v2181
    %2183 = vmatmul.f32.gmra.mxu0 %v1897
    %v2184 = vpop.f32.mrf.mxu0
    %v2185 = vadd.f32 0.0, %v2184
    %2186 = vmatmul.f32.gmra.mxu0 %v1898
    %v2187 = vpop.f32.mrf.mxu0
    %v2188 = vadd.f32 0.0, %v2187
    %2189 = vmatmul.f32.gmra.mxu0 %v1899
    %v2190 = vpop.f32.mrf.mxu0
    %v2191 = vadd.f32 0.0, %v2190
    %2192 = vmatmul.f32.gmra.mxu0 %v1900
    %v2193 = vpop.f32.mrf.mxu0
    %v2194 = vadd.f32 0.0, %v2193
    %2195 = vmatmul.f32.gmra.mxu0 %v1901
    %v2196 = vpop.f32.mrf.mxu0
    %v2197 = vadd.f32 0.0, %v2196
    %2198 = vmatmul.f32.gmra.mxu0 %v1902
    %v2199 = vpop.f32.mrf.mxu0
    %v2200 = vadd.f32 0.0, %v2199
    %2201 = vmatmul.f32.gmra.mxu0 %v1903
    %v2202 = vpop.f32.mrf.mxu0
    %v2203 = vadd.f32 0.0, %v2202
    %2204 = vdwg.mxu0
    %2205 = vmatpush.msra.mxu0 %v1999
    %2206 = vmatpush.msra.mxu0 %v1993
    %2207 = vmatpush.msra.mxu0 %v1987
    %2208 = vmatpush.msra.mxu0 %v1981
    %2209 = vmatpush.msra.mxu0 %v1975
    %2210 = vmatpush.msra.mxu0 %v1969
    %2211 = vmatpush.msra.mxu0 %v1963
    %2212 = vmatpush.msra.mxu0 %v1957
    %2213 = vmatpush.msra.mxu0 %v1951
    %2214 = vmatpush.msra.mxu0 %v1945
    %2215 = vmatpush.msra.mxu0 %v1939
    %2216 = vmatpush.msra.mxu0 %v1933
    %2217 = vmatpush.msra.mxu0 %v1927
    %2218 = vmatpush.msra.mxu0 %v1921
    %2219 = vmatpush.msra.mxu0 %v1915
    %2220 = vmatpush.msra.mxu0 %v1909
    %2221 = vmatmul.f32.gmra.mxu0 %v1896
    %v2222 = vpop.f32.mrf.mxu0
    %v2223 = vadd.f32 0.0, %v2222
    %2224 = vmatmul.f32.gmra.mxu0 %v1897
    %v2225 = vpop.f32.mrf.mxu0
    %v2226 = vadd.f32 0.0, %v2225
    %2227 = vmatmul.f32.gmra.mxu0 %v1898
    %v2228 = vpop.f32.mrf.mxu0
    %v2229 = vadd.f32 0.0, %v2228
    %2230 = vmatmul.f32.gmra.mxu0 %v1899
    %v2231 = vpop.f32.mrf.mxu0
    %v2232 = vadd.f32 0.0, %v2231
    %2233 = vmatmul.f32.gmra.mxu0 %v1900
    %v2234 = vpop.f32.mrf.mxu0
    %v2235 = vadd.f32 0.0, %v2234
    %2236 = vmatmul.f32.gmra.mxu0 %v1901
    %v2237 = vpop.f32.mrf.mxu0
    %v2238 = vadd.f32 0.0, %v2237
    %2239 = vmatmul.f32.gmra.mxu0 %v1902
    %v2240 = vpop.f32.mrf.mxu0
    %v2241 = vadd.f32 0.0, %v2240
    %2242 = vmatmul.f32.gmra.mxu0 %v1903
    %v2243 = vpop.f32.mrf.mxu0
    %v2244 = vadd.f32 0.0, %v2243
    %2245 = vdwg.mxu0
    %v2246 = vld [vmem:[%s7] sm:$0x7]
    %v2247 = vadd.f32 %v2018, %v2162
    %v2248 = vadd.f32 %v2059, %v2203
    %v2249 = vadd.f32 %v2100, %v2244
    %v2251 = vperm.slane %v2246, 0
    %v2252 = vperm.slane %v2246, 1
    %v2253 = vperm.slane %v2246, 2
    %v2257 = vadd.f32 %v2247, %v2251
    %v2258 = vadd.f32 %v2248, %v2252
    %v2259 = vadd.f32 %v2249, %v2253
    %2260 = vst [vmem:[#allocation2] sm:$0xff] %v2257
    %2261 = vst [vmem:[#allocation2 + $0x8] sm:$0xff] %v2258
    %2262 = vst [vmem:[#allocation2 + $0x10] sm:$0xff] %v2259
    %v2263 = vadd.f32 %v2021, %v2159
    %v2264 = vadd.f32 %v2062, %v2200
    %v2265 = vadd.f32 %v2103, %v2241
    %v2266 = vadd.f32 %v2263, %v2251
    %v2267 = vadd.f32 %v2264, %v2252
    %v2268 = vadd.f32 %v2265, %v2253
    %2269 = vst [vmem:[#allocation2 + $0x18] sm:$0xff] %v2266
    %2270 = vst [vmem:[#allocation2 + $0x20] sm:$0xff] %v2267
    %2271 = vst [vmem:[#allocation2 + $0x28] sm:$0xff] %v2268
    %v2272 = vadd.f32 %v2024, %v2156
    %v2273 = vadd.f32 %v2065, %v2197
    %v2274 = vadd.f32 %v2106, %v2238
    %v2275 = vadd.f32 %v2272, %v2251
    %v2276 = vadd.f32 %v2273, %v2252
    %v2277 = vadd.f32 %v2274, %v2253
    %2278 = vst [vmem:[#allocation2 + $0x30] sm:$0xff] %v2275
    %2279 = vst [vmem:[#allocation2 + $0x38] sm:$0xff] %v2276
    %2280 = vst [vmem:[#allocation2 + $0x40] sm:$0xff] %v2277
    %v2281 = vadd.f32 %v2027, %v2153
    %v2282 = vadd.f32 %v2068, %v2194
    %v2283 = vadd.f32 %v2109, %v2235
    %v2284 = vadd.f32 %v2281, %v2251
    %v2285 = vadd.f32 %v2282, %v2252
    %v2286 = vadd.f32 %v2283, %v2253
    %2287 = vst [vmem:[#allocation2 + $0x48] sm:$0xff] %v2284
    %2288 = vst [vmem:[#allocation2 + $0x50] sm:$0xff] %v2285
    %2289 = vst [vmem:[#allocation2 + $0x58] sm:$0xff] %v2286
    %v2290 = vadd.f32 %v2030, %v2150
    %v2291 = vadd.f32 %v2071, %v2191
    %v2292 = vadd.f32 %v2112, %v2232
    %v2293 = vadd.f32 %v2290, %v2251
    %v2294 = vadd.f32 %v2291, %v2252
    %v2295 = vadd.f32 %v2292, %v2253
    %2296 = vst [vmem:[#allocation2 + $0x60] sm:$0xff] %v2293
    %2297 = vst [vmem:[#allocation2 + $0x68] sm:$0xff] %v2294
    %2298 = vst [vmem:[#allocation2 + $0x70] sm:$0xff] %v2295
    %v2299 = vadd.f32 %v2033, %v2147
    %v2300 = vadd.f32 %v2074, %v2188
    %v2301 = vadd.f32 %v2115, %v2229
    %v2302 = vadd.f32 %v2299, %v2251
    %v2303 = vadd.f32 %v2300, %v2252
    %v2304 = vadd.f32 %v2301, %v2253
    %2305 = vst [vmem:[#allocation2 + $0x78] sm:$0xff] %v2302
    %2306 = vst [vmem:[#allocation2 + $0x80] sm:$0xff] %v2303
    %2307 = vst [vmem:[#allocation2 + $0x88] sm:$0xff] %v2304
    %v2308 = vadd.f32 %v2036, %v2144
    %v2309 = vadd.f32 %v2077, %v2185
    %v2310 = vadd.f32 %v2118, %v2226
    %v2311 = vadd.f32 %v2308, %v2251
    %v2312 = vadd.f32 %v2309, %v2252
    %v2313 = vadd.f32 %v2310, %v2253
    %2314 = vst [vmem:[#allocation2 + $0x90] sm:$0xff] %v2311
    %2315 = vst [vmem:[#allocation2 + $0x98] sm:$0xff] %v2312
    %2316 = vst [vmem:[#allocation2 + $0xa0] sm:$0xff] %v2313
    %v2317 = vadd.f32 %v2039, %v2141
    %v2318 = vadd.f32 %v2080, %v2182
    %v2319 = vadd.f32 %v2121, %v2223
    %v2320 = vadd.f32 %v2317, %v2251
    %v2321 = vadd.f32 %v2318, %v2252
    %v2322 = vadd.f32 %v2319, %v2253
    %2323 = vst [vmem:[#allocation2 + $0xa8] sm:$0xff] %v2320
    %2324 = vst [vmem:[#allocation2 + $0xb0] sm:$0xff] %v2321
    %2325 = vst [vmem:[#allocation2 + $0xb8] sm:$0xff] %v2322
    %v2326 = vld [vmem:[%s528] sm:$0xff]
    %v2327 = vld [vmem:[%s528 + $0x8] sm:$0xff]
    %v2328 = vld [vmem:[%s528 + $0x10] sm:$0xff]
    %v2329 = vld [vmem:[#allocation10] sm:$0xff]
    %v2330 = vld [vmem:[#allocation10 + $0x8] sm:$0xff]
    %v2331 = vld [vmem:[#allocation10 + $0x10] sm:$0xff]
    %v2332 = vld [vmem:[#allocation10 + $0x18] sm:$0xff]
    %v2333 = vld [vmem:[#allocation10 + $0x20] sm:$0xff]
    %v2334 = vld [vmem:[#allocation10 + $0x28] sm:$0xff]
    %v2335 = vld [vmem:[#allocation10 + $0x30] sm:$0xff]
    %v2336 = vld [vmem:[#allocation10 + $0x38] sm:$0xff]
    %v2337 = vld [vmem:[#allocation10 + $0x40] sm:$0xff]
    %v2338 = vld [vmem:[#allocation10 + $0x48] sm:$0xff]
    %v2339 = vld [vmem:[#allocation10 + $0x50] sm:$0xff]
    %v2340 = vld [vmem:[#allocation10 + $0x58] sm:$0xff]
    %v2341 = vld [vmem:[#allocation10 + $0x60] sm:$0xff]
    %v2342 = vld [vmem:[#allocation10 + $0x68] sm:$0xff]
    %v2343 = vld [vmem:[#allocation10 + $0x70] sm:$0xff]
    %v2344 = vld [vmem:[#allocation10 + $0x78] sm:$0xff]
    %v2345 = vld [vmem:[#allocation10 + $0x80] sm:$0xff]
    %v2346 = vld [vmem:[#allocation10 + $0x88] sm:$0xff]
    %v2347 = vld [vmem:[#allocation10 + $0x90] sm:$0xff]
    %v2348 = vld [vmem:[#allocation10 + $0x98] sm:$0xff]
    %v2349 = vld [vmem:[#allocation10 + $0xa0] sm:$0xff]
    %v2350 = vld [vmem:[#allocation10 + $0xa8] sm:$0xff]
    %v2351 = vld [vmem:[#allocation10 + $0xb0] sm:$0xff]
    %v2352 = vld [vmem:[#allocation10 + $0xb8] sm:$0xff]
    %v2353 = vld [vmem:[#allocation10 + $0xc0] sm:$0xff]
    %v2354 = vld [vmem:[#allocation10 + $0xc8] sm:$0xff]
    %v2355 = vld [vmem:[#allocation10 + $0xd0] sm:$0xff]
    %v2356 = vld [vmem:[#allocation10 + $0xd8] sm:$0xff]
    %v2357 = vld [vmem:[#allocation10 + $0xe0] sm:$0xff]
    %v2358 = vld [vmem:[#allocation10 + $0xe8] sm:$0xff]
    %v2359 = vld [vmem:[#allocation10 + $0xf0] sm:$0xff]
    %v2360 = vld [vmem:[#allocation10 + $0xf8] sm:$0xff]
    %v2361 = vld [vmem:[#allocation10 + $0x100] sm:$0xff]
    %v2362 = vld [vmem:[#allocation10 + $0x108] sm:$0xff]
    %v2363 = vld [vmem:[#allocation10 + $0x110] sm:$0xff]
    %v2364 = vld [vmem:[#allocation10 + $0x118] sm:$0xff]
    %v2365 = vld [vmem:[#allocation10 + $0x120] sm:$0xff]
    %v2366 = vld [vmem:[#allocation10 + $0x128] sm:$0xff]
    %v2367 = vld [vmem:[#allocation10 + $0x130] sm:$0xff]
    %v2368 = vld [vmem:[#allocation10 + $0x138] sm:$0xff]
    %v2369 = vld [vmem:[#allocation10 + $0x140] sm:$0xff]
    %v2370 = vld [vmem:[#allocation10 + $0x148] sm:$0xff]
    %v2371 = vld [vmem:[#allocation10 + $0x150] sm:$0xff]
    %v2372 = vld [vmem:[#allocation10 + $0x158] sm:$0xff]
    %v2373 = vld [vmem:[#allocation10 + $0x160] sm:$0xff]
    %v2374 = vld [vmem:[#allocation10 + $0x168] sm:$0xff]
    %v2375 = vld [vmem:[#allocation10 + $0x170] sm:$0xff]
    %v2376 = vld [vmem:[#allocation10 + $0x178] sm:$0xff]
    %2377 = vmatpush.msra.mxu0 %v2374
    %2378 = vmatpush.msra.mxu0 %v2371
    %2379 = vmatpush.msra.mxu0 %v2368
    %2380 = vmatpush.msra.mxu0 %v2365
    %2381 = vmatpush.msra.mxu0 %v2362
    %2382 = vmatpush.msra.mxu0 %v2359
    %2383 = vmatpush.msra.mxu0 %v2356
    %2384 = vmatpush.msra.mxu0 %v2353
    %2385 = vmatpush.msra.mxu0 %v2350
    %2386 = vmatpush.msra.mxu0 %v2347
    %2387 = vmatpush.msra.mxu0 %v2344
    %2388 = vmatpush.msra.mxu0 %v2341
    %2389 = vmatpush.msra.mxu0 %v2338
    %2390 = vmatpush.msra.mxu0 %v2335
    %2391 = vmatpush.msra.mxu0 %v2332
    %2392 = vmatpush.msra.mxu0 %v2329
    %2393 = vmatmul.f32.gmra.mxu0 0.0
    %v2394 = vpop.f32.mrf.mxu0
    %v2395 = vadd.f32 0.0, %v2394
    %2396 = vdwg.mxu0
    %2397 = vmatpush.msra.mxu0 %v2375
    %2398 = vmatpush.msra.mxu0 %v2372
    %2399 = vmatpush.msra.mxu0 %v2369
    %2400 = vmatpush.msra.mxu0 %v2366
    %2401 = vmatpush.msra.mxu0 %v2363
    %2402 = vmatpush.msra.mxu0 %v2360
    %2403 = vmatpush.msra.mxu0 %v2357
    %2404 = vmatpush.msra.mxu0 %v2354
    %2405 = vmatpush.msra.mxu0 %v2351
    %2406 = vmatpush.msra.mxu0 %v2348
    %2407 = vmatpush.msra.mxu0 %v2345
    %2408 = vmatpush.msra.mxu0 %v2342
    %2409 = vmatpush.msra.mxu0 %v2339
    %2410 = vmatpush.msra.mxu0 %v2336
    %2411 = vmatpush.msra.mxu0 %v2333
    %2412 = vmatpush.msra.mxu0 %v2330
    %2413 = vmatmul.f32.gmra.mxu0 0.0
    %v2414 = vpop.f32.mrf.mxu0
    %v2415 = vadd.f32 0.0, %v2414
    %2416 = vdwg.mxu0
    %2417 = vmatpush.msra.mxu0 %v2376
    %2418 = vmatpush.msra.mxu0 %v2373
    %2419 = vmatpush.msra.mxu0 %v2370
    %2420 = vmatpush.msra.mxu0 %v2367
    %2421 = vmatpush.msra.mxu0 %v2364
    %2422 = vmatpush.msra.mxu0 %v2361
    %2423 = vmatpush.msra.mxu0 %v2358
    %2424 = vmatpush.msra.mxu0 %v2355
    %2425 = vmatpush.msra.mxu0 %v2352
    %2426 = vmatpush.msra.mxu0 %v2349
    %2427 = vmatpush.msra.mxu0 %v2346
    %2428 = vmatpush.msra.mxu0 %v2343
    %2429 = vmatpush.msra.mxu0 %v2340
    %2430 = vmatpush.msra.mxu0 %v2337
    %2431 = vmatpush.msra.mxu0 %v2334
    %2432 = vmatpush.msra.mxu0 %v2331
    %2433 = vmatmul.f32.gmra.mxu0 0.0
    %v2434 = vpop.f32.mrf.mxu0
    %v2435 = vadd.f32 0.0, %v2434
    %2436 = vdwg.mxu0
    %v2437 = vadd.f32 %v2326, %v2395
    %v2438 = vxor.u32 %v2437, 2147483648
    %v2439 = vmul.f32 %v2438, 1.442695
    %v2440 = vpow.pop %v2439
    %v2441 = vadd.f32 %v2440, 1.0
    %v2442 = vrcp.pop %v2441
    %v2443 = vmul.f32 %v2441, %v2442
    %v2444 = vsub.f32 1.0, %v2443
    %v2445 = vmul.f32 %v2442, %v2444
    %v2446 = vadd.f32 %v2442, %v2445
    %vm2447 = vweird.f32 %v2441
    %vm2448 = vweird.f32 %v2442
    %vm2449 = vmor %vm2447, %vm2448
    %v2450 = vsel %vm2449, %v2442, %v2446
    %v2451 = vand.u32 2147483647, %v2441
    %vm2452 = vcmp.eq.f32.partialorder %v2451, 8.507059e+37
    %v2453 = vand.u32 %v2441, 2147483648
    %v2454 = vor.u32 1.1754944e-38, %v2453
    %v2455 = vsel %vm2452, %v2454, %v2450
    %v2456 = vmul.f32 1.0, %v2455
    %v2457 = vadd.f32 %v2327, %v2415
    %v2458 = vxor.u32 %v2457, 2147483648
    %v2459 = vmul.f32 %v2458, 1.442695
    %v2460 = vpow.pop %v2459
    %v2461 = vadd.f32 %v2460, 1.0
    %v2462 = vrcp.pop %v2461
    %v2463 = vmul.f32 %v2461, %v2462
    %v2464 = vsub.f32 1.0, %v2463
    %v2465 = vmul.f32 %v2462, %v2464
    %v2466 = vadd.f32 %v2462, %v2465
    %vm2467 = vweird.f32 %v2461
    %vm2468 = vweird.f32 %v2462
    %vm2469 = vmor %vm2467, %vm2468
    %v2470 = vsel %vm2469, %v2462, %v2466
    %v2471 = vand.u32 2147483647, %v2461
    %vm2472 = vcmp.eq.f32.partialorder %v2471, 8.507059e+37
    %v2473 = vand.u32 %v2461, 2147483648
    %v2474 = vor.u32 1.1754944e-38, %v2473
    %v2475 = vsel %vm2472, %v2474, %v2470
    %v2476 = vmul.f32 1.0, %v2475
    %v2477 = vld [vmem:[%s9] sm:$0x1]
    %v2479 = vperm.slane %v2477, 0
    %v2481 = vadd.f32 %v2435, %v2479
    %v2482 = vmul.f32 %v2456, %v2481
    %v2483 = vadd.f32 %v2328, %v2482
    %v2484 = vtanh.pop %v2483
    %v2485 = vsub.f32 1.0, %v2476
    %v2486 = vmul.f32 %v2485, %v2484
    %v2487 = vmul.f32 %v2476, 0.0
    %v2488 = vadd.f32 %v2486, %v2487
    %v2489 = vsel %vm696, %v2488, 0.0
    %v2490 = vld [vmem:[%s701] sm:$0xff]
    %v2491 = vld [vmem:[%s701 + $0x8] sm:$0xff]
    %v2492 = vld [vmem:[%s701 + $0x10] sm:$0xff]
    %2493 = vmatpush.msra.mxu0 %v2374
    %2494 = vmatpush.msra.mxu0 %v2371
    %2495 = vmatpush.msra.mxu0 %v2368
    %2496 = vmatpush.msra.mxu0 %v2365
    %2497 = vmatpush.msra.mxu0 %v2362
    %2498 = vmatpush.msra.mxu0 %v2359
    %2499 = vmatpush.msra.mxu0 %v2356
    %2500 = vmatpush.msra.mxu0 %v2353
    %2501 = vmatpush.msra.mxu0 %v2350
    %2502 = vmatpush.msra.mxu0 %v2347
    %2503 = vmatpush.msra.mxu0 %v2344
    %2504 = vmatpush.msra.mxu0 %v2341
    %2505 = vmatpush.msra.mxu0 %v2338
    %2506 = vmatpush.msra.mxu0 %v2335
    %2507 = vmatpush.msra.mxu0 %v2332
    %2508 = vmatpush.msra.mxu0 %v2329
    %2509 = vmatmul.f32.gmra.mxu0 %v2489
    %v2510 = vpop.f32.mrf.mxu0
    %v2511 = vadd.f32 0.0, %v2510
    %2512 = vdwg.mxu0
    %2513 = vmatpush.msra.mxu0 %v2375
    %2514 = vmatpush.msra.mxu0 %v2372
    %2515 = vmatpush.msra.mxu0 %v2369
    %2516 = vmatpush.msra.mxu0 %v2366
    %2517 = vmatpush.msra.mxu0 %v2363
    %2518 = vmatpush.msra.mxu0 %v2360
    %2519 = vmatpush.msra.mxu0 %v2357
    %2520 = vmatpush.msra.mxu0 %v2354
    %2521 = vmatpush.msra.mxu0 %v2351
    %2522 = vmatpush.msra.mxu0 %v2348
    %2523 = vmatpush.msra.mxu0 %v2345
    %2524 = vmatpush.msra.mxu0 %v2342
    %2525 = vmatpush.msra.mxu0 %v2339
    %2526 = vmatpush.msra.mxu0 %v2336
    %2527 = vmatpush.msra.mxu0 %v2333
    %2528 = vmatpush.msra.mxu0 %v2330
    %2529 = vmatmul.f32.gmra.mxu0 %v2489
    %v2530 = vpop.f32.mrf.mxu0
    %v2531 = vadd.f32 0.0, %v2530
    %2532 = vdwg.mxu0
    %2533 = vmatpush.msra.mxu0 %v2376
    %2534 = vmatpush.msra.mxu0 %v2373
    %2535 = vmatpush.msra.mxu0 %v2370
    %2536 = vmatpush.msra.mxu0 %v2367
    %2537 = vmatpush.msra.mxu0 %v2364
    %2538 = vmatpush.msra.mxu0 %v2361
    %2539 = vmatpush.msra.mxu0 %v2358
    %2540 = vmatpush.msra.mxu0 %v2355
    %2541 = vmatpush.msra.mxu0 %v2352
    %2542 = vmatpush.msra.mxu0 %v2349
    %2543 = vmatpush.msra.mxu0 %v2346
    %2544 = vmatpush.msra.mxu0 %v2343
    %2545 = vmatpush.msra.mxu0 %v2340
    %2546 = vmatpush.msra.mxu0 %v2337
    %2547 = vmatpush.msra.mxu0 %v2334
    %2548 = vmatpush.msra.mxu0 %v2331
    %2549 = vmatmul.f32.gmra.mxu0 %v2489
    %v2550 = vpop.f32.mrf.mxu0
    %v2551 = vadd.f32 0.0, %v2550
    %2552 = vdwg.mxu0
    %v2553 = vadd.f32 %v2490, %v2511
    %v2554 = vxor.u32 %v2553, 2147483648
    %v2555 = vmul.f32 %v2554, 1.442695
    %v2556 = vpow.pop %v2555
    %v2557 = vadd.f32 %v2556, 1.0
    %v2558 = vrcp.pop %v2557
    %v2559 = vmul.f32 %v2557, %v2558
    %v2560 = vsub.f32 1.0, %v2559
    %v2561 = vmul.f32 %v2558, %v2560
    %v2562 = vadd.f32 %v2558, %v2561
    %vm2563 = vweird.f32 %v2557
    %vm2564 = vweird.f32 %v2558
    %vm2565 = vmor %vm2563, %vm2564
    %v2566 = vsel %vm2565, %v2558, %v2562
    %v2567 = vand.u32 2147483647, %v2557
    %vm2568 = vcmp.eq.f32.partialorder %v2567, 8.507059e+37
    %v2569 = vand.u32 %v2557, 2147483648
    %v2570 = vor.u32 1.1754944e-38, %v2569
    %v2571 = vsel %vm2568, %v2570, %v2566
    %v2572 = vmul.f32 1.0, %v2571
    %v2573 = vadd.f32 %v2491, %v2531
    %v2574 = vxor.u32 %v2573, 2147483648
    %v2575 = vmul.f32 %v2574, 1.442695
    %v2576 = vpow.pop %v2575
    %v2577 = vadd.f32 %v2576, 1.0
    %v2578 = vrcp.pop %v2577
    %v2579 = vmul.f32 %v2577, %v2578
    %v2580 = vsub.f32 1.0, %v2579
    %v2581 = vmul.f32 %v2578, %v2580
    %v2582 = vadd.f32 %v2578, %v2581
    %vm2583 = vweird.f32 %v2577
    %vm2584 = vweird.f32 %v2578
    %vm2585 = vmor %vm2583, %vm2584
    %v2586 = vsel %vm2585, %v2578, %v2582
    %v2587 = vand.u32 2147483647, %v2577
    %vm2588 = vcmp.eq.f32.partialorder %v2587, 8.507059e+37
    %v2589 = vand.u32 %v2577, 2147483648
    %v2590 = vor.u32 1.1754944e-38, %v2589
    %v2591 = vsel %vm2588, %v2590, %v2586
    %v2592 = vmul.f32 1.0, %v2591
    %v2593 = vadd.f32 %v2551, %v2479
    %v2594 = vmul.f32 %v2572, %v2593
    %v2595 = vadd.f32 %v2492, %v2594
    %v2596 = vtanh.pop %v2595
    %v2597 = vsub.f32 1.0, %v2592
    %v2598 = vmul.f32 %v2597, %v2596
    %v2599 = vmul.f32 %v2592, %v2489
    %v2600 = vadd.f32 %v2598, %v2599
    %v2601 = vsel %vm866, %v2600, %v2489
    %v2602 = vld [vmem:[%s872] sm:$0xff]
    %v2603 = vld [vmem:[%s872 + $0x8] sm:$0xff]
    %v2604 = vld [vmem:[%s872 + $0x10] sm:$0xff]
    %2605 = vmatpush.msra.mxu0 %v2374
    %2606 = vmatpush.msra.mxu0 %v2371
    %2607 = vmatpush.msra.mxu0 %v2368
    %2608 = vmatpush.msra.mxu0 %v2365
    %2609 = vmatpush.msra.mxu0 %v2362
    %2610 = vmatpush.msra.mxu0 %v2359
    %2611 = vmatpush.msra.mxu0 %v2356
    %2612 = vmatpush.msra.mxu0 %v2353
    %2613 = vmatpush.msra.mxu0 %v2350
    %2614 = vmatpush.msra.mxu0 %v2347
    %2615 = vmatpush.msra.mxu0 %v2344
    %2616 = vmatpush.msra.mxu0 %v2341
    %2617 = vmatpush.msra.mxu0 %v2338
    %2618 = vmatpush.msra.mxu0 %v2335
    %2619 = vmatpush.msra.mxu0 %v2332
    %2620 = vmatpush.msra.mxu0 %v2329
    %2621 = vmatmul.f32.gmra.mxu0 %v2601
    %v2622 = vpop.f32.mrf.mxu0
    %v2623 = vadd.f32 0.0, %v2622
    %2624 = vdwg.mxu0
    %2625 = vmatpush.msra.mxu0 %v2375
    %2626 = vmatpush.msra.mxu0 %v2372
    %2627 = vmatpush.msra.mxu0 %v2369
    %2628 = vmatpush.msra.mxu0 %v2366
    %2629 = vmatpush.msra.mxu0 %v2363
    %2630 = vmatpush.msra.mxu0 %v2360
    %2631 = vmatpush.msra.mxu0 %v2357
    %2632 = vmatpush.msra.mxu0 %v2354
    %2633 = vmatpush.msra.mxu0 %v2351
    %2634 = vmatpush.msra.mxu0 %v2348
    %2635 = vmatpush.msra.mxu0 %v2345
    %2636 = vmatpush.msra.mxu0 %v2342
    %2637 = vmatpush.msra.mxu0 %v2339
    %2638 = vmatpush.msra.mxu0 %v2336
    %2639 = vmatpush.msra.mxu0 %v2333
    %2640 = vmatpush.msra.mxu0 %v2330
    %2641 = vmatmul.f32.gmra.mxu0 %v2601
    %v2642 = vpop.f32.mrf.mxu0
    %v2643 = vadd.f32 0.0, %v2642
    %2644 = vdwg.mxu0
    %2645 = vmatpush.msra.mxu0 %v2376
    %2646 = vmatpush.msra.mxu0 %v2373
    %2647 = vmatpush.msra.mxu0 %v2370
    %2648 = vmatpush.msra.mxu0 %v2367
    %2649 = vmatpush.msra.mxu0 %v2364
    %2650 = vmatpush.msra.mxu0 %v2361
    %2651 = vmatpush.msra.mxu0 %v2358
    %2652 = vmatpush.msra.mxu0 %v2355
    %2653 = vmatpush.msra.mxu0 %v2352
    %2654 = vmatpush.msra.mxu0 %v2349
    %2655 = vmatpush.msra.mxu0 %v2346
    %2656 = vmatpush.msra.mxu0 %v2343
    %2657 = vmatpush.msra.mxu0 %v2340
    %2658 = vmatpush.msra.mxu0 %v2337
    %2659 = vmatpush.msra.mxu0 %v2334
    %2660 = vmatpush.msra.mxu0 %v2331
    %2661 = vmatmul.f32.gmra.mxu0 %v2601
    %v2662 = vpop.f32.mrf.mxu0
    %v2663 = vadd.f32 0.0, %v2662
    %2664 = vdwg.mxu0
    %v2665 = vadd.f32 %v2602, %v2623
    %v2666 = vxor.u32 %v2665, 2147483648
    %v2667 = vmul.f32 %v2666, 1.442695
    %v2668 = vpow.pop %v2667
    %v2669 = vadd.f32 %v2668, 1.0
    %v2670 = vrcp.pop %v2669
    %v2671 = vmul.f32 %v2669, %v2670
    %v2672 = vsub.f32 1.0, %v2671
    %v2673 = vmul.f32 %v2670, %v2672
    %v2674 = vadd.f32 %v2670, %v2673
    %vm2675 = vweird.f32 %v2669
    %vm2676 = vweird.f32 %v2670
    %vm2677 = vmor %vm2675, %vm2676
    %v2678 = vsel %vm2677, %v2670, %v2674
    %v2679 = vand.u32 2147483647, %v2669
    %vm2680 = vcmp.eq.f32.partialorder %v2679, 8.507059e+37
    %v2681 = vand.u32 %v2669, 2147483648
    %v2682 = vor.u32 1.1754944e-38, %v2681
    %v2683 = vsel %vm2680, %v2682, %v2678
    %v2684 = vmul.f32 1.0, %v2683
    %v2685 = vadd.f32 %v2603, %v2643
    %v2686 = vxor.u32 %v2685, 2147483648
    %v2687 = vmul.f32 %v2686, 1.442695
    %v2688 = vpow.pop %v2687
    %v2689 = vadd.f32 %v2688, 1.0
    %v2690 = vrcp.pop %v2689
    %v2691 = vmul.f32 %v2689, %v2690
    %v2692 = vsub.f32 1.0, %v2691
    %v2693 = vmul.f32 %v2690, %v2692
    %v2694 = vadd.f32 %v2690, %v2693
    %vm2695 = vweird.f32 %v2689
    %vm2696 = vweird.f32 %v2690
    %vm2697 = vmor %vm2695, %vm2696
    %v2698 = vsel %vm2697, %v2690, %v2694
    %v2699 = vand.u32 2147483647, %v2689
    %vm2700 = vcmp.eq.f32.partialorder %v2699, 8.507059e+37
    %v2701 = vand.u32 %v2689, 2147483648
    %v2702 = vor.u32 1.1754944e-38, %v2701
    %v2703 = vsel %vm2700, %v2702, %v2698
    %v2704 = vmul.f32 1.0, %v2703
    %v2705 = vadd.f32 %v2663, %v2479
    %v2706 = vmul.f32 %v2684, %v2705
    %v2707 = vadd.f32 %v2604, %v2706
    %v2708 = vtanh.pop %v2707
    %v2709 = vsub.f32 1.0, %v2704
    %v2710 = vmul.f32 %v2709, %v2708
    %v2711 = vmul.f32 %v2704, %v2601
    %v2712 = vadd.f32 %v2710, %v2711
    %v2713 = vsel %vm1037, %v2712, %v2601
    %v2714 = vld [vmem:[%s1043] sm:$0xff]
    %v2715 = vld [vmem:[%s1043 + $0x8] sm:$0xff]
    %v2716 = vld [vmem:[%s1043 + $0x10] sm:$0xff]
    %2717 = vmatpush.msra.mxu0 %v2374
    %2718 = vmatpush.msra.mxu0 %v2371
    %2719 = vmatpush.msra.mxu0 %v2368
    %2720 = vmatpush.msra.mxu0 %v2365
    %2721 = vmatpush.msra.mxu0 %v2362
    %2722 = vmatpush.msra.mxu0 %v2359
    %2723 = vmatpush.msra.mxu0 %v2356
    %2724 = vmatpush.msra.mxu0 %v2353
    %2725 = vmatpush.msra.mxu0 %v2350
    %2726 = vmatpush.msra.mxu0 %v2347
    %2727 = vmatpush.msra.mxu0 %v2344
    %2728 = vmatpush.msra.mxu0 %v2341
    %2729 = vmatpush.msra.mxu0 %v2338
    %2730 = vmatpush.msra.mxu0 %v2335
    %2731 = vmatpush.msra.mxu0 %v2332
    %2732 = vmatpush.msra.mxu0 %v2329
    %2733 = vmatmul.f32.gmra.mxu0 %v2713
    %v2734 = vpop.f32.mrf.mxu0
    %v2735 = vadd.f32 0.0, %v2734
    %2736 = vdwg.mxu0
    %2737 = vmatpush.msra.mxu0 %v2375
    %2738 = vmatpush.msra.mxu0 %v2372
    %2739 = vmatpush.msra.mxu0 %v2369
    %2740 = vmatpush.msra.mxu0 %v2366
    %2741 = vmatpush.msra.mxu0 %v2363
    %2742 = vmatpush.msra.mxu0 %v2360
    %2743 = vmatpush.msra.mxu0 %v2357
    %2744 = vmatpush.msra.mxu0 %v2354
    %2745 = vmatpush.msra.mxu0 %v2351
    %2746 = vmatpush.msra.mxu0 %v2348
    %2747 = vmatpush.msra.mxu0 %v2345
    %2748 = vmatpush.msra.mxu0 %v2342
    %2749 = vmatpush.msra.mxu0 %v2339
    %2750 = vmatpush.msra.mxu0 %v2336
    %2751 = vmatpush.msra.mxu0 %v2333
    %2752 = vmatpush.msra.mxu0 %v2330
    %2753 = vmatmul.f32.gmra.mxu0 %v2713
    %v2754 = vpop.f32.mrf.mxu0
    %v2755 = vadd.f32 0.0, %v2754
    %2756 = vdwg.mxu0
    %2757 = vmatpush.msra.mxu0 %v2376
    %2758 = vmatpush.msra.mxu0 %v2373
    %2759 = vmatpush.msra.mxu0 %v2370
    %2760 = vmatpush.msra.mxu0 %v2367
    %2761 = vmatpush.msra.mxu0 %v2364
    %2762 = vmatpush.msra.mxu0 %v2361
    %2763 = vmatpush.msra.mxu0 %v2358
    %2764 = vmatpush.msra.mxu0 %v2355
    %2765 = vmatpush.msra.mxu0 %v2352
    %2766 = vmatpush.msra.mxu0 %v2349
    %2767 = vmatpush.msra.mxu0 %v2346
    %2768 = vmatpush.msra.mxu0 %v2343
    %2769 = vmatpush.msra.mxu0 %v2340
    %2770 = vmatpush.msra.mxu0 %v2337
    %2771 = vmatpush.msra.mxu0 %v2334
    %2772 = vmatpush.msra.mxu0 %v2331
    %2773 = vmatmul.f32.gmra.mxu0 %v2713
    %v2774 = vpop.f32.mrf.mxu0
    %v2775 = vadd.f32 0.0, %v2774
    %2776 = vdwg.mxu0
    %v2777 = vadd.f32 %v2714, %v2735
    %v2778 = vxor.u32 %v2777, 2147483648
    %v2779 = vmul.f32 %v2778, 1.442695
    %v2780 = vpow.pop %v2779
    %v2781 = vadd.f32 %v2780, 1.0
    %v2782 = vrcp.pop %v2781
    %v2783 = vmul.f32 %v2781, %v2782
    %v2784 = vsub.f32 1.0, %v2783
    %v2785 = vmul.f32 %v2782, %v2784
    %v2786 = vadd.f32 %v2782, %v2785
    %vm2787 = vweird.f32 %v2781
    %vm2788 = vweird.f32 %v2782
    %vm2789 = vmor %vm2787, %vm2788
    %v2790 = vsel %vm2789, %v2782, %v2786
    %v2791 = vand.u32 2147483647, %v2781
    %vm2792 = vcmp.eq.f32.partialorder %v2791, 8.507059e+37
    %v2793 = vand.u32 %v2781, 2147483648
    %v2794 = vor.u32 1.1754944e-38, %v2793
    %v2795 = vsel %vm2792, %v2794, %v2790
    %v2796 = vmul.f32 1.0, %v2795
    %v2797 = vadd.f32 %v2715, %v2755
    %v2798 = vxor.u32 %v2797, 2147483648
    %v2799 = vmul.f32 %v2798, 1.442695
    %v2800 = vpow.pop %v2799
    %v2801 = vadd.f32 %v2800, 1.0
    %v2802 = vrcp.pop %v2801
    %v2803 = vmul.f32 %v2801, %v2802
    %v2804 = vsub.f32 1.0, %v2803
    %v2805 = vmul.f32 %v2802, %v2804
    %v2806 = vadd.f32 %v2802, %v2805
    %vm2807 = vweird.f32 %v2801
    %vm2808 = vweird.f32 %v2802
    %vm2809 = vmor %vm2807, %vm2808
    %v2810 = vsel %vm2809, %v2802, %v2806
    %v2811 = vand.u32 2147483647, %v2801
    %vm2812 = vcmp.eq.f32.partialorder %v2811, 8.507059e+37
    %v2813 = vand.u32 %v2801, 2147483648
    %v2814 = vor.u32 1.1754944e-38, %v2813
    %v2815 = vsel %vm2812, %v2814, %v2810
    %v2816 = vmul.f32 1.0, %v2815
    %v2817 = vadd.f32 %v2775, %v2479
    %v2818 = vmul.f32 %v2796, %v2817
    %v2819 = vadd.f32 %v2716, %v2818
    %v2820 = vtanh.pop %v2819
    %v2821 = vsub.f32 1.0, %v2816
    %v2822 = vmul.f32 %v2821, %v2820
    %v2823 = vmul.f32 %v2816, %v2713
    %v2824 = vadd.f32 %v2822, %v2823
    %v2825 = vsel %vm1208, %v2824, %v2713
    %v2826 = vld [vmem:[%s1214] sm:$0xff]
    %v2827 = vld [vmem:[%s1214 + $0x8] sm:$0xff]
    %v2828 = vld [vmem:[%s1214 + $0x10] sm:$0xff]
    %2829 = vmatpush.msra.mxu0 %v2374
    %2830 = vmatpush.msra.mxu0 %v2371
    %2831 = vmatpush.msra.mxu0 %v2368
    %2832 = vmatpush.msra.mxu0 %v2365
    %2833 = vmatpush.msra.mxu0 %v2362
    %2834 = vmatpush.msra.mxu0 %v2359
    %2835 = vmatpush.msra.mxu0 %v2356
    %2836 = vmatpush.msra.mxu0 %v2353
    %2837 = vmatpush.msra.mxu0 %v2350
    %2838 = vmatpush.msra.mxu0 %v2347
    %2839 = vmatpush.msra.mxu0 %v2344
    %2840 = vmatpush.msra.mxu0 %v2341
    %2841 = vmatpush.msra.mxu0 %v2338
    %2842 = vmatpush.msra.mxu0 %v2335
    %2843 = vmatpush.msra.mxu0 %v2332
    %2844 = vmatpush.msra.mxu0 %v2329
    %2845 = vmatmul.f32.gmra.mxu0 %v2825
    %v2846 = vpop.f32.mrf.mxu0
    %v2847 = vadd.f32 0.0, %v2846
    %2848 = vdwg.mxu0
    %2849 = vmatpush.msra.mxu0 %v2375
    %2850 = vmatpush.msra.mxu0 %v2372
    %2851 = vmatpush.msra.mxu0 %v2369
    %2852 = vmatpush.msra.mxu0 %v2366
    %2853 = vmatpush.msra.mxu0 %v2363
    %2854 = vmatpush.msra.mxu0 %v2360
    %2855 = vmatpush.msra.mxu0 %v2357
    %2856 = vmatpush.msra.mxu0 %v2354
    %2857 = vmatpush.msra.mxu0 %v2351
    %2858 = vmatpush.msra.mxu0 %v2348
    %2859 = vmatpush.msra.mxu0 %v2345
    %2860 = vmatpush.msra.mxu0 %v2342
    %2861 = vmatpush.msra.mxu0 %v2339
    %2862 = vmatpush.msra.mxu0 %v2336
    %2863 = vmatpush.msra.mxu0 %v2333
    %2864 = vmatpush.msra.mxu0 %v2330
    %2865 = vmatmul.f32.gmra.mxu0 %v2825
    %v2866 = vpop.f32.mrf.mxu0
    %v2867 = vadd.f32 0.0, %v2866
    %2868 = vdwg.mxu0
    %2869 = vmatpush.msra.mxu0 %v2376
    %2870 = vmatpush.msra.mxu0 %v2373
    %2871 = vmatpush.msra.mxu0 %v2370
    %2872 = vmatpush.msra.mxu0 %v2367
    %2873 = vmatpush.msra.mxu0 %v2364
    %2874 = vmatpush.msra.mxu0 %v2361
    %2875 = vmatpush.msra.mxu0 %v2358
    %2876 = vmatpush.msra.mxu0 %v2355
    %2877 = vmatpush.msra.mxu0 %v2352
    %2878 = vmatpush.msra.mxu0 %v2349
    %2879 = vmatpush.msra.mxu0 %v2346
    %2880 = vmatpush.msra.mxu0 %v2343
    %2881 = vmatpush.msra.mxu0 %v2340
    %2882 = vmatpush.msra.mxu0 %v2337
    %2883 = vmatpush.msra.mxu0 %v2334
    %2884 = vmatpush.msra.mxu0 %v2331
    %2885 = vmatmul.f32.gmra.mxu0 %v2825
    %v2886 = vpop.f32.mrf.mxu0
    %v2887 = vadd.f32 0.0, %v2886
    %2888 = vdwg.mxu0
    %v2889 = vadd.f32 %v2826, %v2847
    %v2890 = vxor.u32 %v2889, 2147483648
    %v2891 = vmul.f32 %v2890, 1.442695
    %v2892 = vpow.pop %v2891
    %v2893 = vadd.f32 %v2892, 1.0
    %v2894 = vrcp.pop %v2893
    %v2895 = vmul.f32 %v2893, %v2894
    %v2896 = vsub.f32 1.0, %v2895
    %v2897 = vmul.f32 %v2894, %v2896
    %v2898 = vadd.f32 %v2894, %v2897
    %vm2899 = vweird.f32 %v2893
    %vm2900 = vweird.f32 %v2894
    %vm2901 = vmor %vm2899, %vm2900
    %v2902 = vsel %vm2901, %v2894, %v2898
    %v2903 = vand.u32 2147483647, %v2893
    %vm2904 = vcmp.eq.f32.partialorder %v2903, 8.507059e+37
    %v2905 = vand.u32 %v2893, 2147483648
    %v2906 = vor.u32 1.1754944e-38, %v2905
    %v2907 = vsel %vm2904, %v2906, %v2902
    %v2908 = vmul.f32 1.0, %v2907
    %v2909 = vadd.f32 %v2827, %v2867
    %v2910 = vxor.u32 %v2909, 2147483648
    %v2911 = vmul.f32 %v2910, 1.442695
    %v2912 = vpow.pop %v2911
    %v2913 = vadd.f32 %v2912, 1.0
    %v2914 = vrcp.pop %v2913
    %v2915 = vmul.f32 %v2913, %v2914
    %v2916 = vsub.f32 1.0, %v2915
    %v2917 = vmul.f32 %v2914, %v2916
    %v2918 = vadd.f32 %v2914, %v2917
    %vm2919 = vweird.f32 %v2913
    %vm2920 = vweird.f32 %v2914
    %vm2921 = vmor %vm2919, %vm2920
    %v2922 = vsel %vm2921, %v2914, %v2918
    %v2923 = vand.u32 2147483647, %v2913
    %vm2924 = vcmp.eq.f32.partialorder %v2923, 8.507059e+37
    %v2925 = vand.u32 %v2913, 2147483648
    %v2926 = vor.u32 1.1754944e-38, %v2925
    %v2927 = vsel %vm2924, %v2926, %v2922
    %v2928 = vmul.f32 1.0, %v2927
    %v2929 = vadd.f32 %v2887, %v2479
    %v2930 = vmul.f32 %v2908, %v2929
    %v2931 = vadd.f32 %v2828, %v2930
    %v2932 = vtanh.pop %v2931
    %v2933 = vsub.f32 1.0, %v2928
    %v2934 = vmul.f32 %v2933, %v2932
    %v2935 = vmul.f32 %v2928, %v2825
    %v2936 = vadd.f32 %v2934, %v2935
    %v2937 = vsel %vm1379, %v2936, %v2825
    %v2938 = vld [vmem:[%s1385] sm:$0xff]
    %v2939 = vld [vmem:[%s1385 + $0x8] sm:$0xff]
    %v2940 = vld [vmem:[%s1385 + $0x10] sm:$0xff]
    %2941 = vmatpush.msra.mxu0 %v2374
    %2942 = vmatpush.msra.mxu0 %v2371
    %2943 = vmatpush.msra.mxu0 %v2368
    %2944 = vmatpush.msra.mxu0 %v2365
    %2945 = vmatpush.msra.mxu0 %v2362
    %2946 = vmatpush.msra.mxu0 %v2359
    %2947 = vmatpush.msra.mxu0 %v2356
    %2948 = vmatpush.msra.mxu0 %v2353
    %2949 = vmatpush.msra.mxu0 %v2350
    %2950 = vmatpush.msra.mxu0 %v2347
    %2951 = vmatpush.msra.mxu0 %v2344
    %2952 = vmatpush.msra.mxu0 %v2341
    %2953 = vmatpush.msra.mxu0 %v2338
    %2954 = vmatpush.msra.mxu0 %v2335
    %2955 = vmatpush.msra.mxu0 %v2332
    %2956 = vmatpush.msra.mxu0 %v2329
    %2957 = vmatmul.f32.gmra.mxu0 %v2937
    %v2958 = vpop.f32.mrf.mxu0
    %v2959 = vadd.f32 0.0, %v2958
    %2960 = vdwg.mxu0
    %2961 = vmatpush.msra.mxu0 %v2375
    %2962 = vmatpush.msra.mxu0 %v2372
    %2963 = vmatpush.msra.mxu0 %v2369
    %2964 = vmatpush.msra.mxu0 %v2366
    %2965 = vmatpush.msra.mxu0 %v2363
    %2966 = vmatpush.msra.mxu0 %v2360
    %2967 = vmatpush.msra.mxu0 %v2357
    %2968 = vmatpush.msra.mxu0 %v2354
    %2969 = vmatpush.msra.mxu0 %v2351
    %2970 = vmatpush.msra.mxu0 %v2348
    %2971 = vmatpush.msra.mxu0 %v2345
    %2972 = vmatpush.msra.mxu0 %v2342
    %2973 = vmatpush.msra.mxu0 %v2339
    %2974 = vmatpush.msra.mxu0 %v2336
    %2975 = vmatpush.msra.mxu0 %v2333
    %2976 = vmatpush.msra.mxu0 %v2330
    %2977 = vmatmul.f32.gmra.mxu0 %v2937
    %v2978 = vpop.f32.mrf.mxu0
    %v2979 = vadd.f32 0.0, %v2978
    %2980 = vdwg.mxu0
    %2981 = vmatpush.msra.mxu0 %v2376
    %2982 = vmatpush.msra.mxu0 %v2373
    %2983 = vmatpush.msra.mxu0 %v2370
    %2984 = vmatpush.msra.mxu0 %v2367
    %2985 = vmatpush.msra.mxu0 %v2364
    %2986 = vmatpush.msra.mxu0 %v2361
    %2987 = vmatpush.msra.mxu0 %v2358
    %2988 = vmatpush.msra.mxu0 %v2355
    %2989 = vmatpush.msra.mxu0 %v2352
    %2990 = vmatpush.msra.mxu0 %v2349
    %2991 = vmatpush.msra.mxu0 %v2346
    %2992 = vmatpush.msra.mxu0 %v2343
    %2993 = vmatpush.msra.mxu0 %v2340
    %2994 = vmatpush.msra.mxu0 %v2337
    %2995 = vmatpush.msra.mxu0 %v2334
    %2996 = vmatpush.msra.mxu0 %v2331
    %2997 = vmatmul.f32.gmra.mxu0 %v2937
    %v2998 = vpop.f32.mrf.mxu0
    %v2999 = vadd.f32 0.0, %v2998
    %3000 = vdwg.mxu0
    %v3001 = vadd.f32 %v2938, %v2959
    %v3002 = vxor.u32 %v3001, 2147483648
    %v3003 = vmul.f32 %v3002, 1.442695
    %v3004 = vpow.pop %v3003
    %v3005 = vadd.f32 %v3004, 1.0
    %v3006 = vrcp.pop %v3005
    %v3007 = vmul.f32 %v3005, %v3006
    %v3008 = vsub.f32 1.0, %v3007
    %v3009 = vmul.f32 %v3006, %v3008
    %v3010 = vadd.f32 %v3006, %v3009
    %vm3011 = vweird.f32 %v3005
    %vm3012 = vweird.f32 %v3006
    %vm3013 = vmor %vm3011, %vm3012
    %v3014 = vsel %vm3013, %v3006, %v3010
    %v3015 = vand.u32 2147483647, %v3005
    %vm3016 = vcmp.eq.f32.partialorder %v3015, 8.507059e+37
    %v3017 = vand.u32 %v3005, 2147483648
    %v3018 = vor.u32 1.1754944e-38, %v3017
    %v3019 = vsel %vm3016, %v3018, %v3014
    %v3020 = vmul.f32 1.0, %v3019
    %v3021 = vadd.f32 %v2939, %v2979
    %v3022 = vxor.u32 %v3021, 2147483648
    %v3023 = vmul.f32 %v3022, 1.442695
    %v3024 = vpow.pop %v3023
    %v3025 = vadd.f32 %v3024, 1.0
    %v3026 = vrcp.pop %v3025
    %v3027 = vmul.f32 %v3025, %v3026
    %v3028 = vsub.f32 1.0, %v3027
    %v3029 = vmul.f32 %v3026, %v3028
    %v3030 = vadd.f32 %v3026, %v3029
    %vm3031 = vweird.f32 %v3025
    %vm3032 = vweird.f32 %v3026
    %vm3033 = vmor %vm3031, %vm3032
    %v3034 = vsel %vm3033, %v3026, %v3030
    %v3035 = vand.u32 2147483647, %v3025
    %vm3036 = vcmp.eq.f32.partialorder %v3035, 8.507059e+37
    %v3037 = vand.u32 %v3025, 2147483648
    %v3038 = vor.u32 1.1754944e-38, %v3037
    %v3039 = vsel %vm3036, %v3038, %v3034
    %v3040 = vmul.f32 1.0, %v3039
    %v3041 = vadd.f32 %v2999, %v2479
    %v3042 = vmul.f32 %v3020, %v3041
    %v3043 = vadd.f32 %v2940, %v3042
    %v3044 = vtanh.pop %v3043
    %v3045 = vsub.f32 1.0, %v3040
    %v3046 = vmul.f32 %v3045, %v3044
    %v3047 = vmul.f32 %v3040, %v2937
    %v3048 = vadd.f32 %v3046, %v3047
    %v3049 = vsel %vm1550, %v3048, %v2937
    %v3050 = vld [vmem:[%s1556] sm:$0xff]
    %v3051 = vld [vmem:[%s1556 + $0x8] sm:$0xff]
    %v3052 = vld [vmem:[%s1556 + $0x10] sm:$0xff]
    %3053 = vmatpush.msra.mxu0 %v2374
    %3054 = vmatpush.msra.mxu0 %v2371
    %3055 = vmatpush.msra.mxu0 %v2368
    %3056 = vmatpush.msra.mxu0 %v2365
    %3057 = vmatpush.msra.mxu0 %v2362
    %3058 = vmatpush.msra.mxu0 %v2359
    %3059 = vmatpush.msra.mxu0 %v2356
    %3060 = vmatpush.msra.mxu0 %v2353
    %3061 = vmatpush.msra.mxu0 %v2350
    %3062 = vmatpush.msra.mxu0 %v2347
    %3063 = vmatpush.msra.mxu0 %v2344
    %3064 = vmatpush.msra.mxu0 %v2341
    %3065 = vmatpush.msra.mxu0 %v2338
    %3066 = vmatpush.msra.mxu0 %v2335
    %3067 = vmatpush.msra.mxu0 %v2332
    %3068 = vmatpush.msra.mxu0 %v2329
    %3069 = vmatmul.f32.gmra.mxu0 %v3049
    %v3070 = vpop.f32.mrf.mxu0
    %v3071 = vadd.f32 0.0, %v3070
    %3072 = vdwg.mxu0
    %3073 = vmatpush.msra.mxu0 %v2375
    %3074 = vmatpush.msra.mxu0 %v2372
    %3075 = vmatpush.msra.mxu0 %v2369
    %3076 = vmatpush.msra.mxu0 %v2366
    %3077 = vmatpush.msra.mxu0 %v2363
    %3078 = vmatpush.msra.mxu0 %v2360
    %3079 = vmatpush.msra.mxu0 %v2357
    %3080 = vmatpush.msra.mxu0 %v2354
    %3081 = vmatpush.msra.mxu0 %v2351
    %3082 = vmatpush.msra.mxu0 %v2348
    %3083 = vmatpush.msra.mxu0 %v2345
    %3084 = vmatpush.msra.mxu0 %v2342
    %3085 = vmatpush.msra.mxu0 %v2339
    %3086 = vmatpush.msra.mxu0 %v2336
    %3087 = vmatpush.msra.mxu0 %v2333
    %3088 = vmatpush.msra.mxu0 %v2330
    %3089 = vmatmul.f32.gmra.mxu0 %v3049
    %v3090 = vpop.f32.mrf.mxu0
    %v3091 = vadd.f32 0.0, %v3090
    %3092 = vdwg.mxu0
    %3093 = vmatpush.msra.mxu0 %v2376
    %3094 = vmatpush.msra.mxu0 %v2373
    %3095 = vmatpush.msra.mxu0 %v2370
    %3096 = vmatpush.msra.mxu0 %v2367
    %3097 = vmatpush.msra.mxu0 %v2364
    %3098 = vmatpush.msra.mxu0 %v2361
    %3099 = vmatpush.msra.mxu0 %v2358
    %3100 = vmatpush.msra.mxu0 %v2355
    %3101 = vmatpush.msra.mxu0 %v2352
    %3102 = vmatpush.msra.mxu0 %v2349
    %3103 = vmatpush.msra.mxu0 %v2346
    %3104 = vmatpush.msra.mxu0 %v2343
    %3105 = vmatpush.msra.mxu0 %v2340
    %3106 = vmatpush.msra.mxu0 %v2337
    %3107 = vmatpush.msra.mxu0 %v2334
    %3108 = vmatpush.msra.mxu0 %v2331
    %3109 = vmatmul.f32.gmra.mxu0 %v3049
    %v3110 = vpop.f32.mrf.mxu0
    %v3111 = vadd.f32 0.0, %v3110
    %3112 = vdwg.mxu0
    %v3113 = vadd.f32 %v3050, %v3071
    %v3114 = vxor.u32 %v3113, 2147483648
    %v3115 = vmul.f32 %v3114, 1.442695
    %v3116 = vpow.pop %v3115
    %v3117 = vadd.f32 %v3116, 1.0
    %v3118 = vrcp.pop %v3117
    %v3119 = vmul.f32 %v3117, %v3118
    %v3120 = vsub.f32 1.0, %v3119
    %v3121 = vmul.f32 %v3118, %v3120
    %v3122 = vadd.f32 %v3118, %v3121
    %vm3123 = vweird.f32 %v3117
    %vm3124 = vweird.f32 %v3118
    %vm3125 = vmor %vm3123, %vm3124
    %v3126 = vsel %vm3125, %v3118, %v3122
    %v3127 = vand.u32 2147483647, %v3117
    %vm3128 = vcmp.eq.f32.partialorder %v3127, 8.507059e+37
    %v3129 = vand.u32 %v3117, 2147483648
    %v3130 = vor.u32 1.1754944e-38, %v3129
    %v3131 = vsel %vm3128, %v3130, %v3126
    %v3132 = vmul.f32 1.0, %v3131
    %v3133 = vadd.f32 %v3051, %v3091
    %v3134 = vxor.u32 %v3133, 2147483648
    %v3135 = vmul.f32 %v3134, 1.442695
    %v3136 = vpow.pop %v3135
    %v3137 = vadd.f32 %v3136, 1.0
    %v3138 = vrcp.pop %v3137
    %v3139 = vmul.f32 %v3137, %v3138
    %v3140 = vsub.f32 1.0, %v3139
    %v3141 = vmul.f32 %v3138, %v3140
    %v3142 = vadd.f32 %v3138, %v3141
    %vm3143 = vweird.f32 %v3137
    %vm3144 = vweird.f32 %v3138
    %vm3145 = vmor %vm3143, %vm3144
    %v3146 = vsel %vm3145, %v3138, %v3142
    %v3147 = vand.u32 2147483647, %v3137
    %vm3148 = vcmp.eq.f32.partialorder %v3147, 8.507059e+37
    %v3149 = vand.u32 %v3137, 2147483648
    %v3150 = vor.u32 1.1754944e-38, %v3149
    %v3151 = vsel %vm3148, %v3150, %v3146
    %v3152 = vmul.f32 1.0, %v3151
    %v3153 = vadd.f32 %v3111, %v2479
    %v3154 = vmul.f32 %v3132, %v3153
    %v3155 = vadd.f32 %v3052, %v3154
    %v3156 = vtanh.pop %v3155
    %v3157 = vsub.f32 1.0, %v3152
    %v3158 = vmul.f32 %v3157, %v3156
    %v3159 = vmul.f32 %v3152, %v3049
    %v3160 = vadd.f32 %v3158, %v3159
    %v3161 = vsel %vm1721, %v3160, %v3049
    %v3162 = vld [vmem:[%s1727] sm:$0xff]
    %v3163 = vld [vmem:[%s1727 + $0x8] sm:$0xff]
    %v3164 = vld [vmem:[%s1727 + $0x10] sm:$0xff]
    %3165 = vmatpush.msra.mxu0 %v2374
    %3166 = vmatpush.msra.mxu0 %v2371
    %3167 = vmatpush.msra.mxu0 %v2368
    %3168 = vmatpush.msra.mxu0 %v2365
    %3169 = vmatpush.msra.mxu0 %v2362
    %3170 = vmatpush.msra.mxu0 %v2359
    %3171 = vmatpush.msra.mxu0 %v2356
    %3172 = vmatpush.msra.mxu0 %v2353
    %3173 = vmatpush.msra.mxu0 %v2350
    %3174 = vmatpush.msra.mxu0 %v2347
    %3175 = vmatpush.msra.mxu0 %v2344
    %3176 = vmatpush.msra.mxu0 %v2341
    %3177 = vmatpush.msra.mxu0 %v2338
    %3178 = vmatpush.msra.mxu0 %v2335
    %3179 = vmatpush.msra.mxu0 %v2332
    %3180 = vmatpush.msra.mxu0 %v2329
    %3181 = vmatmul.f32.gmra.mxu0 %v3161
    %v3182 = vpop.f32.mrf.mxu0
    %v3183 = vadd.f32 0.0, %v3182
    %3184 = vdwg.mxu0
    %3185 = vmatpush.msra.mxu0 %v2375
    %3186 = vmatpush.msra.mxu0 %v2372
    %3187 = vmatpush.msra.mxu0 %v2369
    %3188 = vmatpush.msra.mxu0 %v2366
    %3189 = vmatpush.msra.mxu0 %v2363
    %3190 = vmatpush.msra.mxu0 %v2360
    %3191 = vmatpush.msra.mxu0 %v2357
    %3192 = vmatpush.msra.mxu0 %v2354
    %3193 = vmatpush.msra.mxu0 %v2351
    %3194 = vmatpush.msra.mxu0 %v2348
    %3195 = vmatpush.msra.mxu0 %v2345
    %3196 = vmatpush.msra.mxu0 %v2342
    %3197 = vmatpush.msra.mxu0 %v2339
    %3198 = vmatpush.msra.mxu0 %v2336
    %3199 = vmatpush.msra.mxu0 %v2333
    %3200 = vmatpush.msra.mxu0 %v2330
    %3201 = vmatmul.f32.gmra.mxu0 %v3161
    %v3202 = vpop.f32.mrf.mxu0
    %v3203 = vadd.f32 0.0, %v3202
    %3204 = vdwg.mxu0
    %3205 = vmatpush.msra.mxu0 %v2376
    %3206 = vmatpush.msra.mxu0 %v2373
    %3207 = vmatpush.msra.mxu0 %v2370
    %3208 = vmatpush.msra.mxu0 %v2367
    %3209 = vmatpush.msra.mxu0 %v2364
    %3210 = vmatpush.msra.mxu0 %v2361
    %3211 = vmatpush.msra.mxu0 %v2358
    %3212 = vmatpush.msra.mxu0 %v2355
    %3213 = vmatpush.msra.mxu0 %v2352
    %3214 = vmatpush.msra.mxu0 %v2349
    %3215 = vmatpush.msra.mxu0 %v2346
    %3216 = vmatpush.msra.mxu0 %v2343
    %3217 = vmatpush.msra.mxu0 %v2340
    %3218 = vmatpush.msra.mxu0 %v2337
    %3219 = vmatpush.msra.mxu0 %v2334
    %3220 = vmatpush.msra.mxu0 %v2331
    %3221 = vmatmul.f32.gmra.mxu0 %v3161
    %v3222 = vpop.f32.mrf.mxu0
    %v3223 = vadd.f32 0.0, %v3222
    %3224 = vdwg.mxu0
    %v3225 = vadd.f32 %v3162, %v3183
    %v3226 = vxor.u32 %v3225, 2147483648
    %v3227 = vmul.f32 %v3226, 1.442695
    %v3228 = vpow.pop %v3227
    %v3229 = vadd.f32 %v3228, 1.0
    %v3230 = vrcp.pop %v3229
    %v3231 = vmul.f32 %v3229, %v3230
    %v3232 = vsub.f32 1.0, %v3231
    %v3233 = vmul.f32 %v3230, %v3232
    %v3234 = vadd.f32 %v3230, %v3233
    %vm3235 = vweird.f32 %v3229
    %vm3236 = vweird.f32 %v3230
    %vm3237 = vmor %vm3235, %vm3236
    %v3238 = vsel %vm3237, %v3230, %v3234
    %v3239 = vand.u32 2147483647, %v3229
    %vm3240 = vcmp.eq.f32.partialorder %v3239, 8.507059e+37
    %v3241 = vand.u32 %v3229, 2147483648
    %v3242 = vor.u32 1.1754944e-38, %v3241
    %v3243 = vsel %vm3240, %v3242, %v3238
    %v3244 = vmul.f32 1.0, %v3243
    %v3245 = vadd.f32 %v3163, %v3203
    %v3246 = vxor.u32 %v3245, 2147483648
    %v3247 = vmul.f32 %v3246, 1.442695
    %v3248 = vpow.pop %v3247
    %v3249 = vadd.f32 %v3248, 1.0
    %v3250 = vrcp.pop %v3249
    %v3251 = vmul.f32 %v3249, %v3250
    %v3252 = vsub.f32 1.0, %v3251
    %v3253 = vmul.f32 %v3250, %v3252
    %v3254 = vadd.f32 %v3250, %v3253
    %vm3255 = vweird.f32 %v3249
    %vm3256 = vweird.f32 %v3250
    %vm3257 = vmor %vm3255, %vm3256
    %v3258 = vsel %vm3257, %v3250, %v3254
    %v3259 = vand.u32 2147483647, %v3249
    %vm3260 = vcmp.eq.f32.partialorder %v3259, 8.507059e+37
    %v3261 = vand.u32 %v3249, 2147483648
    %v3262 = vor.u32 1.1754944e-38, %v3261
    %v3263 = vsel %vm3260, %v3262, %v3258
    %v3264 = vmul.f32 1.0, %v3263
    %v3265 = vadd.f32 %v3223, %v2479
    %v3266 = vmul.f32 %v3244, %v3265
    %v3267 = vadd.f32 %v3164, %v3266
    %v3268 = vtanh.pop %v3267
    %v3269 = vsub.f32 1.0, %v3264
    %v3270 = vmul.f32 %v3269, %v3268
    %v3271 = vmul.f32 %v3264, %v3161
    %v3272 = vadd.f32 %v3270, %v3271
    %v3273 = vsel %vm1892, %v3272, %v3161
    %v3274 = vld [vmem:[#allocation12] sm:$0xff]
    %v3275 = vld [vmem:[#allocation12 + $0x8] sm:$0xff]
    %v3276 = vld [vmem:[#allocation12 + $0x10] sm:$0xff]
    %v3277 = vld [vmem:[#allocation12 + $0x18] sm:$0xff]
    %v3278 = vld [vmem:[#allocation12 + $0x20] sm:$0xff]
    %v3279 = vld [vmem:[#allocation12 + $0x28] sm:$0xff]
    %v3280 = vld [vmem:[#allocation12 + $0x30] sm:$0xff]
    %v3281 = vld [vmem:[#allocation12 + $0x38] sm:$0xff]
    %v3282 = vld [vmem:[#allocation12 + $0x40] sm:$0xff]
    %v3283 = vld [vmem:[#allocation12 + $0x48] sm:$0xff]
    %v3284 = vld [vmem:[#allocation12 + $0x50] sm:$0xff]
    %v3285 = vld [vmem:[#allocation12 + $0x58] sm:$0xff]
    %v3286 = vld [vmem:[#allocation12 + $0x60] sm:$0xff]
    %v3287 = vld [vmem:[#allocation12 + $0x68] sm:$0xff]
    %v3288 = vld [vmem:[#allocation12 + $0x70] sm:$0xff]
    %v3289 = vld [vmem:[#allocation12 + $0x78] sm:$0xff]
    %v3290 = vld [vmem:[#allocation13] sm:$0xff]
    %v3291 = vld [vmem:[#allocation13 + $0x8] sm:$0xff]
    %v3292 = vld [vmem:[#allocation13 + $0x10] sm:$0xff]
    %v3293 = vld [vmem:[#allocation13 + $0x18] sm:$0xff]
    %v3294 = vld [vmem:[#allocation13 + $0x20] sm:$0xff]
    %v3295 = vld [vmem:[#allocation13 + $0x28] sm:$0xff]
    %v3296 = vld [vmem:[#allocation13 + $0x30] sm:$0xff]
    %v3297 = vld [vmem:[#allocation13 + $0x38] sm:$0xff]
    %v3298 = vld [vmem:[#allocation13 + $0x40] sm:$0xff]
    %v3299 = vld [vmem:[#allocation13 + $0x48] sm:$0xff]
    %v3300 = vld [vmem:[#allocation13 + $0x50] sm:$0xff]
    %v3301 = vld [vmem:[#allocation13 + $0x58] sm:$0xff]
    %v3302 = vld [vmem:[#allocation13 + $0x60] sm:$0xff]
    %v3303 = vld [vmem:[#allocation13 + $0x68] sm:$0xff]
    %v3304 = vld [vmem:[#allocation13 + $0x70] sm:$0xff]
    %v3305 = vld [vmem:[#allocation13 + $0x78] sm:$0xff]
    %3306 = vmatpush.msra.mxu0 %v3305
    %3307 = vmatpush.msra.mxu0 %v3304
    %3308 = vmatpush.msra.mxu0 %v3303
    %3309 = vmatpush.msra.mxu0 %v3302
    %3310 = vmatpush.msra.mxu0 %v3301
    %3311 = vmatpush.msra.mxu0 %v3300
    %3312 = vmatpush.msra.mxu0 %v3299
    %3313 = vmatpush.msra.mxu0 %v3298
    %3314 = vmatpush.msra.mxu0 %v3297
    %3315 = vmatpush.msra.mxu0 %v3296
    %3316 = vmatpush.msra.mxu0 %v3295
    %3317 = vmatpush.msra.mxu0 %v3294
    %3318 = vmatpush.msra.mxu0 %v3293
    %3319 = vmatpush.msra.mxu0 %v3292
    %3320 = vmatpush.msra.mxu0 %v3291
    %3321 = vmatpush.msra.mxu0 %v3290
    %3322 = vmatmul.f32.gmra.mxu0 %v1893
    %v3323 = vpop.f32.mrf.mxu0
    %v3324 = vadd.f32 0.0, %v3323
    %3325 = vdwg.mxu0
    %3326 = vmatpush.msra.mxu0 %v3289
    %3327 = vmatpush.msra.mxu0 %v3288
    %3328 = vmatpush.msra.mxu0 %v3287
    %3329 = vmatpush.msra.mxu0 %v3286
    %3330 = vmatpush.msra.mxu0 %v3285
    %3331 = vmatpush.msra.mxu0 %v3284
    %3332 = vmatpush.msra.mxu0 %v3283
    %3333 = vmatpush.msra.mxu0 %v3282
    %3334 = vmatpush.msra.mxu0 %v3281
    %3335 = vmatpush.msra.mxu0 %v3280
    %3336 = vmatpush.msra.mxu0 %v3279
    %3337 = vmatpush.msra.mxu0 %v3278
    %3338 = vmatpush.msra.mxu0 %v3277
    %3339 = vmatpush.msra.mxu0 %v3276
    %3340 = vmatpush.msra.mxu0 %v3275
    %3341 = vmatpush.msra.mxu0 %v3274
    %3342 = vmatmul.f32.gmra.mxu0 %v3273
    %v3343 = vpop.f32.mrf.mxu0
    %v3344 = vadd.f32 %v3324, %v3343
    %3345 = vdwg.mxu0
    %v3346 = vld [vmem:[%s12] sm:$0x1]
    %v3348 = vperm.slane %v3346, 0
    %v3350 = vadd.f32 %v3344, %v3348
    %v3351 = vmax.f32 %v3350, 0.0
    %3352 = vst [vmem:[#allocation15] sm:$0xff] %v3351
    // Predicated region
    $region78: #{tpu_custom_call.1} parent=1 // pred_check
      _
    $region79: #{tpu_custom_call.1} parent=1 // pred_check_branch
      %3354 = sbr.rel (0) target = $region81
    $region80: #{tpu_custom_call.1} parent=1 // pred_region
      %3356 = vsyncadd [#allocation6], 0
      %s3358 = sshll.u32 [#allocation15], 4
      %s3359 = int_to_ptr.vmem [resolvable:$true] %s3358
      %s3360 = sshll.u32 %s13, 4
      %s3361 = int_to_ptr.hbm [resolvable:$true] %s3360
      %3363 = dma.vmem_to_hbm [thread:$0]  %s3359, 128, %s3361, [#allocation6]
    $region81: #{tpu_custom_call.1} parent=1 // pred_fallthru
      _
    // Predicated region
    $region82: #{tpu_custom_call.1} parent=1 // pred_check
      _
    $region83: #{tpu_custom_call.1} parent=1 // pred_check_branch
      %3365 = sbr.rel (0) target = $region85
    $region84: #{tpu_custom_call.1} parent=1 // pred_region
      %3367 = dma.done [#allocation6], 128
    $region85: #{tpu_custom_call.1} parent=1 // pred_fallthru
      _
    %3368 = vsyncpa [#allocation5], 1
    %3369 = vsyncpa [#allocation8], 1
    %3370 = vsyncpa [#allocation11], 1
    %3371 = vsyncpa [#allocation14], 1
    %3372 = vsyncpa [#allocation6], 1

</llo_original>
